<compile_context>
chip_gen: v6e
topology: v6e:2x2x1
jax: 0.10.0
libtpu: 0.0.40
codegen_flags: <defaults>
</compile_context>

<pallas_src>
import numpy as np
import jax
import jax.numpy as jnp
from jax.experimental import pallas as pl
from jax.experimental.pallas import tpu as pltpu

N_CLASSES = 7
LANE = 128


def _round_up(x, m):
    return (x + m - 1) // m * m


def _swish(x):
    # x * sigmoid(x) == x / (1 + exp(-x)); f32 epilogue (v5e-safe), exp on the EUP.
    return x / (1.0 + jnp.exp(-x))


# ----------------------------------------------------------------------------
# Single fused kernel: stem conv -> blk1 conv -> blk2 conv -> GAP -> head.
# One grid step per image; all activations stay in VMEM.
# ----------------------------------------------------------------------------
def _covidnext_fused_kernel(cols_ref, sw_ref, sb_ref,
                            g1_ref, w1_ref, b1_ref,
                            g2_ref, w2_ref, b2_ref,
                            hw_ref, hb_ref, o_ref):
    f32 = jnp.float32
    bf16 = jnp.bfloat16

    # --- stem: (tiny, precomputed) im2col matmul + bias + swish ---
    h = jnp.dot(cols_ref[0], sw_ref[...], preferred_element_type=f32)
    h = _swish(h + sb_ref[...]).astype(bf16)                      # (M0, 128)

    # --- blk1 / blk2: 3x3 stride-2 conv as 9 in-VMEM tap accumulations.
    # Each tap = (constant 0/1 gather matrix) @ h  -> the stride-2 shifted tap
    # rows (all-zero gather rows implement the pad-1 ring), then tap @ W_t is
    # accumulated in f32.  Both matmuls are plain 2-D MXU dots.
    for g_ref, w_ref, b_ref in ((g1_ref, w1_ref, b1_ref),
                                (g2_ref, w2_ref, b2_ref)):
        m_out = g_ref.shape[1]
        acc = jnp.zeros((m_out, LANE), f32)
        for t in range(9):                                        # unrolled, static
            tap = jnp.dot(g_ref[t], h, preferred_element_type=f32)
            acc = acc + jnp.dot(tap.astype(bf16), w_ref[t],
                                preferred_element_type=f32)
        h = _swish(acc + b_ref[...]).astype(bf16)                 # (M_out, 128)

    # --- fused global-average-pool + classifier head (linear ops commute) ---
    logits = jnp.dot(h, hw_ref[...], preferred_element_type=f32)  # (M2, 128)
    logits = jnp.mean(logits, axis=0, keepdims=True) + hb_ref[...]
    o_ref[0] = logits                                             # (1, 128)


def covidnext50_pallas(cols, sw, sb, g1, w1, b1, g2, w2, b2, hw, hb):
    B, M0, K0 = cols.shape
    M1 = g1.shape[1]
    M2 = g2.shape[1]
    out = pl.pallas_call(
        _covidnext_fused_kernel,
        out_shape=jax.ShapeDtypeStruct((B, 1, LANE), jnp.float32),
        grid=(B,),
        in_specs=[
            pl.BlockSpec((1, M0, K0), lambda b: (b, 0, 0)),       # stem im2col rows
            pl.BlockSpec((K0, LANE), lambda b: (0, 0)),           # stem weight
            pl.BlockSpec((1, LANE), lambda b: (0, 0)),            # stem bias
            pl.BlockSpec((9, M1, M0), lambda b: (0, 0, 0)),       # blk1 gather mats
            pl.BlockSpec((9, LANE, LANE), lambda b: (0, 0, 0)),   # blk1 tap weights
            pl.BlockSpec((1, LANE), lambda b: (0, 0)),            # blk1 bias
            pl.BlockSpec((9, M2, M1), lambda b: (0, 0, 0)),       # blk2 gather mats
            pl.BlockSpec((9, LANE, LANE), lambda b: (0, 0, 0)),   # blk2 tap weights
            pl.BlockSpec((1, LANE), lambda b: (0, 0)),            # blk2 bias
            pl.BlockSpec((LANE, LANE), lambda b: (0, 0)),         # head weight
            pl.BlockSpec((1, LANE), lambda b: (0, 0)),            # head bias
        ],
        out_specs=pl.BlockSpec((1, 1, LANE), lambda b: (b, 0, 0)),
        compiler_params=pltpu.CompilerParams(
            dimension_semantics=("parallel",)),    # v7x: one image per TensorCore
    )(cols, sw, sb, g1, w1, b1, g2, w2, b2, hw, hb)
    return out.reshape(B, LANE)


# ----------------------------------------------------------------------------
# JAX glue: stem im2col, constant gather matrices, parameter packing, forward.
# ----------------------------------------------------------------------------
def _stem_im2col(x_nhwc, stride=2, pad=1):
    """(B,H,W,C) -> (B, oh*ow, 9*C) patches for a 3x3 conv, (i, j, c) ordering."""
    B, H, W, C = x_nhwc.shape
    xp = jnp.pad(x_nhwc, ((0, 0), (pad, pad), (pad, pad), (0, 0)))
    oh = (H + 2 * pad - 3) // stride + 1
    ow = (W + 2 * pad - 3) // stride + 1
    taps = []
    for i in range(3):
        for j in range(3):
            taps.append(xp[:, i:i + stride * (oh - 1) + 1:stride,
                           j:j + stride * (ow - 1) + 1:stride, :])
    cols = jnp.concatenate(taps, axis=-1)                         # (B, oh, ow, 9C)
    return cols.reshape(B, oh * ow, 9 * C), oh, ow


def _conv_gather_mats(h_in, w_in):
    """Constant 0/1 tap-gather matrices for a 3x3 / stride-2 / pad-1 conv.

    G[t, m, n] = 1 iff output pixel m (row-major over the (oh, ow) grid) reads
    unpadded input pixel n (row-major over (h_in, w_in)) for tap t = ki*3 + kj.
    Rows whose tap lands in the padding ring stay all-zero.
    """
    oh = (h_in - 1) // 2 + 1
    ow = (w_in - 1) // 2 + 1
    g = np.zeros((9, oh * ow, h_in * w_in), np.float32)
    for ki in range(3):
        for kj in range(3):
            t = ki * 3 + kj
            for r in range(oh):
                ih = 2 * r + ki - 1
                if ih < 0 or ih >= h_in:
                    continue
                for c in range(ow):
                    iw = 2 * c + kj - 1
                    if iw < 0 or iw >= w_in:
                        continue
                    g[t, r * ow + c, ih * w_in + iw] = 1.0
    return g, oh, ow


def _pack_tap_weights(w):
    """(9*cin, cout) conv weight -> (9, 128, 128) bf16, zero-padded per tap."""
    cin, cout = w.shape[0] // 9, w.shape[1]
    wt = w.reshape(9, cin, cout)
    return jnp.pad(wt, ((0, 0), (0, LANE - cin), (0, LANE - cout))).astype(jnp.bfloat16)


def _pad_bias(b):
    return jnp.pad(b.astype(jnp.float32), (0, LANE - b.shape[0])).reshape(1, LANE)


def init_params(key):
    ks = jax.random.split(key, 8)

    def conv_w(k, kh, kw, cin, cout):
        fan_in = kh * kw * cin
        # (kh*kw*cin, cout), rows ordered (i, j, c) to match the tap ordering
        return jax.random.normal(k, (fan_in, cout), jnp.float32) * (2.0 / fan_in) ** 0.5

    def bias(k, cout):
        return jax.random.normal(k, (cout,), jnp.float32) * 0.01

    return {
        "stem_w": conv_w(ks[0], 3, 3, 3, 16),  "stem_b": bias(ks[1], 16),
        "blk1_w": conv_w(ks[2], 3, 3, 16, 32), "blk1_b": bias(ks[3], 32),
        "blk2_w": conv_w(ks[4], 3, 3, 32, 64), "blk2_b": bias(ks[5], 64),
        "head_w": jax.random.normal(ks[6], (64, N_CLASSES), jnp.float32) * (1.0 / 64) ** 0.5,
        "head_b": bias(ks[7], N_CLASSES),
    }


@jax.jit
def covidnext50_forward(params, x_nchw):
    """Forward pass: NCHW image batch -> (B, n_classes) logits."""
    x = jnp.transpose(x_nchw, (0, 2, 3, 1)).astype(jnp.bfloat16)    # NHWC, bf16

    # stem patches built in the wrapper (raw 3-channel image is tiny; the stem
    # contraction stays at K=32 instead of being blown up to 128 per the review)
    cols, oh0, ow0 = _stem_im2col(x)
    k0 = cols.shape[-1]
    k0p = _round_up(k0, 8)
    cols = jnp.pad(cols, ((0, 0), (0, 0), (0, k0p - k0)))

    # constant tap-gather matrices for the two in-kernel convs (trace-time numpy)
    g1_np, oh1, ow1 = _conv_gather_mats(oh0, ow0)
    g2_np, _, _ = _conv_gather_mats(oh1, ow1)
    g1 = jnp.asarray(g1_np, jnp.bfloat16)
    g2 = jnp.asarray(g2_np, jnp.bfloat16)

    # zero-padded, lane-dense (128-channel) parameters; bf16 MXU operands, f32 biases
    sw = jnp.pad(params["stem_w"],
                 ((0, k0p - params["stem_w"].shape[0]),
                  (0, LANE - params["stem_w"].shape[1]))).astype(jnp.bfloat16)
    sb = _pad_bias(params["stem_b"])
    w1 = _pack_tap_weights(params["blk1_w"])
    b1 = _pad_bias(params["blk1_b"])
    w2 = _pack_tap_weights(params["blk2_w"])
    b2 = _pad_bias(params["blk2_b"])
    hw = jnp.pad(params["head_w"],
                 ((0, LANE - params["head_w"].shape[0]),
                  (0, LANE - params["head_w"].shape[1]))).astype(jnp.bfloat16)
    hb = _pad_bias(params["head_b"])

    logits = covidnext50_pallas(cols, sw, sb, g1, w1, b1, g2, w2, b2, hw, hb)
    return logits[:, :N_CLASSES]


def probability(logits):
    # COVIDNext50.probability: softmax over last dim (plain JAX glue)
    return jax.nn.softmax(logits, axis=-1)


if __name__ == "__main__":
    key = jax.random.PRNGKey(0)
    pkey, xkey = jax.random.split(key)
    params = init_params(pkey)

    # small image batch consistent with an NCHW image classifier
    x = jax.random.normal(xkey, (2, 3, 32, 32), jnp.float32)

    logits = covidnext50_forward(params, x)
    logits = jax.block_until_ready(logits)
    probs = jax.block_until_ready(probability(logits))

    assert logits.shape == (2, N_CLASSES)
    assert probs.shape == (2, N_CLASSES)
    assert bool(jnp.all(jnp.isfinite(logits)))
    print("KERNEL_OK")
</pallas_src>

<mosaic_0001>
module attributes {stable_mosaic.version = 11 : i64} {
  func.func @_covidnext_fused_kernel(%arg0: i32, %arg1: memref<1x256x32xbf16, #tpu.memory_space<vmem>>, %arg2: memref<32x128xbf16, #tpu.memory_space<vmem>>, %arg3: memref<1x128xf32, #tpu.memory_space<vmem>>, %arg4: memref<9x64x256xbf16, #tpu.memory_space<vmem>>, %arg5: memref<9x128x128xbf16, #tpu.memory_space<vmem>>, %arg6: memref<1x128xf32, #tpu.memory_space<vmem>>, %arg7: memref<9x16x64xbf16, #tpu.memory_space<vmem>>, %arg8: memref<9x128x128xbf16, #tpu.memory_space<vmem>>, %arg9: memref<1x128xf32, #tpu.memory_space<vmem>>, %arg10: memref<128x128xbf16, #tpu.memory_space<vmem>>, %arg11: memref<1x128xf32, #tpu.memory_space<vmem>>, %arg12: memref<1x1x128xf32, #tpu.memory_space<vmem>>) attributes {dimension_semantics = [#tpu.dimension_semantics<parallel>], iteration_bounds = array<i64: 2>, scalar_prefetch = 0 : i64, scratch_operands = 0 : i64, tpu.core_type = #tpu.core_type<tc>, window_params = [{transform_indices = @transform_0, window_bounds = array<i64: 1, 256, 32>}, {pipeline_mode = #tpu.pipeline_mode<synchronous>, transform_indices = @transform_1, window_bounds = array<i64: 32, 128>}, {pipeline_mode = #tpu.pipeline_mode<synchronous>, transform_indices = @transform_2, window_bounds = array<i64: 1, 128>}, {pipeline_mode = #tpu.pipeline_mode<synchronous>, transform_indices = @transform_3, window_bounds = array<i64: 9, 64, 256>}, {pipeline_mode = #tpu.pipeline_mode<synchronous>, transform_indices = @transform_4, window_bounds = array<i64: 9, 128, 128>}, {pipeline_mode = #tpu.pipeline_mode<synchronous>, transform_indices = @transform_5, window_bounds = array<i64: 1, 128>}, {pipeline_mode = #tpu.pipeline_mode<synchronous>, transform_indices = @transform_6, window_bounds = array<i64: 9, 16, 64>}, {pipeline_mode = #tpu.pipeline_mode<synchronous>, transform_indices = @transform_7, window_bounds = array<i64: 9, 128, 128>}, {pipeline_mode = #tpu.pipeline_mode<synchronous>, transform_indices = @transform_8, window_bounds = array<i64: 1, 128>}, {pipeline_mode = #tpu.pipeline_mode<synchronous>, transform_indices = @transform_9, window_bounds = array<i64: 128, 128>}, {pipeline_mode = #tpu.pipeline_mode<synchronous>, transform_indices = @transform_10, window_bounds = array<i64: 1, 128>}, {transform_indices = @transform_11, window_bounds = array<i64: 1, 1, 128>}]} {
    %c0 = arith.constant 0 : index
    %c0_0 = arith.constant 0 : index
    %c0_1 = arith.constant 0 : index
    %0 = vector.load %arg1[%c0, %c0_0, %c0_1] : memref<1x256x32xbf16, #tpu.memory_space<vmem>>, vector<1x256x32xbf16>
    %1 = vector.shape_cast %0 : vector<1x256x32xbf16> to vector<256x32xbf16>
    %c0_2 = arith.constant 0 : index
    %c0_3 = arith.constant 0 : index
    %2 = vector.load %arg2[%c0_2, %c0_3] : memref<32x128xbf16, #tpu.memory_space<vmem>>, vector<32x128xbf16>
    %cst = arith.constant dense<0.000000e+00> : vector<256x128xf32>
    %3 = tpu.matmul %1, %2, %cst {dimension_numbers = #tpu.dot_dimension_numbers<[1], [0], [0], [1], [0, 0, 1, 1], [], []>} : vector<256x32xbf16>, vector<32x128xbf16>, vector<256x128xf32> -> vector<256x128xf32>
    %c0_4 = arith.constant 0 : index
    %c0_5 = arith.constant 0 : index
    %4 = vector.load %arg3[%c0_4, %c0_5] : memref<1x128xf32, #tpu.memory_space<vmem>>, vector<1x128xf32>
    %5 = vector.broadcast %4 : vector<1x128xf32> to vector<256x128xf32>
    %6 = arith.addf %3, %5 : vector<256x128xf32>
    %cst_6 = arith.constant 0.000000e+00 : f32
    %7 = vector.broadcast %cst_6 : f32 to vector<256x128xf32>
    %8 = arith.subf %7, %6 : vector<256x128xf32>
    %9 = math.exp %8 : vector<256x128xf32>
    %cst_7 = arith.constant 1.000000e+00 : f32
    %10 = vector.broadcast %cst_7 : f32 to vector<256x128xf32>
    %11 = arith.addf %10, %9 : vector<256x128xf32>
    %12 = arith.divf %6, %11 : vector<256x128xf32>
    %13 = arith.truncf %12 : vector<256x128xf32> to vector<256x128xbf16>
    %cst_8 = arith.constant 0.000000e+00 : f32
    %14 = vector.broadcast %cst_8 : f32 to vector<64x128xf32>
    %c0_9 = arith.constant 0 : index
    %c0_10 = arith.constant 0 : index
    %c0_11 = arith.constant 0 : index
    %15 = vector.load %arg4[%c0_9, %c0_10, %c0_11] : memref<9x64x256xbf16, #tpu.memory_space<vmem>>, vector<1x64x256xbf16>
    %16 = vector.shape_cast %15 : vector<1x64x256xbf16> to vector<64x256xbf16>
    %cst_12 = arith.constant dense<0.000000e+00> : vector<64x128xf32>
    %17 = tpu.matmul %16, %13, %cst_12 {dimension_numbers = #tpu.dot_dimension_numbers<[1], [0], [0], [1], [0, 0, 1, 1], [], []>} : vector<64x256xbf16>, vector<256x128xbf16>, vector<64x128xf32> -> vector<64x128xf32>
    %18 = arith.truncf %17 : vector<64x128xf32> to vector<64x128xbf16>
    %c0_13 = arith.constant 0 : index
    %c0_14 = arith.constant 0 : index
    %c0_15 = arith.constant 0 : index
    %19 = vector.load %arg5[%c0_13, %c0_14, %c0_15] : memref<9x128x128xbf16, #tpu.memory_space<vmem>>, vector<1x128x128xbf16>
    %20 = vector.shape_cast %19 : vector<1x128x128xbf16> to vector<128x128xbf16>
    %cst_16 = arith.constant dense<0.000000e+00> : vector<64x128xf32>
    %21 = tpu.matmul %18, %20, %cst_16 {dimension_numbers = #tpu.dot_dimension_numbers<[1], [0], [0], [1], [0, 0, 1, 1], [], []>} : vector<64x128xbf16>, vector<128x128xbf16>, vector<64x128xf32> -> vector<64x128xf32>
    %22 = arith.addf %14, %21 : vector<64x128xf32>
    %c1 = arith.constant 1 : index
    %c0_17 = arith.constant 0 : index
    %c0_18 = arith.constant 0 : index
    %23 = vector.load %arg4[%c1, %c0_17, %c0_18] : memref<9x64x256xbf16, #tpu.memory_space<vmem>>, vector<1x64x256xbf16>
    %24 = vector.shape_cast %23 : vector<1x64x256xbf16> to vector<64x256xbf16>
    %cst_19 = arith.constant dense<0.000000e+00> : vector<64x128xf32>
    %25 = tpu.matmul %24, %13, %cst_19 {dimension_numbers = #tpu.dot_dimension_numbers<[1], [0], [0], [1], [0, 0, 1, 1], [], []>} : vector<64x256xbf16>, vector<256x128xbf16>, vector<64x128xf32> -> vector<64x128xf32>
    %26 = arith.truncf %25 : vector<64x128xf32> to vector<64x128xbf16>
    %c1_20 = arith.constant 1 : index
    %c0_21 = arith.constant 0 : index
    %c0_22 = arith.constant 0 : index
    %27 = vector.load %arg5[%c1_20, %c0_21, %c0_22] : memref<9x128x128xbf16, #tpu.memory_space<vmem>>, vector<1x128x128xbf16>
    %28 = vector.shape_cast %27 : vector<1x128x128xbf16> to vector<128x128xbf16>
    %cst_23 = arith.constant dense<0.000000e+00> : vector<64x128xf32>
    %29 = tpu.matmul %26, %28, %cst_23 {dimension_numbers = #tpu.dot_dimension_numbers<[1], [0], [0], [1], [0, 0, 1, 1], [], []>} : vector<64x128xbf16>, vector<128x128xbf16>, vector<64x128xf32> -> vector<64x128xf32>
    %30 = arith.addf %22, %29 : vector<64x128xf32>
    %c2 = arith.constant 2 : index
    %c0_24 = arith.constant 0 : index
    %c0_25 = arith.constant 0 : index
    %31 = vector.load %arg4[%c2, %c0_24, %c0_25] : memref<9x64x256xbf16, #tpu.memory_space<vmem>>, vector<1x64x256xbf16>
    %32 = vector.shape_cast %31 : vector<1x64x256xbf16> to vector<64x256xbf16>
    %cst_26 = arith.constant dense<0.000000e+00> : vector<64x128xf32>
    %33 = tpu.matmul %32, %13, %cst_26 {dimension_numbers = #tpu.dot_dimension_numbers<[1], [0], [0], [1], [0, 0, 1, 1], [], []>} : vector<64x256xbf16>, vector<256x128xbf16>, vector<64x128xf32> -> vector<64x128xf32>
    %34 = arith.truncf %33 : vector<64x128xf32> to vector<64x128xbf16>
    %c2_27 = arith.constant 2 : index
    %c0_28 = arith.constant 0 : index
    %c0_29 = arith.constant 0 : index
    %35 = vector.load %arg5[%c2_27, %c0_28, %c0_29] : memref<9x128x128xbf16, #tpu.memory_space<vmem>>, vector<1x128x128xbf16>
    %36 = vector.shape_cast %35 : vector<1x128x128xbf16> to vector<128x128xbf16>
    %cst_30 = arith.constant dense<0.000000e+00> : vector<64x128xf32>
    %37 = tpu.matmul %34, %36, %cst_30 {dimension_numbers = #tpu.dot_dimension_numbers<[1], [0], [0], [1], [0, 0, 1, 1], [], []>} : vector<64x128xbf16>, vector<128x128xbf16>, vector<64x128xf32> -> vector<64x128xf32>
    %38 = arith.addf %30, %37 : vector<64x128xf32>
    %c3 = arith.constant 3 : index
    %c0_31 = arith.constant 0 : index
    %c0_32 = arith.constant 0 : index
    %39 = vector.load %arg4[%c3, %c0_31, %c0_32] : memref<9x64x256xbf16, #tpu.memory_space<vmem>>, vector<1x64x256xbf16>
    %40 = vector.shape_cast %39 : vector<1x64x256xbf16> to vector<64x256xbf16>
    %cst_33 = arith.constant dense<0.000000e+00> : vector<64x128xf32>
    %41 = tpu.matmul %40, %13, %cst_33 {dimension_numbers = #tpu.dot_dimension_numbers<[1], [0], [0], [1], [0, 0, 1, 1], [], []>} : vector<64x256xbf16>, vector<256x128xbf16>, vector<64x128xf32> -> vector<64x128xf32>
    %42 = arith.truncf %41 : vector<64x128xf32> to vector<64x128xbf16>
    %c3_34 = arith.constant 3 : index
    %c0_35 = arith.constant 0 : index
    %c0_36 = arith.constant 0 : index
    %43 = vector.load %arg5[%c3_34, %c0_35, %c0_36] : memref<9x128x128xbf16, #tpu.memory_space<vmem>>, vector<1x128x128xbf16>
    %44 = vector.shape_cast %43 : vector<1x128x128xbf16> to vector<128x128xbf16>
    %cst_37 = arith.constant dense<0.000000e+00> : vector<64x128xf32>
    %45 = tpu.matmul %42, %44, %cst_37 {dimension_numbers = #tpu.dot_dimension_numbers<[1], [0], [0], [1], [0, 0, 1, 1], [], []>} : vector<64x128xbf16>, vector<128x128xbf16>, vector<64x128xf32> -> vector<64x128xf32>
    %46 = arith.addf %38, %45 : vector<64x128xf32>
    %c4 = arith.constant 4 : index
    %c0_38 = arith.constant 0 : index
    %c0_39 = arith.constant 0 : index
    %47 = vector.load %arg4[%c4, %c0_38, %c0_39] : memref<9x64x256xbf16, #tpu.memory_space<vmem>>, vector<1x64x256xbf16>
    %48 = vector.shape_cast %47 : vector<1x64x256xbf16> to vector<64x256xbf16>
    %cst_40 = arith.constant dense<0.000000e+00> : vector<64x128xf32>
    %49 = tpu.matmul %48, %13, %cst_40 {dimension_numbers = #tpu.dot_dimension_numbers<[1], [0], [0], [1], [0, 0, 1, 1], [], []>} : vector<64x256xbf16>, vector<256x128xbf16>, vector<64x128xf32> -> vector<64x128xf32>
    %50 = arith.truncf %49 : vector<64x128xf32> to vector<64x128xbf16>
    %c4_41 = arith.constant 4 : index
    %c0_42 = arith.constant 0 : index
    %c0_43 = arith.constant 0 : index
    %51 = vector.load %arg5[%c4_41, %c0_42, %c0_43] : memref<9x128x128xbf16, #tpu.memory_space<vmem>>, vector<1x128x128xbf16>
    %52 = vector.shape_cast %51 : vector<1x128x128xbf16> to vector<128x128xbf16>
    %cst_44 = arith.constant dense<0.000000e+00> : vector<64x128xf32>
    %53 = tpu.matmul %50, %52, %cst_44 {dimension_numbers = #tpu.dot_dimension_numbers<[1], [0], [0], [1], [0, 0, 1, 1], [], []>} : vector<64x128xbf16>, vector<128x128xbf16>, vector<64x128xf32> -> vector<64x128xf32>
    %54 = arith.addf %46, %53 : vector<64x128xf32>
    %c5 = arith.constant 5 : index
    %c0_45 = arith.constant 0 : index
    %c0_46 = arith.constant 0 : index
    %55 = vector.load %arg4[%c5, %c0_45, %c0_46] : memref<9x64x256xbf16, #tpu.memory_space<vmem>>, vector<1x64x256xbf16>
    %56 = vector.shape_cast %55 : vector<1x64x256xbf16> to vector<64x256xbf16>
    %cst_47 = arith.constant dense<0.000000e+00> : vector<64x128xf32>
    %57 = tpu.matmul %56, %13, %cst_47 {dimension_numbers = #tpu.dot_dimension_numbers<[1], [0], [0], [1], [0, 0, 1, 1], [], []>} : vector<64x256xbf16>, vector<256x128xbf16>, vector<64x128xf32> -> vector<64x128xf32>
    %58 = arith.truncf %57 : vector<64x128xf32> to vector<64x128xbf16>
    %c5_48 = arith.constant 5 : index
    %c0_49 = arith.constant 0 : index
    %c0_50 = arith.constant 0 : index
    %59 = vector.load %arg5[%c5_48, %c0_49, %c0_50] : memref<9x128x128xbf16, #tpu.memory_space<vmem>>, vector<1x128x128xbf16>
    %60 = vector.shape_cast %59 : vector<1x128x128xbf16> to vector<128x128xbf16>
    %cst_51 = arith.constant dense<0.000000e+00> : vector<64x128xf32>
    %61 = tpu.matmul %58, %60, %cst_51 {dimension_numbers = #tpu.dot_dimension_numbers<[1], [0], [0], [1], [0, 0, 1, 1], [], []>} : vector<64x128xbf16>, vector<128x128xbf16>, vector<64x128xf32> -> vector<64x128xf32>
    %62 = arith.addf %54, %61 : vector<64x128xf32>
    %c6 = arith.constant 6 : index
    %c0_52 = arith.constant 0 : index
    %c0_53 = arith.constant 0 : index
    %63 = vector.load %arg4[%c6, %c0_52, %c0_53] : memref<9x64x256xbf16, #tpu.memory_space<vmem>>, vector<1x64x256xbf16>
    %64 = vector.shape_cast %63 : vector<1x64x256xbf16> to vector<64x256xbf16>
    %cst_54 = arith.constant dense<0.000000e+00> : vector<64x128xf32>
    %65 = tpu.matmul %64, %13, %cst_54 {dimension_numbers = #tpu.dot_dimension_numbers<[1], [0], [0], [1], [0, 0, 1, 1], [], []>} : vector<64x256xbf16>, vector<256x128xbf16>, vector<64x128xf32> -> vector<64x128xf32>
    %66 = arith.truncf %65 : vector<64x128xf32> to vector<64x128xbf16>
    %c6_55 = arith.constant 6 : index
    %c0_56 = arith.constant 0 : index
    %c0_57 = arith.constant 0 : index
    %67 = vector.load %arg5[%c6_55, %c0_56, %c0_57] : memref<9x128x128xbf16, #tpu.memory_space<vmem>>, vector<1x128x128xbf16>
    %68 = vector.shape_cast %67 : vector<1x128x128xbf16> to vector<128x128xbf16>
    %cst_58 = arith.constant dense<0.000000e+00> : vector<64x128xf32>
    %69 = tpu.matmul %66, %68, %cst_58 {dimension_numbers = #tpu.dot_dimension_numbers<[1], [0], [0], [1], [0, 0, 1, 1], [], []>} : vector<64x128xbf16>, vector<128x128xbf16>, vector<64x128xf32> -> vector<64x128xf32>
    %70 = arith.addf %62, %69 : vector<64x128xf32>
    %c7 = arith.constant 7 : index
    %c0_59 = arith.constant 0 : index
    %c0_60 = arith.constant 0 : index
    %71 = vector.load %arg4[%c7, %c0_59, %c0_60] : memref<9x64x256xbf16, #tpu.memory_space<vmem>>, vector<1x64x256xbf16>
    %72 = vector.shape_cast %71 : vector<1x64x256xbf16> to vector<64x256xbf16>
    %cst_61 = arith.constant dense<0.000000e+00> : vector<64x128xf32>
    %73 = tpu.matmul %72, %13, %cst_61 {dimension_numbers = #tpu.dot_dimension_numbers<[1], [0], [0], [1], [0, 0, 1, 1], [], []>} : vector<64x256xbf16>, vector<256x128xbf16>, vector<64x128xf32> -> vector<64x128xf32>
    %74 = arith.truncf %73 : vector<64x128xf32> to vector<64x128xbf16>
    %c7_62 = arith.constant 7 : index
    %c0_63 = arith.constant 0 : index
    %c0_64 = arith.constant 0 : index
    %75 = vector.load %arg5[%c7_62, %c0_63, %c0_64] : memref<9x128x128xbf16, #tpu.memory_space<vmem>>, vector<1x128x128xbf16>
    %76 = vector.shape_cast %75 : vector<1x128x128xbf16> to vector<128x128xbf16>
    %cst_65 = arith.constant dense<0.000000e+00> : vector<64x128xf32>
    %77 = tpu.matmul %74, %76, %cst_65 {dimension_numbers = #tpu.dot_dimension_numbers<[1], [0], [0], [1], [0, 0, 1, 1], [], []>} : vector<64x128xbf16>, vector<128x128xbf16>, vector<64x128xf32> -> vector<64x128xf32>
    %78 = arith.addf %70, %77 : vector<64x128xf32>
    %c8 = arith.constant 8 : index
    %c0_66 = arith.constant 0 : index
    %c0_67 = arith.constant 0 : index
    %79 = vector.load %arg4[%c8, %c0_66, %c0_67] : memref<9x64x256xbf16, #tpu.memory_space<vmem>>, vector<1x64x256xbf16>
    %80 = vector.shape_cast %79 : vector<1x64x256xbf16> to vector<64x256xbf16>
    %cst_68 = arith.constant dense<0.000000e+00> : vector<64x128xf32>
    %81 = tpu.matmul %80, %13, %cst_68 {dimension_numbers = #tpu.dot_dimension_numbers<[1], [0], [0], [1], [0, 0, 1, 1], [], []>} : vector<64x256xbf16>, vector<256x128xbf16>, vector<64x128xf32> -> vector<64x128xf32>
    %82 = arith.truncf %81 : vector<64x128xf32> to vector<64x128xbf16>
    %c8_69 = arith.constant 8 : index
    %c0_70 = arith.constant 0 : index
    %c0_71 = arith.constant 0 : index
    %83 = vector.load %arg5[%c8_69, %c0_70, %c0_71] : memref<9x128x128xbf16, #tpu.memory_space<vmem>>, vector<1x128x128xbf16>
    %84 = vector.shape_cast %83 : vector<1x128x128xbf16> to vector<128x128xbf16>
    %cst_72 = arith.constant dense<0.000000e+00> : vector<64x128xf32>
    %85 = tpu.matmul %82, %84, %cst_72 {dimension_numbers = #tpu.dot_dimension_numbers<[1], [0], [0], [1], [0, 0, 1, 1], [], []>} : vector<64x128xbf16>, vector<128x128xbf16>, vector<64x128xf32> -> vector<64x128xf32>
    %86 = arith.addf %78, %85 : vector<64x128xf32>
    %c0_73 = arith.constant 0 : index
    %c0_74 = arith.constant 0 : index
    %87 = vector.load %arg6[%c0_73, %c0_74] : memref<1x128xf32, #tpu.memory_space<vmem>>, vector<1x128xf32>
    %88 = vector.broadcast %87 : vector<1x128xf32> to vector<64x128xf32>
    %89 = arith.addf %86, %88 : vector<64x128xf32>
    %cst_75 = arith.constant 0.000000e+00 : f32
    %90 = vector.broadcast %cst_75 : f32 to vector<64x128xf32>
    %91 = arith.subf %90, %89 : vector<64x128xf32>
    %92 = math.exp %91 : vector<64x128xf32>
    %cst_76 = arith.constant 1.000000e+00 : f32
    %93 = vector.broadcast %cst_76 : f32 to vector<64x128xf32>
    %94 = arith.addf %93, %92 : vector<64x128xf32>
    %95 = arith.divf %89, %94 : vector<64x128xf32>
    %96 = arith.truncf %95 : vector<64x128xf32> to vector<64x128xbf16>
    %cst_77 = arith.constant 0.000000e+00 : f32
    %97 = vector.broadcast %cst_77 : f32 to vector<16x128xf32>
    %c0_78 = arith.constant 0 : index
    %c0_79 = arith.constant 0 : index
    %c0_80 = arith.constant 0 : index
    %98 = vector.load %arg7[%c0_78, %c0_79, %c0_80] : memref<9x16x64xbf16, #tpu.memory_space<vmem>>, vector<1x16x64xbf16>
    %99 = vector.shape_cast %98 : vector<1x16x64xbf16> to vector<16x64xbf16>
    %cst_81 = arith.constant dense<0.000000e+00> : vector<16x128xf32>
    %100 = tpu.matmul %99, %96, %cst_81 {dimension_numbers = #tpu.dot_dimension_numbers<[1], [0], [0], [1], [0, 0, 1, 1], [], []>} : vector<16x64xbf16>, vector<64x128xbf16>, vector<16x128xf32> -> vector<16x128xf32>
    %101 = arith.truncf %100 : vector<16x128xf32> to vector<16x128xbf16>
    %c0_82 = arith.constant 0 : index
    %c0_83 = arith.constant 0 : index
    %c0_84 = arith.constant 0 : index
    %102 = vector.load %arg8[%c0_82, %c0_83, %c0_84] : memref<9x128x128xbf16, #tpu.memory_space<vmem>>, vector<1x128x128xbf16>
    %103 = vector.shape_cast %102 : vector<1x128x128xbf16> to vector<128x128xbf16>
    %cst_85 = arith.constant dense<0.000000e+00> : vector<16x128xf32>
    %104 = tpu.matmul %101, %103, %cst_85 {dimension_numbers = #tpu.dot_dimension_numbers<[1], [0], [0], [1], [0, 0, 1, 1], [], []>} : vector<16x128xbf16>, vector<128x128xbf16>, vector<16x128xf32> -> vector<16x128xf32>
    %105 = arith.addf %97, %104 : vector<16x128xf32>
    %c1_86 = arith.constant 1 : index
    %c0_87 = arith.constant 0 : index
    %c0_88 = arith.constant 0 : index
    %106 = vector.load %arg7[%c1_86, %c0_87, %c0_88] : memref<9x16x64xbf16, #tpu.memory_space<vmem>>, vector<1x16x64xbf16>
    %107 = vector.shape_cast %106 : vector<1x16x64xbf16> to vector<16x64xbf16>
    %cst_89 = arith.constant dense<0.000000e+00> : vector<16x128xf32>
    %108 = tpu.matmul %107, %96, %cst_89 {dimension_numbers = #tpu.dot_dimension_numbers<[1], [0], [0], [1], [0, 0, 1, 1], [], []>} : vector<16x64xbf16>, vector<64x128xbf16>, vector<16x128xf32> -> vector<16x128xf32>
    %109 = arith.truncf %108 : vector<16x128xf32> to vector<16x128xbf16>
    %c1_90 = arith.constant 1 : index
    %c0_91 = arith.constant 0 : index
    %c0_92 = arith.constant 0 : index
    %110 = vector.load %arg8[%c1_90, %c0_91, %c0_92] : memref<9x128x128xbf16, #tpu.memory_space<vmem>>, vector<1x128x128xbf16>
    %111 = vector.shape_cast %110 : vector<1x128x128xbf16> to vector<128x128xbf16>
    %cst_93 = arith.constant dense<0.000000e+00> : vector<16x128xf32>
    %112 = tpu.matmul %109, %111, %cst_93 {dimension_numbers = #tpu.dot_dimension_numbers<[1], [0], [0], [1], [0, 0, 1, 1], [], []>} : vector<16x128xbf16>, vector<128x128xbf16>, vector<16x128xf32> -> vector<16x128xf32>
    %113 = arith.addf %105, %112 : vector<16x128xf32>
    %c2_94 = arith.constant 2 : index
    %c0_95 = arith.constant 0 : index
    %c0_96 = arith.constant 0 : index
    %114 = vector.load %arg7[%c2_94, %c0_95, %c0_96] : memref<9x16x64xbf16, #tpu.memory_space<vmem>>, vector<1x16x64xbf16>
    %115 = vector.shape_cast %114 : vector<1x16x64xbf16> to vector<16x64xbf16>
    %cst_97 = arith.constant dense<0.000000e+00> : vector<16x128xf32>
    %116 = tpu.matmul %115, %96, %cst_97 {dimension_numbers = #tpu.dot_dimension_numbers<[1], [0], [0], [1], [0, 0, 1, 1], [], []>} : vector<16x64xbf16>, vector<64x128xbf16>, vector<16x128xf32> -> vector<16x128xf32>
    %117 = arith.truncf %116 : vector<16x128xf32> to vector<16x128xbf16>
    %c2_98 = arith.constant 2 : index
    %c0_99 = arith.constant 0 : index
    %c0_100 = arith.constant 0 : index
    %118 = vector.load %arg8[%c2_98, %c0_99, %c0_100] : memref<9x128x128xbf16, #tpu.memory_space<vmem>>, vector<1x128x128xbf16>
    %119 = vector.shape_cast %118 : vector<1x128x128xbf16> to vector<128x128xbf16>
    %cst_101 = arith.constant dense<0.000000e+00> : vector<16x128xf32>
    %120 = tpu.matmul %117, %119, %cst_101 {dimension_numbers = #tpu.dot_dimension_numbers<[1], [0], [0], [1], [0, 0, 1, 1], [], []>} : vector<16x128xbf16>, vector<128x128xbf16>, vector<16x128xf32> -> vector<16x128xf32>
    %121 = arith.addf %113, %120 : vector<16x128xf32>
    %c3_102 = arith.constant 3 : index
    %c0_103 = arith.constant 0 : index
    %c0_104 = arith.constant 0 : index
    %122 = vector.load %arg7[%c3_102, %c0_103, %c0_104] : memref<9x16x64xbf16, #tpu.memory_space<vmem>>, vector<1x16x64xbf16>
    %123 = vector.shape_cast %122 : vector<1x16x64xbf16> to vector<16x64xbf16>
    %cst_105 = arith.constant dense<0.000000e+00> : vector<16x128xf32>
    %124 = tpu.matmul %123, %96, %cst_105 {dimension_numbers = #tpu.dot_dimension_numbers<[1], [0], [0], [1], [0, 0, 1, 1], [], []>} : vector<16x64xbf16>, vector<64x128xbf16>, vector<16x128xf32> -> vector<16x128xf32>
    %125 = arith.truncf %124 : vector<16x128xf32> to vector<16x128xbf16>
    %c3_106 = arith.constant 3 : index
    %c0_107 = arith.constant 0 : index
    %c0_108 = arith.constant 0 : index
    %126 = vector.load %arg8[%c3_106, %c0_107, %c0_108] : memref<9x128x128xbf16, #tpu.memory_space<vmem>>, vector<1x128x128xbf16>
    %127 = vector.shape_cast %126 : vector<1x128x128xbf16> to vector<128x128xbf16>
    %cst_109 = arith.constant dense<0.000000e+00> : vector<16x128xf32>
    %128 = tpu.matmul %125, %127, %cst_109 {dimension_numbers = #tpu.dot_dimension_numbers<[1], [0], [0], [1], [0, 0, 1, 1], [], []>} : vector<16x128xbf16>, vector<128x128xbf16>, vector<16x128xf32> -> vector<16x128xf32>
    %129 = arith.addf %121, %128 : vector<16x128xf32>
    %c4_110 = arith.constant 4 : index
    %c0_111 = arith.constant 0 : index
    %c0_112 = arith.constant 0 : index
    %130 = vector.load %arg7[%c4_110, %c0_111, %c0_112] : memref<9x16x64xbf16, #tpu.memory_space<vmem>>, vector<1x16x64xbf16>
    %131 = vector.shape_cast %130 : vector<1x16x64xbf16> to vector<16x64xbf16>
    %cst_113 = arith.constant dense<0.000000e+00> : vector<16x128xf32>
    %132 = tpu.matmul %131, %96, %cst_113 {dimension_numbers = #tpu.dot_dimension_numbers<[1], [0], [0], [1], [0, 0, 1, 1], [], []>} : vector<16x64xbf16>, vector<64x128xbf16>, vector<16x128xf32> -> vector<16x128xf32>
    %133 = arith.truncf %132 : vector<16x128xf32> to vector<16x128xbf16>
    %c4_114 = arith.constant 4 : index
    %c0_115 = arith.constant 0 : index
    %c0_116 = arith.constant 0 : index
    %134 = vector.load %arg8[%c4_114, %c0_115, %c0_116] : memref<9x128x128xbf16, #tpu.memory_space<vmem>>, vector<1x128x128xbf16>
    %135 = vector.shape_cast %134 : vector<1x128x128xbf16> to vector<128x128xbf16>
    %cst_117 = arith.constant dense<0.000000e+00> : vector<16x128xf32>
    %136 = tpu.matmul %133, %135, %cst_117 {dimension_numbers = #tpu.dot_dimension_numbers<[1], [0], [0], [1], [0, 0, 1, 1], [], []>} : vector<16x128xbf16>, vector<128x128xbf16>, vector<16x128xf32> -> vector<16x128xf32>
    %137 = arith.addf %129, %136 : vector<16x128xf32>
    %c5_118 = arith.constant 5 : index
    %c0_119 = arith.constant 0 : index
    %c0_120 = arith.constant 0 : index
    %138 = vector.load %arg7[%c5_118, %c0_119, %c0_120] : memref<9x16x64xbf16, #tpu.memory_space<vmem>>, vector<1x16x64xbf16>
    %139 = vector.shape_cast %138 : vector<1x16x64xbf16> to vector<16x64xbf16>
    %cst_121 = arith.constant dense<0.000000e+00> : vector<16x128xf32>
    %140 = tpu.matmul %139, %96, %cst_121 {dimension_numbers = #tpu.dot_dimension_numbers<[1], [0], [0], [1], [0, 0, 1, 1], [], []>} : vector<16x64xbf16>, vector<64x128xbf16>, vector<16x128xf32> -> vector<16x128xf32>
    %141 = arith.truncf %140 : vector<16x128xf32> to vector<16x128xbf16>
    %c5_122 = arith.constant 5 : index
    %c0_123 = arith.constant 0 : index
    %c0_124 = arith.constant 0 : index
    %142 = vector.load %arg8[%c5_122, %c0_123, %c0_124] : memref<9x128x128xbf16, #tpu.memory_space<vmem>>, vector<1x128x128xbf16>
    %143 = vector.shape_cast %142 : vector<1x128x128xbf16> to vector<128x128xbf16>
    %cst_125 = arith.constant dense<0.000000e+00> : vector<16x128xf32>
    %144 = tpu.matmul %141, %143, %cst_125 {dimension_numbers = #tpu.dot_dimension_numbers<[1], [0], [0], [1], [0, 0, 1, 1], [], []>} : vector<16x128xbf16>, vector<128x128xbf16>, vector<16x128xf32> -> vector<16x128xf32>
    %145 = arith.addf %137, %144 : vector<16x128xf32>
    %c6_126 = arith.constant 6 : index
    %c0_127 = arith.constant 0 : index
    %c0_128 = arith.constant 0 : index
    %146 = vector.load %arg7[%c6_126, %c0_127, %c0_128] : memref<9x16x64xbf16, #tpu.memory_space<vmem>>, vector<1x16x64xbf16>
    %147 = vector.shape_cast %146 : vector<1x16x64xbf16> to vector<16x64xbf16>
    %cst_129 = arith.constant dense<0.000000e+00> : vector<16x128xf32>
    %148 = tpu.matmul %147, %96, %cst_129 {dimension_numbers = #tpu.dot_dimension_numbers<[1], [0], [0], [1], [0, 0, 1, 1], [], []>} : vector<16x64xbf16>, vector<64x128xbf16>, vector<16x128xf32> -> vector<16x128xf32>
    %149 = arith.truncf %148 : vector<16x128xf32> to vector<16x128xbf16>
    %c6_130 = arith.constant 6 : index
    %c0_131 = arith.constant 0 : index
    %c0_132 = arith.constant 0 : index
    %150 = vector.load %arg8[%c6_130, %c0_131, %c0_132] : memref<9x128x128xbf16, #tpu.memory_space<vmem>>, vector<1x128x128xbf16>
    %151 = vector.shape_cast %150 : vector<1x128x128xbf16> to vector<128x128xbf16>
    %cst_133 = arith.constant dense<0.000000e+00> : vector<16x128xf32>
    %152 = tpu.matmul %149, %151, %cst_133 {dimension_numbers = #tpu.dot_dimension_numbers<[1], [0], [0], [1], [0, 0, 1, 1], [], []>} : vector<16x128xbf16>, vector<128x128xbf16>, vector<16x128xf32> -> vector<16x128xf32>
    %153 = arith.addf %145, %152 : vector<16x128xf32>
    %c7_134 = arith.constant 7 : index
    %c0_135 = arith.constant 0 : index
    %c0_136 = arith.constant 0 : index
    %154 = vector.load %arg7[%c7_134, %c0_135, %c0_136] : memref<9x16x64xbf16, #tpu.memory_space<vmem>>, vector<1x16x64xbf16>
    %155 = vector.shape_cast %154 : vector<1x16x64xbf16> to vector<16x64xbf16>
    %cst_137 = arith.constant dense<0.000000e+00> : vector<16x128xf32>
    %156 = tpu.matmul %155, %96, %cst_137 {dimension_numbers = #tpu.dot_dimension_numbers<[1], [0], [0], [1], [0, 0, 1, 1], [], []>} : vector<16x64xbf16>, vector<64x128xbf16>, vector<16x128xf32> -> vector<16x128xf32>
    %157 = arith.truncf %156 : vector<16x128xf32> to vector<16x128xbf16>
    %c7_138 = arith.constant 7 : index
    %c0_139 = arith.constant 0 : index
    %c0_140 = arith.constant 0 : index
    %158 = vector.load %arg8[%c7_138, %c0_139, %c0_140] : memref<9x128x128xbf16, #tpu.memory_space<vmem>>, vector<1x128x128xbf16>
    %159 = vector.shape_cast %158 : vector<1x128x128xbf16> to vector<128x128xbf16>
    %cst_141 = arith.constant dense<0.000000e+00> : vector<16x128xf32>
    %160 = tpu.matmul %157, %159, %cst_141 {dimension_numbers = #tpu.dot_dimension_numbers<[1], [0], [0], [1], [0, 0, 1, 1], [], []>} : vector<16x128xbf16>, vector<128x128xbf16>, vector<16x128xf32> -> vector<16x128xf32>
    %161 = arith.addf %153, %160 : vector<16x128xf32>
    %c8_142 = arith.constant 8 : index
    %c0_143 = arith.constant 0 : index
    %c0_144 = arith.constant 0 : index
    %162 = vector.load %arg7[%c8_142, %c0_143, %c0_144] : memref<9x16x64xbf16, #tpu.memory_space<vmem>>, vector<1x16x64xbf16>
    %163 = vector.shape_cast %162 : vector<1x16x64xbf16> to vector<16x64xbf16>
    %cst_145 = arith.constant dense<0.000000e+00> : vector<16x128xf32>
    %164 = tpu.matmul %163, %96, %cst_145 {dimension_numbers = #tpu.dot_dimension_numbers<[1], [0], [0], [1], [0, 0, 1, 1], [], []>} : vector<16x64xbf16>, vector<64x128xbf16>, vector<16x128xf32> -> vector<16x128xf32>
    %165 = arith.truncf %164 : vector<16x128xf32> to vector<16x128xbf16>
    %c8_146 = arith.constant 8 : index
    %c0_147 = arith.constant 0 : index
    %c0_148 = arith.constant 0 : index
    %166 = vector.load %arg8[%c8_146, %c0_147, %c0_148] : memref<9x128x128xbf16, #tpu.memory_space<vmem>>, vector<1x128x128xbf16>
    %167 = vector.shape_cast %166 : vector<1x128x128xbf16> to vector<128x128xbf16>
    %cst_149 = arith.constant dense<0.000000e+00> : vector<16x128xf32>
    %168 = tpu.matmul %165, %167, %cst_149 {dimension_numbers = #tpu.dot_dimension_numbers<[1], [0], [0], [1], [0, 0, 1, 1], [], []>} : vector<16x128xbf16>, vector<128x128xbf16>, vector<16x128xf32> -> vector<16x128xf32>
    %169 = arith.addf %161, %168 : vector<16x128xf32>
    %c0_150 = arith.constant 0 : index
    %c0_151 = arith.constant 0 : index
    %170 = vector.load %arg9[%c0_150, %c0_151] : memref<1x128xf32, #tpu.memory_space<vmem>>, vector<1x128xf32>
    %171 = vector.broadcast %170 : vector<1x128xf32> to vector<16x128xf32>
    %172 = arith.addf %169, %171 : vector<16x128xf32>
    %cst_152 = arith.constant 0.000000e+00 : f32
    %173 = vector.broadcast %cst_152 : f32 to vector<16x128xf32>
    %174 = arith.subf %173, %172 : vector<16x128xf32>
    %175 = math.exp %174 : vector<16x128xf32>
    %cst_153 = arith.constant 1.000000e+00 : f32
    %176 = vector.broadcast %cst_153 : f32 to vector<16x128xf32>
    %177 = arith.addf %176, %175 : vector<16x128xf32>
    %178 = arith.divf %172, %177 : vector<16x128xf32>
    %179 = arith.truncf %178 : vector<16x128xf32> to vector<16x128xbf16>
    %c0_154 = arith.constant 0 : index
    %c0_155 = arith.constant 0 : index
    %180 = vector.load %arg10[%c0_154, %c0_155] : memref<128x128xbf16, #tpu.memory_space<vmem>>, vector<128x128xbf16>
    %cst_156 = arith.constant dense<0.000000e+00> : vector<16x128xf32>
    %181 = tpu.matmul %179, %180, %cst_156 {dimension_numbers = #tpu.dot_dimension_numbers<[1], [0], [0], [1], [0, 0, 1, 1], [], []>} : vector<16x128xbf16>, vector<128x128xbf16>, vector<16x128xf32> -> vector<16x128xf32>
    %cst_157 = arith.constant dense<0.000000e+00> : vector<128xf32>
    %182 = vector.multi_reduction <add>, %181, %cst_157 [0] : vector<16x128xf32> to vector<128xf32>
    %183 = vector.shape_cast %182 : vector<128xf32> to vector<1x128xf32>
    %cst_158 = arith.constant 1.600000e+01 : f32
    %184 = vector.broadcast %cst_158 : f32 to vector<1x128xf32>
    %185 = arith.divf %183, %184 : vector<1x128xf32>
    %c0_159 = arith.constant 0 : index
    %c0_160 = arith.constant 0 : index
    %186 = vector.load %arg11[%c0_159, %c0_160] : memref<1x128xf32, #tpu.memory_space<vmem>>, vector<1x128xf32>
    %187 = arith.addf %185, %186 : vector<1x128xf32>
    %c0_161 = arith.constant 0 : index
    %c0_162 = arith.constant 0 : index
    %c0_163 = arith.constant 0 : index
    %188 = vector.load %arg12[%c0_161, %c0_162, %c0_163] : memref<1x1x128xf32, #tpu.memory_space<vmem>>, vector<1x1x128xf32>
    %189 = vector.shape_cast %188 : vector<1x1x128xf32> to vector<1x128xf32>
    %190 = vector.shape_cast %187 : vector<1x128xf32> to vector<1x1x128xf32>
    tpu.vector_store %arg12[%c0_161, %c0_162, %c0_163], %190 {strides = array<i32>} : memref<1x1x128xf32, #tpu.memory_space<vmem>>, vector<1x1x128xf32>,
    return
  }
  func.func @transform_0(%arg0: i32) -> (i32, i32, i32) {
    %c0_i32 = arith.constant 0 : i32
    %c0_i32_0 = arith.constant 0 : i32
    %c0_i32_1 = arith.constant 0 : i32
    return %arg0, %c0_i32, %c0_i32_0 : i32, i32, i32
  }
  func.func @transform_1(%arg0: i32) -> (i32, i32) {
    %c0_i32 = arith.constant 0 : i32
    %c0_i32_0 = arith.constant 0 : i32
    %c0_i32_1 = arith.constant 0 : i32
    return %c0_i32, %c0_i32_0 : i32, i32
  }
  func.func @transform_2(%arg0: i32) -> (i32, i32) {
    %c0_i32 = arith.constant 0 : i32
    %c0_i32_0 = arith.constant 0 : i32
    %c0_i32_1 = arith.constant 0 : i32
    return %c0_i32, %c0_i32_0 : i32, i32
  }
  func.func @transform_3(%arg0: i32) -> (i32, i32, i32) {
    %c0_i32 = arith.constant 0 : i32
    %c0_i32_0 = arith.constant 0 : i32
    %c0_i32_1 = arith.constant 0 : i32
    %c0_i32_2 = arith.constant 0 : i32
    return %c0_i32, %c0_i32_0, %c0_i32_1 : i32, i32, i32
  }
  func.func @transform_4(%arg0: i32) -> (i32, i32, i32) {
    %c0_i32 = arith.constant 0 : i32
    %c0_i32_0 = arith.constant 0 : i32
    %c0_i32_1 = arith.constant 0 : i32
    %c0_i32_2 = arith.constant 0 : i32
    return %c0_i32, %c0_i32_0, %c0_i32_1 : i32, i32, i32
  }
  func.func @transform_5(%arg0: i32) -> (i32, i32) {
    %c0_i32 = arith.constant 0 : i32
    %c0_i32_0 = arith.constant 0 : i32
    %c0_i32_1 = arith.constant 0 : i32
    return %c0_i32, %c0_i32_0 : i32, i32
  }
  func.func @transform_6(%arg0: i32) -> (i32, i32, i32) {
    %c0_i32 = arith.constant 0 : i32
    %c0_i32_0 = arith.constant 0 : i32
    %c0_i32_1 = arith.constant 0 : i32
    %c0_i32_2 = arith.constant 0 : i32
    return %c0_i32, %c0_i32_0, %c0_i32_1 : i32, i32, i32
  }
  func.func @transform_7(%arg0: i32) -> (i32, i32, i32) {
    %c0_i32 = arith.constant 0 : i32
    %c0_i32_0 = arith.constant 0 : i32
    %c0_i32_1 = arith.constant 0 : i32
    %c0_i32_2 = arith.constant 0 : i32
    return %c0_i32, %c0_i32_0, %c0_i32_1 : i32, i32, i32
  }
  func.func @transform_8(%arg0: i32) -> (i32, i32) {
    %c0_i32 = arith.constant 0 : i32
    %c0_i32_0 = arith.constant 0 : i32
    %c0_i32_1 = arith.constant 0 : i32
    return %c0_i32, %c0_i32_0 : i32, i32
  }
  func.func @transform_9(%arg0: i32) -> (i32, i32) {
    %c0_i32 = arith.constant 0 : i32
    %c0_i32_0 = arith.constant 0 : i32
    %c0_i32_1 = arith.constant 0 : i32
    return %c0_i32, %c0_i32_0 : i32, i32
  }
  func.func @transform_10(%arg0: i32) -> (i32, i32) {
    %c0_i32 = arith.constant 0 : i32
    %c0_i32_0 = arith.constant 0 : i32
    %c0_i32_1 = arith.constant 0 : i32
    return %c0_i32, %c0_i32_0 : i32, i32
  }
  func.func @transform_11(%arg0: i32) -> (i32, i32, i32) {
    %c0_i32 = arith.constant 0 : i32
    %c0_i32_0 = arith.constant 0 : i32
    %c0_i32_1 = arith.constant 0 : i32
    return %arg0, %c0_i32, %c0_i32_0 : i32, i32, i32
  }
}

</mosaic_0001>

<llo_original>
// kernel: covidnext50_forward.1
$region0: #{covidnext50_forward.1}
  #allocation0 [shape = 'u32[]', space=smem, size = 0x4, offset = 0x4, fixed_abs, tag = 'smem constant byte address 0x4 - core index']
  #allocation1 [shape = 'u32[144,128]{1,0:T(1,128)}', space=vmem, size = 0x12000, scoped, tag = 'internal scratch']
  %s0 = inlined_call_operand.vmem [shape: bf16[2,256,32], index: 0, kind: input, shape index: {}]
  %s1 = inlined_call_operand.vmem [shape: bf16[32,128], index: 1, kind: input, shape index: {}]
  %s2 = inlined_call_operand.vmem [shape: f32[1,128], index: 2, kind: input, shape index: {}]
  %s3 = inlined_call_operand.vmem [shape: bf16[9,64,256], index: 3, kind: input, shape index: {}]
  %s4 = inlined_call_operand.vmem [shape: bf16[9,128,128], index: 4, kind: input, shape index: {}]
  %s5 = inlined_call_operand.vmem [shape: f32[1,128], index: 5, kind: input, shape index: {}]
  %s6 = inlined_call_operand.vmem [shape: bf16[9,16,64], index: 6, kind: input, shape index: {}]
  %s7 = inlined_call_operand.vmem [shape: bf16[9,128,128], index: 7, kind: input, shape index: {}]
  %s8 = inlined_call_operand.vmem [shape: f32[1,128], index: 8, kind: input, shape index: {}]
  %s9 = inlined_call_operand.vmem [shape: bf16[128,128], index: 9, kind: input, shape index: {}]
  %s10 = inlined_call_operand.vmem [shape: f32[1,128], index: 10, kind: input, shape index: {}]
  %s11 = inlined_call_operand.hbm [shape: f32[2,1,128], index: 11, kind: output, shape index: {}]
  %s12 = sld [smem:[#allocation0]]
  $region77: #{covidnext50_forward.1} parent=0
    _
  %s14 = ssub.s32 1, %s12
  %s15 = scalar_select 0, %s14, %s12
  $region1: #{covidnext50_forward.1} parent=0
    #allocation2 [shape = 'u8[1024]{0}', space=vmem, size = 0x400, scoped, tag = 'output window, operand 0']
    #allocation3 [shape = 's32[2]{0}', space=sflag, size = 0x8, scoped, tag = 'scoped memory for covidnext50_forward.1']
    %16 = vsyncpa [#allocation3], 0
    %s17 = scalar_lea.sflag [#allocation3], 1
    %18 = vsyncpa %s17, 0
    loop: start=0, step=1, limit=4
    $region2: #{covidnext50_forward.1} parent=1 // loop_pre_header
      _
    $region3: #{covidnext50_forward.1} parent=1 // loop_header
      %s20 = sphi 0, %s24
      %p21 = scmp.ge.s32.totalorder %s20, 4
      %s30 = sphi 0, %s32
      %s33 = sphi 0, %s30
      %s34 = sphi 0, %s33
      %s50 = sphi 0, %s34
      %s54 = sphi 0, %s54
      %s56 = sphi 0, %s54
      %s57 = sphi 0, %s56
      %s71 = sphi 0, %s57
      %s75 = sphi 0, %s75
      %s77 = sphi 0, %s75
      %s78 = sphi 0, %s77
      %s92 = sphi 0, %s78
      %s96 = sphi 0, %s96
      %s98 = sphi 0, %s96
      %s99 = sphi 0, %s98
      %s113 = sphi 0, %s99
      %s117 = sphi 0, %s117
      %s119 = sphi 0, %s117
      %s120 = sphi 0, %s119
      %s134 = sphi 0, %s120
      %s138 = sphi 0, %s138
      %s140 = sphi 0, %s138
      %s141 = sphi 0, %s140
      %s155 = sphi 0, %s141
      %s159 = sphi 0, %s159
      %s161 = sphi 0, %s159
      %s162 = sphi 0, %s161
      %s176 = sphi 0, %s162
      %s180 = sphi 0, %s180
      %s182 = sphi 0, %s180
      %s183 = sphi 0, %s182
      %s197 = sphi 0, %s183
      %s201 = sphi 0, %s201
      %s203 = sphi 0, %s201
      %s204 = sphi 0, %s203
      %s218 = sphi 0, %s204
      %s222 = sphi 0, %s222
      %s224 = sphi 0, %s222
      %s225 = sphi 0, %s224
      %s239 = sphi 0, %s225
      %s243 = sphi 0, %s243
      %s245 = sphi 0, %s243
      %s246 = sphi 0, %s245
      %s260 = sphi 0, %s246
      %s266 = sphi 0, %s268
      %s269 = sphi 0, %s266
      %s270 = sphi 0, %s269
      %s286 = sphi 0, %s270
    $region4: #{covidnext50_forward.1} parent=1 // loop_header_branch
      %23 = sbr.rel (%p21) target = $region8
    $region5: #{covidnext50_forward.1} parent=1 // loop_body
      %s25 = ssub.s32 %s20, 1
      %s26 = ssub.s32 %s20, 2
      %s27 = sadd.s32 %s20, 1
      %s28 = ssub.s32 %s20, %s27
      %p29 = scmp.eq.s32.totalorder %s28, 0
      %s31 = sadd.s32 %s30, 1
      %s32 = scalar_select %p29, %s30, %s31
      %p35 = pneg %p29
      %p36 = scmp.eq.s32.totalorder %s20, 1
      %p37 = por %p35, %p36
      %p38 = scmp.ne.s32.totalorder %s30, %s33
      %p39 = scmp.eq.s32.totalorder %s20, 0
      %p40 = por %p38, %p39
      %p41 = scmp.ne.s32.totalorder %s30, %s33
      %p42 = scmp.eq.s32.totalorder %s25, 1
      %p43 = por %p41, %p42
      %p44 = scmp.ne.s32.totalorder %s33, %s34
      %p45 = scmp.eq.s32.totalorder %s25, 0
      %p46 = por %p44, %p45
      %p47 = scmp.ne.s32.totalorder %s33, %s34
      %p48 = scmp.eq.s32.totalorder %s26, 1
      %p49 = por %p47, %p48
      %p51 = scmp.ne.s32.totalorder %s34, %s50
      %p52 = scmp.eq.s32.totalorder %s26, 0
      %p53 = por %p51, %p52
      %s55 = sadd.s32 %s54, 1
      %p58 = scmp.eq.s32.totalorder %s20, 1
      %p59 = scmp.ne.s32.totalorder %s54, %s56
      %p60 = scmp.eq.s32.totalorder %s20, 0
      %p61 = por %p59, %p60
      %p62 = scmp.ne.s32.totalorder %s54, %s56
      %p63 = scmp.eq.s32.totalorder %s25, 1
      %p64 = por %p62, %p63
      %p65 = scmp.ne.s32.totalorder %s56, %s57
      %p66 = scmp.eq.s32.totalorder %s25, 0
      %p67 = por %p65, %p66
      %p68 = scmp.ne.s32.totalorder %s56, %s57
      %p69 = scmp.eq.s32.totalorder %s26, 1
      %p70 = por %p68, %p69
      %p72 = scmp.ne.s32.totalorder %s57, %s71
      %p73 = scmp.eq.s32.totalorder %s26, 0
      %p74 = por %p72, %p73
      %s76 = sadd.s32 %s75, 1
      %p79 = scmp.eq.s32.totalorder %s20, 1
      %p80 = scmp.ne.s32.totalorder %s75, %s77
      %p81 = scmp.eq.s32.totalorder %s20, 0
      %p82 = por %p80, %p81
      %p83 = scmp.ne.s32.totalorder %s75, %s77
      %p84 = scmp.eq.s32.totalorder %s25, 1
      %p85 = por %p83, %p84
      %p86 = scmp.ne.s32.totalorder %s77, %s78
      %p87 = scmp.eq.s32.totalorder %s25, 0
      %p88 = por %p86, %p87
      %p89 = scmp.ne.s32.totalorder %s77, %s78
      %p90 = scmp.eq.s32.totalorder %s26, 1
      %p91 = por %p89, %p90
      %p93 = scmp.ne.s32.totalorder %s78, %s92
      %p94 = scmp.eq.s32.totalorder %s26, 0
      %p95 = por %p93, %p94
      %s97 = sadd.s32 %s96, 1
      %p100 = scmp.eq.s32.totalorder %s20, 1
      %p101 = scmp.ne.s32.totalorder %s96, %s98
      %p102 = scmp.eq.s32.totalorder %s20, 0
      %p103 = por %p101, %p102
      %p104 = scmp.ne.s32.totalorder %s96, %s98
      %p105 = scmp.eq.s32.totalorder %s25, 1
      %p106 = por %p104, %p105
      %p107 = scmp.ne.s32.totalorder %s98, %s99
      %p108 = scmp.eq.s32.totalorder %s25, 0
      %p109 = por %p107, %p108
      %p110 = scmp.ne.s32.totalorder %s98, %s99
      %p111 = scmp.eq.s32.totalorder %s26, 1
      %p112 = por %p110, %p111
      %p114 = scmp.ne.s32.totalorder %s99, %s113
      %p115 = scmp.eq.s32.totalorder %s26, 0
      %p116 = por %p114, %p115
      %s118 = sadd.s32 %s117, 1
      %p121 = scmp.eq.s32.totalorder %s20, 1
      %p122 = scmp.ne.s32.totalorder %s117, %s119
      %p123 = scmp.eq.s32.totalorder %s20, 0
      %p124 = por %p122, %p123
      %p125 = scmp.ne.s32.totalorder %s117, %s119
      %p126 = scmp.eq.s32.totalorder %s25, 1
      %p127 = por %p125, %p126
      %p128 = scmp.ne.s32.totalorder %s119, %s120
      %p129 = scmp.eq.s32.totalorder %s25, 0
      %p130 = por %p128, %p129
      %p131 = scmp.ne.s32.totalorder %s119, %s120
      %p132 = scmp.eq.s32.totalorder %s26, 1
      %p133 = por %p131, %p132
      %p135 = scmp.ne.s32.totalorder %s120, %s134
      %p136 = scmp.eq.s32.totalorder %s26, 0
      %p137 = por %p135, %p136
      %s139 = sadd.s32 %s138, 1
      %p142 = scmp.eq.s32.totalorder %s20, 1
      %p143 = scmp.ne.s32.totalorder %s138, %s140
      %p144 = scmp.eq.s32.totalorder %s20, 0
      %p145 = por %p143, %p144
      %p146 = scmp.ne.s32.totalorder %s138, %s140
      %p147 = scmp.eq.s32.totalorder %s25, 1
      %p148 = por %p146, %p147
      %p149 = scmp.ne.s32.totalorder %s140, %s141
      %p150 = scmp.eq.s32.totalorder %s25, 0
      %p151 = por %p149, %p150
      %p152 = scmp.ne.s32.totalorder %s140, %s141
      %p153 = scmp.eq.s32.totalorder %s26, 1
      %p154 = por %p152, %p153
      %p156 = scmp.ne.s32.totalorder %s141, %s155
      %p157 = scmp.eq.s32.totalorder %s26, 0
      %p158 = por %p156, %p157
      %s160 = sadd.s32 %s159, 1
      %p163 = scmp.eq.s32.totalorder %s20, 1
      %p164 = scmp.ne.s32.totalorder %s159, %s161
      %p165 = scmp.eq.s32.totalorder %s20, 0
      %p166 = por %p164, %p165
      %p167 = scmp.ne.s32.totalorder %s159, %s161
      %p168 = scmp.eq.s32.totalorder %s25, 1
      %p169 = por %p167, %p168
      %p170 = scmp.ne.s32.totalorder %s161, %s162
      %p171 = scmp.eq.s32.totalorder %s25, 0
      %p172 = por %p170, %p171
      %p173 = scmp.ne.s32.totalorder %s161, %s162
      %p174 = scmp.eq.s32.totalorder %s26, 1
      %p175 = por %p173, %p174
      %p177 = scmp.ne.s32.totalorder %s162, %s176
      %p178 = scmp.eq.s32.totalorder %s26, 0
      %p179 = por %p177, %p178
      %s181 = sadd.s32 %s180, 1
      %p184 = scmp.eq.s32.totalorder %s20, 1
      %p185 = scmp.ne.s32.totalorder %s180, %s182
      %p186 = scmp.eq.s32.totalorder %s20, 0
      %p187 = por %p185, %p186
      %p188 = scmp.ne.s32.totalorder %s180, %s182
      %p189 = scmp.eq.s32.totalorder %s25, 1
      %p190 = por %p188, %p189
      %p191 = scmp.ne.s32.totalorder %s182, %s183
      %p192 = scmp.eq.s32.totalorder %s25, 0
      %p193 = por %p191, %p192
      %p194 = scmp.ne.s32.totalorder %s182, %s183
      %p195 = scmp.eq.s32.totalorder %s26, 1
      %p196 = por %p194, %p195
      %p198 = scmp.ne.s32.totalorder %s183, %s197
      %p199 = scmp.eq.s32.totalorder %s26, 0
      %p200 = por %p198, %p199
      %s202 = sadd.s32 %s201, 1
      %p205 = scmp.eq.s32.totalorder %s20, 1
      %p206 = scmp.ne.s32.totalorder %s201, %s203
      %p207 = scmp.eq.s32.totalorder %s20, 0
      %p208 = por %p206, %p207
      %p209 = scmp.ne.s32.totalorder %s201, %s203
      %p210 = scmp.eq.s32.totalorder %s25, 1
      %p211 = por %p209, %p210
      %p212 = scmp.ne.s32.totalorder %s203, %s204
      %p213 = scmp.eq.s32.totalorder %s25, 0
      %p214 = por %p212, %p213
      %p215 = scmp.ne.s32.totalorder %s203, %s204
      %p216 = scmp.eq.s32.totalorder %s26, 1
      %p217 = por %p215, %p216
      %p219 = scmp.ne.s32.totalorder %s204, %s218
      %p220 = scmp.eq.s32.totalorder %s26, 0
      %p221 = por %p219, %p220
      %s223 = sadd.s32 %s222, 1
      %p226 = scmp.eq.s32.totalorder %s20, 1
      %p227 = scmp.ne.s32.totalorder %s222, %s224
      %p228 = scmp.eq.s32.totalorder %s20, 0
      %p229 = por %p227, %p228
      %p230 = scmp.ne.s32.totalorder %s222, %s224
      %p231 = scmp.eq.s32.totalorder %s25, 1
      %p232 = por %p230, %p231
      %p233 = scmp.ne.s32.totalorder %s224, %s225
      %p234 = scmp.eq.s32.totalorder %s25, 0
      %p235 = por %p233, %p234
      %p236 = scmp.ne.s32.totalorder %s224, %s225
      %p237 = scmp.eq.s32.totalorder %s26, 1
      %p238 = por %p236, %p237
      %p240 = scmp.ne.s32.totalorder %s225, %s239
      %p241 = scmp.eq.s32.totalorder %s26, 0
      %p242 = por %p240, %p241
      %s244 = sadd.s32 %s243, 1
      %p247 = scmp.eq.s32.totalorder %s20, 1
      %p248 = scmp.ne.s32.totalorder %s243, %s245
      %p249 = scmp.eq.s32.totalorder %s20, 0
      %p250 = por %p248, %p249
      %p251 = scmp.ne.s32.totalorder %s243, %s245
      %p252 = scmp.eq.s32.totalorder %s25, 1
      %p253 = por %p251, %p252
      %p254 = scmp.ne.s32.totalorder %s245, %s246
      %p255 = scmp.eq.s32.totalorder %s25, 0
      %p256 = por %p254, %p255
      %p257 = scmp.ne.s32.totalorder %s245, %s246
      %p258 = scmp.eq.s32.totalorder %s26, 1
      %p259 = por %p257, %p258
      %p261 = scmp.ne.s32.totalorder %s246, %s260
      %p262 = scmp.eq.s32.totalorder %s26, 0
      %p263 = por %p261, %p262
      %s264 = ssub.s32 %s20, %s27
      %p265 = scmp.eq.s32.totalorder %s264, 0
      %s267 = sadd.s32 %s266, 1
      %s268 = scalar_select %p265, %s266, %s267
      %p271 = pneg %p265
      %p272 = scmp.eq.s32.totalorder %s20, 1
      %p273 = por %p271, %p272
      %p274 = scmp.ne.s32.totalorder %s266, %s269
      %p275 = scmp.eq.s32.totalorder %s20, 0
      %p276 = por %p274, %p275
      %p277 = scmp.ne.s32.totalorder %s266, %s269
      %p278 = scmp.eq.s32.totalorder %s25, 1
      %p279 = por %p277, %p278
      %p280 = scmp.ne.s32.totalorder %s269, %s270
      %p281 = scmp.eq.s32.totalorder %s25, 0
      %p282 = por %p280, %p281
      %p283 = scmp.ne.s32.totalorder %s269, %s270
      %p284 = scmp.eq.s32.totalorder %s26, 1
      %p285 = por %p283, %p284
      %p287 = scmp.ne.s32.totalorder %s270, %s286
      %p288 = scmp.eq.s32.totalorder %s26, 0
      %p289 = por %p287, %p288
      %p290 = scmp.le.s32.totalorder 1, %s20
      %p291 = scmp.lt.s32.totalorder %s20, 3
      %p292 = pnand %p290, %p291
      %p293 = pneg %p292
      // Predicated region
      $region9: #{covidnext50_forward.1} parent=5 // pred_check
        _
      $region10: #{covidnext50_forward.1} parent=5 // pred_check_branch
        %295 = sbr.rel (%p292) target = $region12
      $region11: #{covidnext50_forward.1} parent=5 // pred_region
        %s296 = ssub.s32 %s20, 1
        // Predicated region
        $region13: #{covidnext50_forward.1} parent=11 // pred_check
          %p297 = pneg %p67
        $region14: #{covidnext50_forward.1} parent=11 // pred_check_branch
          %299 = sbr.rel (%p297) target = $region16
        $region15: #{covidnext50_forward.1} parent=11 // pred_region
          _
        $region16: #{covidnext50_forward.1} parent=11 // pred_fallthru
          _
        // Predicated region
        $region17: #{covidnext50_forward.1} parent=11 // pred_check
          %p300 = pneg %p88
        $region18: #{covidnext50_forward.1} parent=11 // pred_check_branch
          %302 = sbr.rel (%p300) target = $region20
        $region19: #{covidnext50_forward.1} parent=11 // pred_region
          _
        $region20: #{covidnext50_forward.1} parent=11 // pred_fallthru
          _
        // Predicated region
        $region21: #{covidnext50_forward.1} parent=11 // pred_check
          %p303 = pneg %p109
        $region22: #{covidnext50_forward.1} parent=11 // pred_check_branch
          %305 = sbr.rel (%p303) target = $region24
        $region23: #{covidnext50_forward.1} parent=11 // pred_region
          _
        $region24: #{covidnext50_forward.1} parent=11 // pred_fallthru
          _
        // Predicated region
        $region25: #{covidnext50_forward.1} parent=11 // pred_check
          %p306 = pneg %p130
        $region26: #{covidnext50_forward.1} parent=11 // pred_check_branch
          %308 = sbr.rel (%p306) target = $region28
        $region27: #{covidnext50_forward.1} parent=11 // pred_region
          _
        $region28: #{covidnext50_forward.1} parent=11 // pred_fallthru
          _
        // Predicated region
        $region29: #{covidnext50_forward.1} parent=11 // pred_check
          %p309 = pneg %p151
        $region30: #{covidnext50_forward.1} parent=11 // pred_check_branch
          %311 = sbr.rel (%p309) target = $region32
        $region31: #{covidnext50_forward.1} parent=11 // pred_region
          _
        $region32: #{covidnext50_forward.1} parent=11 // pred_fallthru
          _
        // Predicated region
        $region33: #{covidnext50_forward.1} parent=11 // pred_check
          %p312 = pneg %p172
        $region34: #{covidnext50_forward.1} parent=11 // pred_check_branch
          %314 = sbr.rel (%p312) target = $region36
        $region35: #{covidnext50_forward.1} parent=11 // pred_region
          _
        $region36: #{covidnext50_forward.1} parent=11 // pred_fallthru
          _
        // Predicated region
        $region37: #{covidnext50_forward.1} parent=11 // pred_check
          %p315 = pneg %p193
        $region38: #{covidnext50_forward.1} parent=11 // pred_check_branch
          %317 = sbr.rel (%p315) target = $region40
        $region39: #{covidnext50_forward.1} parent=11 // pred_region
          _
        $region40: #{covidnext50_forward.1} parent=11 // pred_fallthru
          _
        // Predicated region
        $region41: #{covidnext50_forward.1} parent=11 // pred_check
          %p318 = pneg %p214
        $region42: #{covidnext50_forward.1} parent=11 // pred_check_branch
          %320 = sbr.rel (%p318) target = $region44
        $region43: #{covidnext50_forward.1} parent=11 // pred_region
          _
        $region44: #{covidnext50_forward.1} parent=11 // pred_fallthru
          _
        // Predicated region
        $region45: #{covidnext50_forward.1} parent=11 // pred_check
          %p321 = pneg %p235
        $region46: #{covidnext50_forward.1} parent=11 // pred_check_branch
          %323 = sbr.rel (%p321) target = $region48
        $region47: #{covidnext50_forward.1} parent=11 // pred_region
          _
        $region48: #{covidnext50_forward.1} parent=11 // pred_fallthru
          _
        // Predicated region
        $region49: #{covidnext50_forward.1} parent=11 // pred_check
          %p324 = pneg %p256
        $region50: #{covidnext50_forward.1} parent=11 // pred_check_branch
          %326 = sbr.rel (%p324) target = $region52
        $region51: #{covidnext50_forward.1} parent=11 // pred_region
          _
        $region52: #{covidnext50_forward.1} parent=11 // pred_fallthru
          _
      $region12: #{covidnext50_forward.1} parent=5 // pred_fallthru
        _
      %p327 = scmp.lt.s32.totalorder %s20, 2
      // Predicated region
      $region53: #{covidnext50_forward.1} parent=5 // pred_check
        %p328 = pneg %p327
      $region54: #{covidnext50_forward.1} parent=5 // pred_check_branch
        %330 = sbr.rel (%p328) target = $region56
      $region55: #{covidnext50_forward.1} parent=5 // pred_region
        // Predicated region
        $region57: #{covidnext50_forward.1} parent=55 // pred_check
          %p331 = pneg %p40
        $region58: #{covidnext50_forward.1} parent=55 // pred_check_branch
          %333 = sbr.rel (%p331) target = $region60
        $region59: #{covidnext50_forward.1} parent=55 // pred_region
          %p334 = scmp.lt.s32.totalorder %s20, 1
          %s335 = scalar_select %p334, %s20, 1
          %s336 = smul.addr %s335, 32
          %s337 = smul.addr %s336, 4
          %s338 = scalar_lea.vmem %s0, %s337
        $region60: #{covidnext50_forward.1} parent=55 // pred_fallthru
          _
      $region56: #{covidnext50_forward.1} parent=5 // pred_fallthru
        _
      %p339 = scmp.le.s32.totalorder 1, %s20
      %p340 = scmp.lt.s32.totalorder %s20, 3
      %p341 = pnand %p339, %p340
      %p342 = pneg %p341
      // Predicated region
      $region61: #{covidnext50_forward.1} parent=5 // pred_check
        _
      $region62: #{covidnext50_forward.1} parent=5 // pred_check_branch
        %344 = sbr.rel (%p341) target = $region64
      $region63: #{covidnext50_forward.1} parent=5 // pred_region
        %s345 = ssub.s32 %s20, 1
        %p346 = scmp.lt.s32.totalorder %s25, 1
        %s347 = scalar_select %p346, %s25, 1
        %s348 = smul.addr %s347, 32
        %s349 = smul.addr %s348, 4
        %s350 = scalar_lea.vmem %s0, %s349
        %p351 = pneg %p46
        %p352 = pneg %p43
        %p353 = pneg %p67
        %p354 = pneg %p64
        %p355 = pneg %p88
        %p356 = pneg %p85
        %p357 = pneg %p109
        %p358 = pneg %p106
        %p359 = pneg %p130
        %p360 = pneg %p127
        %p361 = pneg %p151
        %p362 = pneg %p148
        %p363 = pneg %p172
        %p364 = pneg %p169
        %p365 = pneg %p193
        %p366 = pneg %p190
        %p367 = pneg %p214
        %p368 = pneg %p211
        %p369 = pneg %p235
        %p370 = pneg %p232
        %p371 = pneg %p256
        %p372 = pneg %p253
        %p373 = pneg %p282
        %p374 = pneg %p279
        %s375 = sand.u32 %s269, 1
        %s376 = scalar_lea.sflag [#allocation3], %s375
        %s377 = sand.u32 %s269, 1
        %s378 = scalar_lea.vmem [#allocation2], %s377
        %p379 = scmp.lt.s32.totalorder %s25, 1
        %s380 = scalar_select %p379, %s25, 1
        %s381 = smul.addr %s380, 32
        %s382 = smul.addr %s381, 4
        %s383 = scalar_lea.vmem %s0, %s382
        %v385 = vld [vmem:[%s383] sm:$0xf]
        %v386 = vld [vmem:[%s383 + $0x4] sm:$0xf]
        %v387 = vld [vmem:[%s383 + $0x8] sm:$0xf]
        %v388 = vld [vmem:[%s383 + $0xc] sm:$0xf]
        %v389 = vld [vmem:[%s383 + $0x10] sm:$0xf]
        %v390 = vld [vmem:[%s383 + $0x14] sm:$0xf]
        %v391 = vld [vmem:[%s383 + $0x18] sm:$0xf]
        %v392 = vld [vmem:[%s383 + $0x1c] sm:$0xf]
        %v393 = vld [vmem:[%s383 + $0x20] sm:$0xf]
        %v394 = vld [vmem:[%s383 + $0x24] sm:$0xf]
        %v395 = vld [vmem:[%s383 + $0x28] sm:$0xf]
        %v396 = vld [vmem:[%s383 + $0x2c] sm:$0xf]
        %v397 = vld [vmem:[%s383 + $0x30] sm:$0xf]
        %v398 = vld [vmem:[%s383 + $0x34] sm:$0xf]
        %v399 = vld [vmem:[%s383 + $0x38] sm:$0xf]
        %v400 = vld [vmem:[%s383 + $0x3c] sm:$0xf]
        %v401 = vld [vmem:[%s383 + $0x40] sm:$0xf]
        %v402 = vld [vmem:[%s383 + $0x44] sm:$0xf]
        %v403 = vld [vmem:[%s383 + $0x48] sm:$0xf]
        %v404 = vld [vmem:[%s383 + $0x4c] sm:$0xf]
        %v405 = vld [vmem:[%s383 + $0x50] sm:$0xf]
        %v406 = vld [vmem:[%s383 + $0x54] sm:$0xf]
        %v407 = vld [vmem:[%s383 + $0x58] sm:$0xf]
        %v408 = vld [vmem:[%s383 + $0x5c] sm:$0xf]
        %v409 = vld [vmem:[%s383 + $0x60] sm:$0xf]
        %v410 = vld [vmem:[%s383 + $0x64] sm:$0xf]
        %v411 = vld [vmem:[%s383 + $0x68] sm:$0xf]
        %v412 = vld [vmem:[%s383 + $0x6c] sm:$0xf]
        %v413 = vld [vmem:[%s383 + $0x70] sm:$0xf]
        %v414 = vld [vmem:[%s383 + $0x74] sm:$0xf]
        %v415 = vld [vmem:[%s383 + $0x78] sm:$0xf]
        %v416 = vld [vmem:[%s383 + $0x7c] sm:$0xf]
        %v417 = vld [vmem:[%s1] sm:$0xf]
        %v418 = vld [vmem:[%s1 + $0x4] sm:$0xf]
        %v419 = vld [vmem:[%s1 + $0x8] sm:$0xf]
        %v420 = vld [vmem:[%s1 + $0xc] sm:$0xf]
        %v421 = vld [vmem:[%s2] sm:$0x1]
        %v423 = vlaneseq
        %v424 = vshrl.u32 %v423, 7
        %v425 = vsub.s32 0, %v424
        %v426 = vrot.slane %v421, %v425
        %v460 = vunpack.c.l.b16 %v385
        %v461 = vunpack.c.l.b16 %v386
        %v462 = vunpack.c.l.b16 %v387
        %v463 = vunpack.c.l.b16 %v388
        %v464 = vunpack.c.l.b16 %v389
        %v465 = vunpack.c.l.b16 %v390
        %v466 = vunpack.c.l.b16 %v391
        %v467 = vunpack.c.l.b16 %v392
        %v468 = vunpack.c.l.b16 %v393
        %v469 = vunpack.c.l.b16 %v394
        %v470 = vunpack.c.l.b16 %v395
        %v471 = vunpack.c.l.b16 %v396
        %v472 = vunpack.c.l.b16 %v397
        %v473 = vunpack.c.l.b16 %v398
        %v474 = vunpack.c.l.b16 %v399
        %v475 = vunpack.c.l.b16 %v400
        %v476 = vunpack.c.l.b16 %v401
        %v477 = vunpack.c.l.b16 %v402
        %v478 = vunpack.c.l.b16 %v403
        %v479 = vunpack.c.l.b16 %v404
        %v480 = vunpack.c.l.b16 %v405
        %v481 = vunpack.c.l.b16 %v406
        %v482 = vunpack.c.l.b16 %v407
        %v483 = vunpack.c.l.b16 %v408
        %v484 = vunpack.c.l.b16 %v409
        %v485 = vunpack.c.l.b16 %v410
        %v486 = vunpack.c.l.b16 %v411
        %v487 = vunpack.c.l.b16 %v412
        %v488 = vunpack.c.l.b16 %v413
        %v489 = vunpack.c.l.b16 %v414
        %v490 = vunpack.c.l.b16 %v415
        %v491 = vunpack.c.l.b16 %v416
        %v492 = vpack.c.b16 %v461, %v460
        %v493 = vpack.c.b16 %v463, %v462
        %v494 = vpack.c.b16 %v465, %v464
        %v495 = vpack.c.b16 %v467, %v466
        %v496 = vpack.c.b16 %v469, %v468
        %v497 = vpack.c.b16 %v471, %v470
        %v498 = vpack.c.b16 %v473, %v472
        %v499 = vpack.c.b16 %v475, %v474
        %v500 = vpack.c.b16 %v477, %v476
        %v501 = vpack.c.b16 %v479, %v478
        %v502 = vpack.c.b16 %v481, %v480
        %v503 = vpack.c.b16 %v483, %v482
        %v504 = vpack.c.b16 %v485, %v484
        %v505 = vpack.c.b16 %v487, %v486
        %v506 = vpack.c.b16 %v489, %v488
        %v507 = vpack.c.b16 %v491, %v490
        %v512 = vunpack.c.l.b16 %v417
        %v513 = vunpack.c.l.b16 %v418
        %v514 = vunpack.c.l.b16 %v419
        %v515 = vunpack.c.l.b16 %v420
        %v516 = vpack.c.b16 %v513, %v512
        %v517 = vpack.c.b16 %v515, %v514
        %vm520 = vcmask 261120
        %v522 = vsel %vm520, %v492, 0
        %v525 = vsel %vm520, %v493, 0
        %v528 = vsel %vm520, %v494, 0
        %v531 = vsel %vm520, %v495, 0
        %v534 = vsel %vm520, %v496, 0
        %v537 = vsel %vm520, %v497, 0
        %v540 = vsel %vm520, %v498, 0
        %v543 = vsel %vm520, %v499, 0
        %v546 = vsel %vm520, %v500, 0
        %v549 = vsel %vm520, %v501, 0
        %v552 = vsel %vm520, %v502, 0
        %v555 = vsel %vm520, %v503, 0
        %v558 = vsel %vm520, %v504, 0
        %v561 = vsel %vm520, %v505, 0
        %v564 = vsel %vm520, %v506, 0
        %v567 = vsel %vm520, %v507, 0
        %569 = vmatprep.subr.bf16.mxu0 0
        %570 = vmatpush1.bf16.msra.mxu0 0
        %571 = vmatprep.subr.bf16.mxu0 0
        %572 = vmatpush1.bf16.msra.mxu0 0
        %573 = vmatprep.subr.bf16.mxu0 0
        %574 = vmatpush1.bf16.msra.mxu0 0
        %575 = vmatprep.subr.bf16.mxu0 0
        %576 = vmatpush1.bf16.msra.mxu0 0
        %577 = vmatprep.subr.bf16.mxu0 0
        %578 = vmatpush1.bf16.msra.mxu0 0
        %579 = vmatprep.subr.bf16.mxu0 0
        %580 = vmatpush1.bf16.msra.mxu0 0
        %581 = vmatprep.subr.bf16.mxu0 0
        %582 = vmatpush1.bf16.msra.mxu0 %v517
        %583 = vmatprep.subr.bf16.mxu0 0
        %584 = vmatpush1.bf16.msra.mxu0 %v516
        %585 = vmatprep.subr.bf16.mxu0 0
        %586 = vmatpush2.bf16.msra.mxu0 0
        %587 = vmatprep.subr.bf16.mxu0 0
        %588 = vmatpush2.bf16.msra.mxu0 0
        %589 = vmatprep.subr.bf16.mxu0 0
        %590 = vmatpush2.bf16.msra.mxu0 0
        %591 = vmatprep.subr.bf16.mxu0 0
        %592 = vmatpush2.bf16.msra.mxu0 0
        %593 = vmatprep.subr.bf16.mxu0 0
        %594 = vmatpush2.bf16.msra.mxu0 0
        %595 = vmatprep.subr.bf16.mxu0 0
        %596 = vmatpush2.bf16.msra.mxu0 0
        %597 = vmatprep.subr.bf16.mxu0 0
        %598 = vmatpush2.bf16.msra.mxu0 0
        %599 = vmatprep.subr.bf16.mxu0 0
        %600 = vmatpush2.bf16.msra.mxu0 0
        %601 = vmatprep.mubr.bf16.mxu0 0
        %602 = vmatmul.mubr.bf16.gmra.mxu0 %v522
        %v603 = vpop.f32.mrf.mxu0
        %v604 = vadd.f32 %v426, %v603
        %v605 = vpop.f32.mrf.mxu0
        %v606 = vpop.f32.mrf.mxu0
        %v607 = vadd.f32 %v426, %v606
        %v608 = vpop.f32.mrf.mxu0
        %609 = vmatprep.mubr.bf16.mxu0 0
        %610 = vmatmul.mubr.bf16.gmra.mxu0 %v525
        %v611 = vpop.f32.mrf.mxu0
        %v612 = vadd.f32 %v426, %v611
        %v613 = vpop.f32.mrf.mxu0
        %v614 = vpop.f32.mrf.mxu0
        %v615 = vadd.f32 %v426, %v614
        %v616 = vpop.f32.mrf.mxu0
        %617 = vmatprep.mubr.bf16.mxu0 0
        %618 = vmatmul.mubr.bf16.gmra.mxu0 %v528
        %v619 = vpop.f32.mrf.mxu0
        %v620 = vadd.f32 %v426, %v619
        %v621 = vpop.f32.mrf.mxu0
        %v622 = vpop.f32.mrf.mxu0
        %v623 = vadd.f32 %v426, %v622
        %v624 = vpop.f32.mrf.mxu0
        %625 = vmatprep.mubr.bf16.mxu0 0
        %626 = vmatmul.mubr.bf16.gmra.mxu0 %v531
        %v627 = vpop.f32.mrf.mxu0
        %v628 = vadd.f32 %v426, %v627
        %v629 = vpop.f32.mrf.mxu0
        %v630 = vpop.f32.mrf.mxu0
        %v631 = vadd.f32 %v426, %v630
        %v632 = vpop.f32.mrf.mxu0
        %633 = vmatprep.mubr.bf16.mxu0 0
        %634 = vmatmul.mubr.bf16.gmra.mxu0 %v534
        %v635 = vpop.f32.mrf.mxu0
        %v636 = vadd.f32 %v426, %v635
        %v637 = vpop.f32.mrf.mxu0
        %v638 = vpop.f32.mrf.mxu0
        %v639 = vadd.f32 %v426, %v638
        %v640 = vpop.f32.mrf.mxu0
        %641 = vmatprep.mubr.bf16.mxu0 0
        %642 = vmatmul.mubr.bf16.gmra.mxu0 %v537
        %v643 = vpop.f32.mrf.mxu0
        %v644 = vadd.f32 %v426, %v643
        %v645 = vpop.f32.mrf.mxu0
        %v646 = vpop.f32.mrf.mxu0
        %v647 = vadd.f32 %v426, %v646
        %v648 = vpop.f32.mrf.mxu0
        %649 = vmatprep.mubr.bf16.mxu0 0
        %650 = vmatmul.mubr.bf16.gmra.mxu0 %v540
        %v651 = vpop.f32.mrf.mxu0
        %v652 = vadd.f32 %v426, %v651
        %v653 = vpop.f32.mrf.mxu0
        %v654 = vpop.f32.mrf.mxu0
        %v655 = vadd.f32 %v426, %v654
        %v656 = vpop.f32.mrf.mxu0
        %657 = vmatprep.mubr.bf16.mxu0 0
        %658 = vmatmul.mubr.bf16.gmra.mxu0 %v543
        %v659 = vpop.f32.mrf.mxu0
        %v660 = vadd.f32 %v426, %v659
        %v661 = vpop.f32.mrf.mxu0
        %v662 = vpop.f32.mrf.mxu0
        %v663 = vadd.f32 %v426, %v662
        %v664 = vpop.f32.mrf.mxu0
        %665 = vmatprep.mubr.bf16.mxu0 0
        %666 = vmatmul.mubr.bf16.gmra.mxu0 %v546
        %v667 = vpop.f32.mrf.mxu0
        %v668 = vadd.f32 %v426, %v667
        %v669 = vpop.f32.mrf.mxu0
        %v670 = vpop.f32.mrf.mxu0
        %v671 = vadd.f32 %v426, %v670
        %v672 = vpop.f32.mrf.mxu0
        %673 = vmatprep.mubr.bf16.mxu0 0
        %674 = vmatmul.mubr.bf16.gmra.mxu0 %v549
        %v675 = vpop.f32.mrf.mxu0
        %v676 = vadd.f32 %v426, %v675
        %v677 = vpop.f32.mrf.mxu0
        %v678 = vpop.f32.mrf.mxu0
        %v679 = vadd.f32 %v426, %v678
        %v680 = vpop.f32.mrf.mxu0
        %681 = vmatprep.mubr.bf16.mxu0 0
        %682 = vmatmul.mubr.bf16.gmra.mxu0 %v552
        %v683 = vpop.f32.mrf.mxu0
        %v684 = vadd.f32 %v426, %v683
        %v685 = vpop.f32.mrf.mxu0
        %v686 = vpop.f32.mrf.mxu0
        %v687 = vadd.f32 %v426, %v686
        %v688 = vpop.f32.mrf.mxu0
        %689 = vmatprep.mubr.bf16.mxu0 0
        %690 = vmatmul.mubr.bf16.gmra.mxu0 %v555
        %v691 = vpop.f32.mrf.mxu0
        %v692 = vadd.f32 %v426, %v691
        %v693 = vpop.f32.mrf.mxu0
        %v694 = vpop.f32.mrf.mxu0
        %v695 = vadd.f32 %v426, %v694
        %v696 = vpop.f32.mrf.mxu0
        %697 = vmatprep.mubr.bf16.mxu0 0
        %698 = vmatmul.mubr.bf16.gmra.mxu0 %v558
        %v699 = vpop.f32.mrf.mxu0
        %v700 = vadd.f32 %v426, %v699
        %v701 = vpop.f32.mrf.mxu0
        %v702 = vpop.f32.mrf.mxu0
        %v703 = vadd.f32 %v426, %v702
        %v704 = vpop.f32.mrf.mxu0
        %705 = vmatprep.mubr.bf16.mxu0 0
        %706 = vmatmul.mubr.bf16.gmra.mxu0 %v561
        %v707 = vpop.f32.mrf.mxu0
        %v708 = vadd.f32 %v426, %v707
        %v709 = vpop.f32.mrf.mxu0
        %v710 = vpop.f32.mrf.mxu0
        %v711 = vadd.f32 %v426, %v710
        %v712 = vpop.f32.mrf.mxu0
        %713 = vmatprep.mubr.bf16.mxu0 0
        %714 = vmatmul.mubr.bf16.gmra.mxu0 %v564
        %v715 = vpop.f32.mrf.mxu0
        %v716 = vadd.f32 %v426, %v715
        %v717 = vpop.f32.mrf.mxu0
        %v718 = vpop.f32.mrf.mxu0
        %v719 = vadd.f32 %v426, %v718
        %v720 = vpop.f32.mrf.mxu0
        %721 = vmatprep.mubr.bf16.mxu0 0
        %722 = vmatmul.mubr.bf16.gmra.mxu0 %v567
        %v723 = vpop.f32.mrf.mxu0
        %v724 = vadd.f32 %v426, %v723
        %v725 = vpop.f32.mrf.mxu0
        %v726 = vpop.f32.mrf.mxu0
        %v727 = vadd.f32 %v426, %v726
        %v728 = vpop.f32.mrf.mxu0
        %729 = vdwg.mxu0
        %v730 = vsub.f32 0.0, %v604
        %v731 = vsub.f32 0.0, %v607
        %v732 = vsub.f32 0.0, %v612
        %v733 = vsub.f32 0.0, %v615
        %v734 = vsub.f32 0.0, %v620
        %v735 = vsub.f32 0.0, %v623
        %v736 = vsub.f32 0.0, %v628
        %v737 = vsub.f32 0.0, %v631
        %v738 = vsub.f32 0.0, %v636
        %v739 = vsub.f32 0.0, %v639
        %v740 = vsub.f32 0.0, %v644
        %v741 = vsub.f32 0.0, %v647
        %v742 = vsub.f32 0.0, %v652
        %v743 = vsub.f32 0.0, %v655
        %v744 = vsub.f32 0.0, %v660
        %v745 = vsub.f32 0.0, %v663
        %v746 = vsub.f32 0.0, %v668
        %v747 = vsub.f32 0.0, %v671
        %v748 = vsub.f32 0.0, %v676
        %v749 = vsub.f32 0.0, %v679
        %v750 = vsub.f32 0.0, %v684
        %v751 = vsub.f32 0.0, %v687
        %v752 = vsub.f32 0.0, %v692
        %v753 = vsub.f32 0.0, %v695
        %v754 = vsub.f32 0.0, %v700
        %v755 = vsub.f32 0.0, %v703
        %v756 = vsub.f32 0.0, %v708
        %v757 = vsub.f32 0.0, %v711
        %v758 = vsub.f32 0.0, %v716
        %v759 = vsub.f32 0.0, %v719
        %v760 = vsub.f32 0.0, %v724
        %v761 = vsub.f32 0.0, %v727
        %v762 = vmul.f32 %v730, 1.442695
        %v763 = vpow.pop %v762
        %v764 = vmul.f32 %v731, 1.442695
        %v765 = vpow.pop %v764
        %v766 = vmul.f32 %v732, 1.442695
        %v767 = vpow.pop %v766
        %v768 = vmul.f32 %v733, 1.442695
        %v769 = vpow.pop %v768
        %v770 = vmul.f32 %v734, 1.442695
        %v771 = vpow.pop %v770
        %v772 = vmul.f32 %v735, 1.442695
        %v773 = vpow.pop %v772
        %v774 = vmul.f32 %v736, 1.442695
        %v775 = vpow.pop %v774
        %v776 = vmul.f32 %v737, 1.442695
        %v777 = vpow.pop %v776
        %v778 = vmul.f32 %v738, 1.442695
        %v779 = vpow.pop %v778
        %v780 = vmul.f32 %v739, 1.442695
        %v781 = vpow.pop %v780
        %v782 = vmul.f32 %v740, 1.442695
        %v783 = vpow.pop %v782
        %v784 = vmul.f32 %v741, 1.442695
        %v785 = vpow.pop %v784
        %v786 = vmul.f32 %v742, 1.442695
        %v787 = vpow.pop %v786
        %v788 = vmul.f32 %v743, 1.442695
        %v789 = vpow.pop %v788
        %v790 = vmul.f32 %v744, 1.442695
        %v791 = vpow.pop %v790
        %v792 = vmul.f32 %v745, 1.442695
        %v793 = vpow.pop %v792
        %v794 = vmul.f32 %v746, 1.442695
        %v795 = vpow.pop %v794
        %v796 = vmul.f32 %v747, 1.442695
        %v797 = vpow.pop %v796
        %v798 = vmul.f32 %v748, 1.442695
        %v799 = vpow.pop %v798
        %v800 = vmul.f32 %v749, 1.442695
        %v801 = vpow.pop %v800
        %v802 = vmul.f32 %v750, 1.442695
        %v803 = vpow.pop %v802
        %v804 = vmul.f32 %v751, 1.442695
        %v805 = vpow.pop %v804
        %v806 = vmul.f32 %v752, 1.442695
        %v807 = vpow.pop %v806
        %v808 = vmul.f32 %v753, 1.442695
        %v809 = vpow.pop %v808
        %v810 = vmul.f32 %v754, 1.442695
        %v811 = vpow.pop %v810
        %v812 = vmul.f32 %v755, 1.442695
        %v813 = vpow.pop %v812
        %v814 = vmul.f32 %v756, 1.442695
        %v815 = vpow.pop %v814
        %v816 = vmul.f32 %v757, 1.442695
        %v817 = vpow.pop %v816
        %v818 = vmul.f32 %v758, 1.442695
        %v819 = vpow.pop %v818
        %v820 = vmul.f32 %v759, 1.442695
        %v821 = vpow.pop %v820
        %v822 = vmul.f32 %v760, 1.442695
        %v823 = vpow.pop %v822
        %v824 = vmul.f32 %v761, 1.442695
        %v825 = vpow.pop %v824
        %v826 = vadd.f32 %v763, 1.0
        %v827 = vadd.f32 %v765, 1.0
        %v828 = vadd.f32 %v767, 1.0
        %v829 = vadd.f32 %v769, 1.0
        %v830 = vadd.f32 %v771, 1.0
        %v831 = vadd.f32 %v773, 1.0
        %v832 = vadd.f32 %v775, 1.0
        %v833 = vadd.f32 %v777, 1.0
        %v834 = vadd.f32 %v779, 1.0
        %v835 = vadd.f32 %v781, 1.0
        %v836 = vadd.f32 %v783, 1.0
        %v837 = vadd.f32 %v785, 1.0
        %v838 = vadd.f32 %v787, 1.0
        %v839 = vadd.f32 %v789, 1.0
        %v840 = vadd.f32 %v791, 1.0
        %v841 = vadd.f32 %v793, 1.0
        %v842 = vadd.f32 %v795, 1.0
        %v843 = vadd.f32 %v797, 1.0
        %v844 = vadd.f32 %v799, 1.0
        %v845 = vadd.f32 %v801, 1.0
        %v846 = vadd.f32 %v803, 1.0
        %v847 = vadd.f32 %v805, 1.0
        %v848 = vadd.f32 %v807, 1.0
        %v849 = vadd.f32 %v809, 1.0
        %v850 = vadd.f32 %v811, 1.0
        %v851 = vadd.f32 %v813, 1.0
        %v852 = vadd.f32 %v815, 1.0
        %v853 = vadd.f32 %v817, 1.0
        %v854 = vadd.f32 %v819, 1.0
        %v855 = vadd.f32 %v821, 1.0
        %v856 = vadd.f32 %v823, 1.0
        %v857 = vadd.f32 %v825, 1.0
        %v858 = vrcp.pop %v826
        %v859 = vmul.f32 %v604, %v858
        %v860 = vrcp.pop %v827
        %v861 = vmul.f32 %v607, %v860
        %v862 = vrcp.pop %v828
        %v863 = vmul.f32 %v612, %v862
        %v864 = vrcp.pop %v829
        %v865 = vmul.f32 %v615, %v864
        %v866 = vrcp.pop %v830
        %v867 = vmul.f32 %v620, %v866
        %v868 = vrcp.pop %v831
        %v869 = vmul.f32 %v623, %v868
        %v870 = vrcp.pop %v832
        %v871 = vmul.f32 %v628, %v870
        %v872 = vrcp.pop %v833
        %v873 = vmul.f32 %v631, %v872
        %v874 = vrcp.pop %v834
        %v875 = vmul.f32 %v636, %v874
        %v876 = vrcp.pop %v835
        %v877 = vmul.f32 %v639, %v876
        %v878 = vrcp.pop %v836
        %v879 = vmul.f32 %v644, %v878
        %v880 = vrcp.pop %v837
        %v881 = vmul.f32 %v647, %v880
        %v882 = vrcp.pop %v838
        %v883 = vmul.f32 %v652, %v882
        %v884 = vrcp.pop %v839
        %v885 = vmul.f32 %v655, %v884
        %v886 = vrcp.pop %v840
        %v887 = vmul.f32 %v660, %v886
        %v888 = vrcp.pop %v841
        %v889 = vmul.f32 %v663, %v888
        %v890 = vrcp.pop %v842
        %v891 = vmul.f32 %v668, %v890
        %v892 = vrcp.pop %v843
        %v893 = vmul.f32 %v671, %v892
        %v894 = vrcp.pop %v844
        %v895 = vmul.f32 %v676, %v894
        %v896 = vrcp.pop %v845
        %v897 = vmul.f32 %v679, %v896
        %v898 = vrcp.pop %v846
        %v899 = vmul.f32 %v684, %v898
        %v900 = vrcp.pop %v847
        %v901 = vmul.f32 %v687, %v900
        %v902 = vrcp.pop %v848
        %v903 = vmul.f32 %v692, %v902
        %v904 = vrcp.pop %v849
        %v905 = vmul.f32 %v695, %v904
        %v906 = vrcp.pop %v850
        %v907 = vmul.f32 %v700, %v906
        %v908 = vrcp.pop %v851
        %v909 = vmul.f32 %v703, %v908
        %v910 = vrcp.pop %v852
        %v911 = vmul.f32 %v708, %v910
        %v912 = vrcp.pop %v853
        %v913 = vmul.f32 %v711, %v912
        %v914 = vrcp.pop %v854
        %v915 = vmul.f32 %v716, %v914
        %v916 = vrcp.pop %v855
        %v917 = vmul.f32 %v719, %v916
        %v918 = vrcp.pop %v856
        %v919 = vmul.f32 %v724, %v918
        %v920 = vrcp.pop %v857
        %v921 = vmul.f32 %v727, %v920
        %v922 = vpack.c.bf16 %v861, %v859
        %v923 = vpack.c.bf16 %v865, %v863
        %v924 = vpack.c.bf16 %v869, %v867
        %v925 = vpack.c.bf16 %v873, %v871
        %v926 = vpack.c.bf16 %v877, %v875
        %v927 = vpack.c.bf16 %v881, %v879
        %v928 = vpack.c.bf16 %v885, %v883
        %v929 = vpack.c.bf16 %v889, %v887
        %v930 = vpack.c.bf16 %v893, %v891
        %v931 = vpack.c.bf16 %v897, %v895
        %v932 = vpack.c.bf16 %v901, %v899
        %v933 = vpack.c.bf16 %v905, %v903
        %v934 = vpack.c.bf16 %v909, %v907
        %v935 = vpack.c.bf16 %v913, %v911
        %v936 = vpack.c.bf16 %v917, %v915
        %v937 = vpack.c.bf16 %v921, %v919
        %v938 = vld [vmem:[%s3] sm:$0xff]
        %v939 = vld [vmem:[%s3 + $0x8] sm:$0xff]
        %v940 = vld [vmem:[%s3 + $0x10] sm:$0xff]
        %v941 = vld [vmem:[%s3 + $0x18] sm:$0xff]
        %v942 = vld [vmem:[%s3 + $0x20] sm:$0xff]
        %v943 = vld [vmem:[%s3 + $0x28] sm:$0xff]
        %v944 = vld [vmem:[%s3 + $0x30] sm:$0xff]
        %v945 = vld [vmem:[%s3 + $0x38] sm:$0xff]
        %v954 = vunpack.c.l.b16 %v938
        %v955 = vunpack.c.h.b16 %v938
        %v956 = vunpack.c.l.b16 %v939
        %v957 = vunpack.c.h.b16 %v939
        %v958 = vunpack.c.l.b16 %v940
        %v959 = vunpack.c.h.b16 %v940
        %v960 = vunpack.c.l.b16 %v941
        %v961 = vunpack.c.h.b16 %v941
        %v962 = vunpack.c.l.b16 %v942
        %v963 = vunpack.c.h.b16 %v942
        %v964 = vunpack.c.l.b16 %v943
        %v965 = vunpack.c.h.b16 %v943
        %v966 = vunpack.c.l.b16 %v944
        %v967 = vunpack.c.h.b16 %v944
        %v968 = vunpack.c.l.b16 %v945
        %v969 = vunpack.c.h.b16 %v945
        %v970 = vpack.c.b16 %v956, %v954
        %v971 = vpack.c.b16 %v957, %v955
        %v972 = vpack.c.b16 %v960, %v958
        %v973 = vpack.c.b16 %v961, %v959
        %v974 = vpack.c.b16 %v964, %v962
        %v975 = vpack.c.b16 %v965, %v963
        %v976 = vpack.c.b16 %v968, %v966
        %v977 = vpack.c.b16 %v969, %v967
        %986 = vmatprep.subr.bf16.mxu0 0
        %987 = vmatpush1.bf16.msra.mxu0 %v929
        %988 = vmatprep.subr.bf16.mxu0 0
        %989 = vmatpush1.bf16.msra.mxu0 %v928
        %990 = vmatprep.subr.bf16.mxu0 0
        %991 = vmatpush1.bf16.msra.mxu0 %v927
        %992 = vmatprep.subr.bf16.mxu0 0
        %993 = vmatpush1.bf16.msra.mxu0 %v926
        %994 = vmatprep.subr.bf16.mxu0 0
        %995 = vmatpush1.bf16.msra.mxu0 %v925
        %996 = vmatprep.subr.bf16.mxu0 0
        %997 = vmatpush1.bf16.msra.mxu0 %v924
        %998 = vmatprep.subr.bf16.mxu0 0
        %999 = vmatpush1.bf16.msra.mxu0 %v923
        %1000 = vmatprep.subr.bf16.mxu0 0
        %1001 = vmatpush1.bf16.msra.mxu0 %v922
        %1002 = vmatprep.subr.bf16.mxu0 0
        %1003 = vmatpush2.bf16.msra.mxu0 %v937
        %1004 = vmatprep.subr.bf16.mxu0 0
        %1005 = vmatpush2.bf16.msra.mxu0 %v936
        %1006 = vmatprep.subr.bf16.mxu0 0
        %1007 = vmatpush2.bf16.msra.mxu0 %v935
        %1008 = vmatprep.subr.bf16.mxu0 0
        %1009 = vmatpush2.bf16.msra.mxu0 %v934
        %1010 = vmatprep.subr.bf16.mxu0 0
        %1011 = vmatpush2.bf16.msra.mxu0 %v933
        %1012 = vmatprep.subr.bf16.mxu0 0
        %1013 = vmatpush2.bf16.msra.mxu0 %v932
        %1014 = vmatprep.subr.bf16.mxu0 0
        %1015 = vmatpush2.bf16.msra.mxu0 %v931
        %1016 = vmatprep.subr.bf16.mxu0 0
        %1017 = vmatpush2.bf16.msra.mxu0 %v930
        %1018 = vmatprep.mubr.bf16.mxu0 %v971
        %1019 = vmatmul.mubr.bf16.gmra.mxu0 %v970
        %v1020 = vpop.f32.mrf.mxu0
        %v1021 = vadd.f32 0.0, %v1020
        %v1022 = vpop.f32.mrf.mxu0
        %v1023 = vpop.f32.mrf.mxu0
        %v1024 = vadd.f32 0.0, %v1023
        %v1025 = vpop.f32.mrf.mxu0
        %1026 = vmatprep.mubr.bf16.mxu0 %v973
        %1027 = vmatmul.mubr.bf16.gmra.mxu0 %v972
        %v1028 = vpop.f32.mrf.mxu0
        %v1029 = vadd.f32 0.0, %v1028
        %v1030 = vpop.f32.mrf.mxu0
        %v1031 = vpop.f32.mrf.mxu0
        %v1032 = vadd.f32 0.0, %v1031
        %v1033 = vpop.f32.mrf.mxu0
        %1034 = vmatprep.mubr.bf16.mxu0 %v975
        %1035 = vmatmul.mubr.bf16.gmra.mxu0 %v974
        %v1036 = vpop.f32.mrf.mxu0
        %v1037 = vadd.f32 0.0, %v1036
        %v1038 = vpop.f32.mrf.mxu0
        %v1039 = vpop.f32.mrf.mxu0
        %v1040 = vadd.f32 0.0, %v1039
        %v1041 = vpop.f32.mrf.mxu0
        %1042 = vmatprep.mubr.bf16.mxu0 %v977
        %1043 = vmatmul.mubr.bf16.gmra.mxu0 %v976
        %v1044 = vpop.f32.mrf.mxu0
        %v1045 = vadd.f32 0.0, %v1044
        %v1046 = vpop.f32.mrf.mxu0
        %v1047 = vpop.f32.mrf.mxu0
        %v1048 = vadd.f32 0.0, %v1047
        %v1049 = vpop.f32.mrf.mxu0
        %1050 = vdwg.mxu0
        %v1051 = vpack.c.bf16 %v1024, %v1021
        %v1052 = vpack.c.bf16 %v1032, %v1029
        %v1053 = vpack.c.bf16 %v1040, %v1037
        %v1054 = vpack.c.bf16 %v1048, %v1045
        %v1055 = vld [vmem:[%s4] sm:$0xf]
        %v1056 = vld [vmem:[%s4 + $0x4] sm:$0xf]
        %v1057 = vld [vmem:[%s4 + $0x8] sm:$0xf]
        %v1058 = vld [vmem:[%s4 + $0xc] sm:$0xf]
        %v1059 = vld [vmem:[%s4 + $0x10] sm:$0xf]
        %v1060 = vld [vmem:[%s4 + $0x14] sm:$0xf]
        %v1061 = vld [vmem:[%s4 + $0x18] sm:$0xf]
        %v1062 = vld [vmem:[%s4 + $0x1c] sm:$0xf]
        %v1063 = vld [vmem:[%s4 + $0x20] sm:$0xf]
        %v1064 = vld [vmem:[%s4 + $0x24] sm:$0xf]
        %v1065 = vld [vmem:[%s4 + $0x28] sm:$0xf]
        %v1066 = vld [vmem:[%s4 + $0x2c] sm:$0xf]
        %v1067 = vld [vmem:[%s4 + $0x30] sm:$0xf]
        %v1068 = vld [vmem:[%s4 + $0x34] sm:$0xf]
        %v1069 = vld [vmem:[%s4 + $0x38] sm:$0xf]
        %v1070 = vld [vmem:[%s4 + $0x3c] sm:$0xf]
        %s1071 = scalar_lea.vmem %s3, 64
        %v1072 = vld [vmem:[%s1071] sm:$0xff]
        %v1073 = vld [vmem:[%s1071 + $0x8] sm:$0xff]
        %v1074 = vld [vmem:[%s1071 + $0x10] sm:$0xff]
        %v1075 = vld [vmem:[%s1071 + $0x18] sm:$0xff]
        %v1076 = vld [vmem:[%s1071 + $0x20] sm:$0xff]
        %v1077 = vld [vmem:[%s1071 + $0x28] sm:$0xff]
        %v1078 = vld [vmem:[%s1071 + $0x30] sm:$0xff]
        %v1079 = vld [vmem:[%s1071 + $0x38] sm:$0xff]
        %v1088 = vunpack.c.l.b16 %v1072
        %v1089 = vunpack.c.h.b16 %v1072
        %v1090 = vunpack.c.l.b16 %v1073
        %v1091 = vunpack.c.h.b16 %v1073
        %v1092 = vunpack.c.l.b16 %v1074
        %v1093 = vunpack.c.h.b16 %v1074
        %v1094 = vunpack.c.l.b16 %v1075
        %v1095 = vunpack.c.h.b16 %v1075
        %v1096 = vunpack.c.l.b16 %v1076
        %v1097 = vunpack.c.h.b16 %v1076
        %v1098 = vunpack.c.l.b16 %v1077
        %v1099 = vunpack.c.h.b16 %v1077
        %v1100 = vunpack.c.l.b16 %v1078
        %v1101 = vunpack.c.h.b16 %v1078
        %v1102 = vunpack.c.l.b16 %v1079
        %v1103 = vunpack.c.h.b16 %v1079
        %v1104 = vpack.c.b16 %v1090, %v1088
        %v1105 = vpack.c.b16 %v1091, %v1089
        %v1106 = vpack.c.b16 %v1094, %v1092
        %v1107 = vpack.c.b16 %v1095, %v1093
        %v1108 = vpack.c.b16 %v1098, %v1096
        %v1109 = vpack.c.b16 %v1099, %v1097
        %v1110 = vpack.c.b16 %v1102, %v1100
        %v1111 = vpack.c.b16 %v1103, %v1101
        %1120 = vmatprep.subr.bf16.mxu0 0
        %1121 = vmatpush1.bf16.msra.mxu0 %v929
        %1122 = vmatprep.subr.bf16.mxu0 0
        %1123 = vmatpush1.bf16.msra.mxu0 %v928
        %1124 = vmatprep.subr.bf16.mxu0 0
        %1125 = vmatpush1.bf16.msra.mxu0 %v927
        %1126 = vmatprep.subr.bf16.mxu0 0
        %1127 = vmatpush1.bf16.msra.mxu0 %v926
        %1128 = vmatprep.subr.bf16.mxu0 0
        %1129 = vmatpush1.bf16.msra.mxu0 %v925
        %1130 = vmatprep.subr.bf16.mxu0 0
        %1131 = vmatpush1.bf16.msra.mxu0 %v924
        %1132 = vmatprep.subr.bf16.mxu0 0
        %1133 = vmatpush1.bf16.msra.mxu0 %v923
        %1134 = vmatprep.subr.bf16.mxu0 0
        %1135 = vmatpush1.bf16.msra.mxu0 %v922
        %1136 = vmatprep.subr.bf16.mxu0 0
        %1137 = vmatpush2.bf16.msra.mxu0 %v937
        %1138 = vmatprep.subr.bf16.mxu0 0
        %1139 = vmatpush2.bf16.msra.mxu0 %v936
        %1140 = vmatprep.subr.bf16.mxu0 0
        %1141 = vmatpush2.bf16.msra.mxu0 %v935
        %1142 = vmatprep.subr.bf16.mxu0 0
        %1143 = vmatpush2.bf16.msra.mxu0 %v934
        %1144 = vmatprep.subr.bf16.mxu0 0
        %1145 = vmatpush2.bf16.msra.mxu0 %v933
        %1146 = vmatprep.subr.bf16.mxu0 0
        %1147 = vmatpush2.bf16.msra.mxu0 %v932
        %1148 = vmatprep.subr.bf16.mxu0 0
        %1149 = vmatpush2.bf16.msra.mxu0 %v931
        %1150 = vmatprep.subr.bf16.mxu0 0
        %1151 = vmatpush2.bf16.msra.mxu0 %v930
        %1152 = vmatprep.mubr.bf16.mxu0 %v1105
        %1153 = vmatmul.mubr.bf16.gmra.mxu0 %v1104
        %v1154 = vpop.f32.mrf.mxu0
        %v1155 = vadd.f32 0.0, %v1154
        %v1156 = vpop.f32.mrf.mxu0
        %v1157 = vpop.f32.mrf.mxu0
        %v1158 = vadd.f32 0.0, %v1157
        %v1159 = vpop.f32.mrf.mxu0
        %1160 = vmatprep.mubr.bf16.mxu0 %v1107
        %1161 = vmatmul.mubr.bf16.gmra.mxu0 %v1106
        %v1162 = vpop.f32.mrf.mxu0
        %v1163 = vadd.f32 0.0, %v1162
        %v1164 = vpop.f32.mrf.mxu0
        %v1165 = vpop.f32.mrf.mxu0
        %v1166 = vadd.f32 0.0, %v1165
        %v1167 = vpop.f32.mrf.mxu0
        %1168 = vmatprep.mubr.bf16.mxu0 %v1109
        %1169 = vmatmul.mubr.bf16.gmra.mxu0 %v1108
        %v1170 = vpop.f32.mrf.mxu0
        %v1171 = vadd.f32 0.0, %v1170
        %v1172 = vpop.f32.mrf.mxu0
        %v1173 = vpop.f32.mrf.mxu0
        %v1174 = vadd.f32 0.0, %v1173
        %v1175 = vpop.f32.mrf.mxu0
        %1176 = vmatprep.mubr.bf16.mxu0 %v1111
        %1177 = vmatmul.mubr.bf16.gmra.mxu0 %v1110
        %v1178 = vpop.f32.mrf.mxu0
        %v1179 = vadd.f32 0.0, %v1178
        %v1180 = vpop.f32.mrf.mxu0
        %v1181 = vpop.f32.mrf.mxu0
        %v1182 = vadd.f32 0.0, %v1181
        %v1183 = vpop.f32.mrf.mxu0
        %1184 = vdwg.mxu0
        %v1185 = vpack.c.bf16 %v1158, %v1155
        %v1186 = vpack.c.bf16 %v1166, %v1163
        %v1187 = vpack.c.bf16 %v1174, %v1171
        %v1188 = vpack.c.bf16 %v1182, %v1179
        %s1189 = scalar_lea.vmem %s4, 64
        %v1190 = vld [vmem:[%s1189] sm:$0xf]
        %v1191 = vld [vmem:[%s1189 + $0x4] sm:$0xf]
        %v1192 = vld [vmem:[%s1189 + $0x8] sm:$0xf]
        %v1193 = vld [vmem:[%s1189 + $0xc] sm:$0xf]
        %v1194 = vld [vmem:[%s1189 + $0x10] sm:$0xf]
        %v1195 = vld [vmem:[%s1189 + $0x14] sm:$0xf]
        %v1196 = vld [vmem:[%s1189 + $0x18] sm:$0xf]
        %v1197 = vld [vmem:[%s1189 + $0x1c] sm:$0xf]
        %v1198 = vld [vmem:[%s1189 + $0x20] sm:$0xf]
        %v1199 = vld [vmem:[%s1189 + $0x24] sm:$0xf]
        %v1200 = vld [vmem:[%s1189 + $0x28] sm:$0xf]
        %v1201 = vld [vmem:[%s1189 + $0x2c] sm:$0xf]
        %v1202 = vld [vmem:[%s1189 + $0x30] sm:$0xf]
        %v1203 = vld [vmem:[%s1189 + $0x34] sm:$0xf]
        %v1204 = vld [vmem:[%s1189 + $0x38] sm:$0xf]
        %v1205 = vld [vmem:[%s1189 + $0x3c] sm:$0xf]
        %v1222 = vunpack.c.l.b16 %v1190
        %v1223 = vunpack.c.l.b16 %v1191
        %v1224 = vunpack.c.l.b16 %v1192
        %v1225 = vunpack.c.l.b16 %v1193
        %v1226 = vunpack.c.l.b16 %v1194
        %v1227 = vunpack.c.l.b16 %v1195
        %v1228 = vunpack.c.l.b16 %v1196
        %v1229 = vunpack.c.l.b16 %v1197
        %v1230 = vunpack.c.l.b16 %v1198
        %v1231 = vunpack.c.l.b16 %v1199
        %v1232 = vunpack.c.l.b16 %v1200
        %v1233 = vunpack.c.l.b16 %v1201
        %v1234 = vunpack.c.l.b16 %v1202
        %v1235 = vunpack.c.l.b16 %v1203
        %v1236 = vunpack.c.l.b16 %v1204
        %v1237 = vunpack.c.l.b16 %v1205
        %v1238 = vpack.c.b16 %v1223, %v1222
        %v1239 = vpack.c.b16 %v1225, %v1224
        %v1240 = vpack.c.b16 %v1227, %v1226
        %v1241 = vpack.c.b16 %v1229, %v1228
        %v1242 = vpack.c.b16 %v1231, %v1230
        %v1243 = vpack.c.b16 %v1233, %v1232
        %v1244 = vpack.c.b16 %v1235, %v1234
        %v1245 = vpack.c.b16 %v1237, %v1236
        %1254 = vmatprep.subr.bf16.mxu0 0
        %1255 = vmatpush1.bf16.msra.mxu0 %v1245
        %1256 = vmatprep.subr.bf16.mxu0 0
        %1257 = vmatpush1.bf16.msra.mxu0 %v1244
        %1258 = vmatprep.subr.bf16.mxu0 0
        %1259 = vmatpush1.bf16.msra.mxu0 %v1243
        %1260 = vmatprep.subr.bf16.mxu0 0
        %1261 = vmatpush1.bf16.msra.mxu0 %v1242
        %1262 = vmatprep.subr.bf16.mxu0 0
        %1263 = vmatpush1.bf16.msra.mxu0 %v1241
        %1264 = vmatprep.subr.bf16.mxu0 0
        %1265 = vmatpush1.bf16.msra.mxu0 %v1240
        %1266 = vmatprep.subr.bf16.mxu0 0
        %1267 = vmatpush1.bf16.msra.mxu0 %v1239
        %1268 = vmatprep.subr.bf16.mxu0 0
        %1269 = vmatpush1.bf16.msra.mxu0 %v1238
        %1270 = vmatprep.subr.bf16.mxu0 0
        %1271 = vmatpush2.bf16.msra.mxu0 0
        %1272 = vmatprep.subr.bf16.mxu0 0
        %1273 = vmatpush2.bf16.msra.mxu0 0
        %1274 = vmatprep.subr.bf16.mxu0 0
        %1275 = vmatpush2.bf16.msra.mxu0 0
        %1276 = vmatprep.subr.bf16.mxu0 0
        %1277 = vmatpush2.bf16.msra.mxu0 0
        %1278 = vmatprep.subr.bf16.mxu0 0
        %1279 = vmatpush2.bf16.msra.mxu0 0
        %1280 = vmatprep.subr.bf16.mxu0 0
        %1281 = vmatpush2.bf16.msra.mxu0 0
        %1282 = vmatprep.subr.bf16.mxu0 0
        %1283 = vmatpush2.bf16.msra.mxu0 0
        %1284 = vmatprep.subr.bf16.mxu0 0
        %1285 = vmatpush2.bf16.msra.mxu0 0
        %1286 = vmatprep.mubr.bf16.mxu0 0
        %1287 = vmatmul.mubr.bf16.gmra.mxu0 %v1185
        %v1288 = vpop.f32.mrf.mxu0
        %v1289 = vadd.f32 0.0, %v1288
        %v1290 = vpop.f32.mrf.mxu0
        %v1291 = vpop.f32.mrf.mxu0
        %v1292 = vadd.f32 0.0, %v1291
        %v1293 = vpop.f32.mrf.mxu0
        %1294 = vmatprep.mubr.bf16.mxu0 0
        %1295 = vmatmul.mubr.bf16.gmra.mxu0 %v1186
        %v1296 = vpop.f32.mrf.mxu0
        %v1297 = vadd.f32 0.0, %v1296
        %v1298 = vpop.f32.mrf.mxu0
        %v1299 = vpop.f32.mrf.mxu0
        %v1300 = vadd.f32 0.0, %v1299
        %v1301 = vpop.f32.mrf.mxu0
        %1302 = vmatprep.mubr.bf16.mxu0 0
        %1303 = vmatmul.mubr.bf16.gmra.mxu0 %v1187
        %v1304 = vpop.f32.mrf.mxu0
        %v1305 = vadd.f32 0.0, %v1304
        %v1306 = vpop.f32.mrf.mxu0
        %v1307 = vpop.f32.mrf.mxu0
        %v1308 = vadd.f32 0.0, %v1307
        %v1309 = vpop.f32.mrf.mxu0
        %1310 = vmatprep.mubr.bf16.mxu0 0
        %1311 = vmatmul.mubr.bf16.gmra.mxu0 %v1188
        %v1312 = vpop.f32.mrf.mxu0
        %v1313 = vadd.f32 0.0, %v1312
        %v1314 = vpop.f32.mrf.mxu0
        %v1315 = vpop.f32.mrf.mxu0
        %v1316 = vadd.f32 0.0, %v1315
        %v1317 = vpop.f32.mrf.mxu0
        %1318 = vdwg.mxu0
        %v1335 = vunpack.c.l.b16 %v1055
        %v1336 = vunpack.c.l.b16 %v1056
        %v1337 = vunpack.c.l.b16 %v1057
        %v1338 = vunpack.c.l.b16 %v1058
        %v1339 = vunpack.c.l.b16 %v1059
        %v1340 = vunpack.c.l.b16 %v1060
        %v1341 = vunpack.c.l.b16 %v1061
        %v1342 = vunpack.c.l.b16 %v1062
        %v1343 = vunpack.c.l.b16 %v1063
        %v1344 = vunpack.c.l.b16 %v1064
        %v1345 = vunpack.c.l.b16 %v1065
        %v1346 = vunpack.c.l.b16 %v1066
        %v1347 = vunpack.c.l.b16 %v1067
        %v1348 = vunpack.c.l.b16 %v1068
        %v1349 = vunpack.c.l.b16 %v1069
        %v1350 = vunpack.c.l.b16 %v1070
        %v1351 = vpack.c.b16 %v1336, %v1335
        %v1352 = vpack.c.b16 %v1338, %v1337
        %v1353 = vpack.c.b16 %v1340, %v1339
        %v1354 = vpack.c.b16 %v1342, %v1341
        %v1355 = vpack.c.b16 %v1344, %v1343
        %v1356 = vpack.c.b16 %v1346, %v1345
        %v1357 = vpack.c.b16 %v1348, %v1347
        %v1358 = vpack.c.b16 %v1350, %v1349
        %1367 = vmatprep.subr.bf16.mxu0 0
        %1368 = vmatpush1.bf16.msra.mxu0 %v1358
        %1369 = vmatprep.subr.bf16.mxu0 0
        %1370 = vmatpush1.bf16.msra.mxu0 %v1357
        %1371 = vmatprep.subr.bf16.mxu0 0
        %1372 = vmatpush1.bf16.msra.mxu0 %v1356
        %1373 = vmatprep.subr.bf16.mxu0 0
        %1374 = vmatpush1.bf16.msra.mxu0 %v1355
        %1375 = vmatprep.subr.bf16.mxu0 0
        %1376 = vmatpush1.bf16.msra.mxu0 %v1354
        %1377 = vmatprep.subr.bf16.mxu0 0
        %1378 = vmatpush1.bf16.msra.mxu0 %v1353
        %1379 = vmatprep.subr.bf16.mxu0 0
        %1380 = vmatpush1.bf16.msra.mxu0 %v1352
        %1381 = vmatprep.subr.bf16.mxu0 0
        %1382 = vmatpush1.bf16.msra.mxu0 %v1351
        %1383 = vmatprep.subr.bf16.mxu0 0
        %1384 = vmatpush2.bf16.msra.mxu0 0
        %1385 = vmatprep.subr.bf16.mxu0 0
        %1386 = vmatpush2.bf16.msra.mxu0 0
        %1387 = vmatprep.subr.bf16.mxu0 0
        %1388 = vmatpush2.bf16.msra.mxu0 0
        %1389 = vmatprep.subr.bf16.mxu0 0
        %1390 = vmatpush2.bf16.msra.mxu0 0
        %1391 = vmatprep.subr.bf16.mxu0 0
        %1392 = vmatpush2.bf16.msra.mxu0 0
        %1393 = vmatprep.subr.bf16.mxu0 0
        %1394 = vmatpush2.bf16.msra.mxu0 0
        %1395 = vmatprep.subr.bf16.mxu0 0
        %1396 = vmatpush2.bf16.msra.mxu0 0
        %1397 = vmatprep.subr.bf16.mxu0 0
        %1398 = vmatpush2.bf16.msra.mxu0 0
        %1399 = vmatprep.mubr.bf16.mxu0 0
        %1400 = vmatmul.mubr.bf16.gmra.mxu0 %v1051
        %v1401 = vpop.f32.mrf.mxu0
        %v1402 = vadd.f32 %v1289, %v1401
        %v1403 = vpop.f32.mrf.mxu0
        %v1404 = vpop.f32.mrf.mxu0
        %v1405 = vadd.f32 %v1292, %v1404
        %v1406 = vpop.f32.mrf.mxu0
        %1407 = vmatprep.mubr.bf16.mxu0 0
        %1408 = vmatmul.mubr.bf16.gmra.mxu0 %v1052
        %v1409 = vpop.f32.mrf.mxu0
        %v1410 = vadd.f32 %v1297, %v1409
        %v1411 = vpop.f32.mrf.mxu0
        %v1412 = vpop.f32.mrf.mxu0
        %v1413 = vadd.f32 %v1300, %v1412
        %v1414 = vpop.f32.mrf.mxu0
        %1415 = vmatprep.mubr.bf16.mxu0 0
        %1416 = vmatmul.mubr.bf16.gmra.mxu0 %v1053
        %v1417 = vpop.f32.mrf.mxu0
        %v1418 = vadd.f32 %v1305, %v1417
        %v1419 = vpop.f32.mrf.mxu0
        %v1420 = vpop.f32.mrf.mxu0
        %v1421 = vadd.f32 %v1308, %v1420
        %v1422 = vpop.f32.mrf.mxu0
        %1423 = vmatprep.mubr.bf16.mxu0 0
        %1424 = vmatmul.mubr.bf16.gmra.mxu0 %v1054
        %v1425 = vpop.f32.mrf.mxu0
        %v1426 = vadd.f32 %v1313, %v1425
        %v1427 = vpop.f32.mrf.mxu0
        %v1428 = vpop.f32.mrf.mxu0
        %v1429 = vadd.f32 %v1316, %v1428
        %v1430 = vpop.f32.mrf.mxu0
        %1431 = vdwg.mxu0
        %s1432 = scalar_lea.vmem %s3, 128
        %v1433 = vld [vmem:[%s1432] sm:$0xff]
        %v1434 = vld [vmem:[%s1432 + $0x8] sm:$0xff]
        %v1435 = vld [vmem:[%s1432 + $0x10] sm:$0xff]
        %v1436 = vld [vmem:[%s1432 + $0x18] sm:$0xff]
        %v1437 = vld [vmem:[%s1432 + $0x20] sm:$0xff]
        %v1438 = vld [vmem:[%s1432 + $0x28] sm:$0xff]
        %v1439 = vld [vmem:[%s1432 + $0x30] sm:$0xff]
        %v1440 = vld [vmem:[%s1432 + $0x38] sm:$0xff]
        %v1449 = vunpack.c.l.b16 %v1433
        %v1450 = vunpack.c.h.b16 %v1433
        %v1451 = vunpack.c.l.b16 %v1434
        %v1452 = vunpack.c.h.b16 %v1434
        %v1453 = vunpack.c.l.b16 %v1435
        %v1454 = vunpack.c.h.b16 %v1435
        %v1455 = vunpack.c.l.b16 %v1436
        %v1456 = vunpack.c.h.b16 %v1436
        %v1457 = vunpack.c.l.b16 %v1437
        %v1458 = vunpack.c.h.b16 %v1437
        %v1459 = vunpack.c.l.b16 %v1438
        %v1460 = vunpack.c.h.b16 %v1438
        %v1461 = vunpack.c.l.b16 %v1439
        %v1462 = vunpack.c.h.b16 %v1439
        %v1463 = vunpack.c.l.b16 %v1440
        %v1464 = vunpack.c.h.b16 %v1440
        %v1465 = vpack.c.b16 %v1451, %v1449
        %v1466 = vpack.c.b16 %v1452, %v1450
        %v1467 = vpack.c.b16 %v1455, %v1453
        %v1468 = vpack.c.b16 %v1456, %v1454
        %v1469 = vpack.c.b16 %v1459, %v1457
        %v1470 = vpack.c.b16 %v1460, %v1458
        %v1471 = vpack.c.b16 %v1463, %v1461
        %v1472 = vpack.c.b16 %v1464, %v1462
        %1481 = vmatprep.subr.bf16.mxu0 0
        %1482 = vmatpush1.bf16.msra.mxu0 %v929
        %1483 = vmatprep.subr.bf16.mxu0 0
        %1484 = vmatpush1.bf16.msra.mxu0 %v928
        %1485 = vmatprep.subr.bf16.mxu0 0
        %1486 = vmatpush1.bf16.msra.mxu0 %v927
        %1487 = vmatprep.subr.bf16.mxu0 0
        %1488 = vmatpush1.bf16.msra.mxu0 %v926
        %1489 = vmatprep.subr.bf16.mxu0 0
        %1490 = vmatpush1.bf16.msra.mxu0 %v925
        %1491 = vmatprep.subr.bf16.mxu0 0
        %1492 = vmatpush1.bf16.msra.mxu0 %v924
        %1493 = vmatprep.subr.bf16.mxu0 0
        %1494 = vmatpush1.bf16.msra.mxu0 %v923
        %1495 = vmatprep.subr.bf16.mxu0 0
        %1496 = vmatpush1.bf16.msra.mxu0 %v922
        %1497 = vmatprep.subr.bf16.mxu0 0
        %1498 = vmatpush2.bf16.msra.mxu0 %v937
        %1499 = vmatprep.subr.bf16.mxu0 0
        %1500 = vmatpush2.bf16.msra.mxu0 %v936
        %1501 = vmatprep.subr.bf16.mxu0 0
        %1502 = vmatpush2.bf16.msra.mxu0 %v935
        %1503 = vmatprep.subr.bf16.mxu0 0
        %1504 = vmatpush2.bf16.msra.mxu0 %v934
        %1505 = vmatprep.subr.bf16.mxu0 0
        %1506 = vmatpush2.bf16.msra.mxu0 %v933
        %1507 = vmatprep.subr.bf16.mxu0 0
        %1508 = vmatpush2.bf16.msra.mxu0 %v932
        %1509 = vmatprep.subr.bf16.mxu0 0
        %1510 = vmatpush2.bf16.msra.mxu0 %v931
        %1511 = vmatprep.subr.bf16.mxu0 0
        %1512 = vmatpush2.bf16.msra.mxu0 %v930
        %1513 = vmatprep.mubr.bf16.mxu0 %v1466
        %1514 = vmatmul.mubr.bf16.gmra.mxu0 %v1465
        %v1515 = vpop.f32.mrf.mxu0
        %v1516 = vadd.f32 0.0, %v1515
        %v1517 = vpop.f32.mrf.mxu0
        %v1518 = vpop.f32.mrf.mxu0
        %v1519 = vadd.f32 0.0, %v1518
        %v1520 = vpop.f32.mrf.mxu0
        %1521 = vmatprep.mubr.bf16.mxu0 %v1468
        %1522 = vmatmul.mubr.bf16.gmra.mxu0 %v1467
        %v1523 = vpop.f32.mrf.mxu0
        %v1524 = vadd.f32 0.0, %v1523
        %v1525 = vpop.f32.mrf.mxu0
        %v1526 = vpop.f32.mrf.mxu0
        %v1527 = vadd.f32 0.0, %v1526
        %v1528 = vpop.f32.mrf.mxu0
        %1529 = vmatprep.mubr.bf16.mxu0 %v1470
        %1530 = vmatmul.mubr.bf16.gmra.mxu0 %v1469
        %v1531 = vpop.f32.mrf.mxu0
        %v1532 = vadd.f32 0.0, %v1531
        %v1533 = vpop.f32.mrf.mxu0
        %v1534 = vpop.f32.mrf.mxu0
        %v1535 = vadd.f32 0.0, %v1534
        %v1536 = vpop.f32.mrf.mxu0
        %1537 = vmatprep.mubr.bf16.mxu0 %v1472
        %1538 = vmatmul.mubr.bf16.gmra.mxu0 %v1471
        %v1539 = vpop.f32.mrf.mxu0
        %v1540 = vadd.f32 0.0, %v1539
        %v1541 = vpop.f32.mrf.mxu0
        %v1542 = vpop.f32.mrf.mxu0
        %v1543 = vadd.f32 0.0, %v1542
        %v1544 = vpop.f32.mrf.mxu0
        %1545 = vdwg.mxu0
        %v1546 = vpack.c.bf16 %v1519, %v1516
        %v1547 = vpack.c.bf16 %v1527, %v1524
        %v1548 = vpack.c.bf16 %v1535, %v1532
        %v1549 = vpack.c.bf16 %v1543, %v1540
        %s1550 = scalar_lea.vmem %s4, 128
        %v1551 = vld [vmem:[%s1550] sm:$0xf]
        %v1552 = vld [vmem:[%s1550 + $0x4] sm:$0xf]
        %v1553 = vld [vmem:[%s1550 + $0x8] sm:$0xf]
        %v1554 = vld [vmem:[%s1550 + $0xc] sm:$0xf]
        %v1555 = vld [vmem:[%s1550 + $0x10] sm:$0xf]
        %v1556 = vld [vmem:[%s1550 + $0x14] sm:$0xf]
        %v1557 = vld [vmem:[%s1550 + $0x18] sm:$0xf]
        %v1558 = vld [vmem:[%s1550 + $0x1c] sm:$0xf]
        %v1559 = vld [vmem:[%s1550 + $0x20] sm:$0xf]
        %v1560 = vld [vmem:[%s1550 + $0x24] sm:$0xf]
        %v1561 = vld [vmem:[%s1550 + $0x28] sm:$0xf]
        %v1562 = vld [vmem:[%s1550 + $0x2c] sm:$0xf]
        %v1563 = vld [vmem:[%s1550 + $0x30] sm:$0xf]
        %v1564 = vld [vmem:[%s1550 + $0x34] sm:$0xf]
        %v1565 = vld [vmem:[%s1550 + $0x38] sm:$0xf]
        %v1566 = vld [vmem:[%s1550 + $0x3c] sm:$0xf]
        %v1583 = vunpack.c.l.b16 %v1551
        %v1584 = vunpack.c.l.b16 %v1552
        %v1585 = vunpack.c.l.b16 %v1553
        %v1586 = vunpack.c.l.b16 %v1554
        %v1587 = vunpack.c.l.b16 %v1555
        %v1588 = vunpack.c.l.b16 %v1556
        %v1589 = vunpack.c.l.b16 %v1557
        %v1590 = vunpack.c.l.b16 %v1558
        %v1591 = vunpack.c.l.b16 %v1559
        %v1592 = vunpack.c.l.b16 %v1560
        %v1593 = vunpack.c.l.b16 %v1561
        %v1594 = vunpack.c.l.b16 %v1562
        %v1595 = vunpack.c.l.b16 %v1563
        %v1596 = vunpack.c.l.b16 %v1564
        %v1597 = vunpack.c.l.b16 %v1565
        %v1598 = vunpack.c.l.b16 %v1566
        %v1599 = vpack.c.b16 %v1584, %v1583
        %v1600 = vpack.c.b16 %v1586, %v1585
        %v1601 = vpack.c.b16 %v1588, %v1587
        %v1602 = vpack.c.b16 %v1590, %v1589
        %v1603 = vpack.c.b16 %v1592, %v1591
        %v1604 = vpack.c.b16 %v1594, %v1593
        %v1605 = vpack.c.b16 %v1596, %v1595
        %v1606 = vpack.c.b16 %v1598, %v1597
        %1615 = vmatprep.subr.bf16.mxu0 0
        %1616 = vmatpush1.bf16.msra.mxu0 %v1606
        %1617 = vmatprep.subr.bf16.mxu0 0
        %1618 = vmatpush1.bf16.msra.mxu0 %v1605
        %1619 = vmatprep.subr.bf16.mxu0 0
        %1620 = vmatpush1.bf16.msra.mxu0 %v1604
        %1621 = vmatprep.subr.bf16.mxu0 0
        %1622 = vmatpush1.bf16.msra.mxu0 %v1603
        %1623 = vmatprep.subr.bf16.mxu0 0
        %1624 = vmatpush1.bf16.msra.mxu0 %v1602
        %1625 = vmatprep.subr.bf16.mxu0 0
        %1626 = vmatpush1.bf16.msra.mxu0 %v1601
        %1627 = vmatprep.subr.bf16.mxu0 0
        %1628 = vmatpush1.bf16.msra.mxu0 %v1600
        %1629 = vmatprep.subr.bf16.mxu0 0
        %1630 = vmatpush1.bf16.msra.mxu0 %v1599
        %1631 = vmatprep.subr.bf16.mxu0 0
        %1632 = vmatpush2.bf16.msra.mxu0 0
        %1633 = vmatprep.subr.bf16.mxu0 0
        %1634 = vmatpush2.bf16.msra.mxu0 0
        %1635 = vmatprep.subr.bf16.mxu0 0
        %1636 = vmatpush2.bf16.msra.mxu0 0
        %1637 = vmatprep.subr.bf16.mxu0 0
        %1638 = vmatpush2.bf16.msra.mxu0 0
        %1639 = vmatprep.subr.bf16.mxu0 0
        %1640 = vmatpush2.bf16.msra.mxu0 0
        %1641 = vmatprep.subr.bf16.mxu0 0
        %1642 = vmatpush2.bf16.msra.mxu0 0
        %1643 = vmatprep.subr.bf16.mxu0 0
        %1644 = vmatpush2.bf16.msra.mxu0 0
        %1645 = vmatprep.subr.bf16.mxu0 0
        %1646 = vmatpush2.bf16.msra.mxu0 0
        %1647 = vmatprep.mubr.bf16.mxu0 0
        %1648 = vmatmul.mubr.bf16.gmra.mxu0 %v1546
        %v1649 = vpop.f32.mrf.mxu0
        %v1650 = vadd.f32 0.0, %v1649
        %v1651 = vpop.f32.mrf.mxu0
        %v1652 = vpop.f32.mrf.mxu0
        %v1653 = vadd.f32 0.0, %v1652
        %v1654 = vpop.f32.mrf.mxu0
        %1655 = vmatprep.mubr.bf16.mxu0 0
        %1656 = vmatmul.mubr.bf16.gmra.mxu0 %v1547
        %v1657 = vpop.f32.mrf.mxu0
        %v1658 = vadd.f32 0.0, %v1657
        %v1659 = vpop.f32.mrf.mxu0
        %v1660 = vpop.f32.mrf.mxu0
        %v1661 = vadd.f32 0.0, %v1660
        %v1662 = vpop.f32.mrf.mxu0
        %1663 = vmatprep.mubr.bf16.mxu0 0
        %1664 = vmatmul.mubr.bf16.gmra.mxu0 %v1548
        %v1665 = vpop.f32.mrf.mxu0
        %v1666 = vadd.f32 0.0, %v1665
        %v1667 = vpop.f32.mrf.mxu0
        %v1668 = vpop.f32.mrf.mxu0
        %v1669 = vadd.f32 0.0, %v1668
        %v1670 = vpop.f32.mrf.mxu0
        %1671 = vmatprep.mubr.bf16.mxu0 0
        %1672 = vmatmul.mubr.bf16.gmra.mxu0 %v1549
        %v1673 = vpop.f32.mrf.mxu0
        %v1674 = vadd.f32 0.0, %v1673
        %v1675 = vpop.f32.mrf.mxu0
        %v1676 = vpop.f32.mrf.mxu0
        %v1677 = vadd.f32 0.0, %v1676
        %v1678 = vpop.f32.mrf.mxu0
        %1679 = vdwg.mxu0
        %v1680 = vadd.f32 %v1402, %v1650
        %v1681 = vadd.f32 %v1405, %v1653
        %v1682 = vadd.f32 %v1410, %v1658
        %v1683 = vadd.f32 %v1413, %v1661
        %v1684 = vadd.f32 %v1418, %v1666
        %v1685 = vadd.f32 %v1421, %v1669
        %v1686 = vadd.f32 %v1426, %v1674
        %v1687 = vadd.f32 %v1429, %v1677
        %s1688 = scalar_lea.vmem %s3, 192
        %v1689 = vld [vmem:[%s1688] sm:$0xff]
        %v1690 = vld [vmem:[%s1688 + $0x8] sm:$0xff]
        %v1691 = vld [vmem:[%s1688 + $0x10] sm:$0xff]
        %v1692 = vld [vmem:[%s1688 + $0x18] sm:$0xff]
        %v1693 = vld [vmem:[%s1688 + $0x20] sm:$0xff]
        %v1694 = vld [vmem:[%s1688 + $0x28] sm:$0xff]
        %v1695 = vld [vmem:[%s1688 + $0x30] sm:$0xff]
        %v1696 = vld [vmem:[%s1688 + $0x38] sm:$0xff]
        %v1705 = vunpack.c.l.b16 %v1689
        %v1706 = vunpack.c.h.b16 %v1689
        %v1707 = vunpack.c.l.b16 %v1690
        %v1708 = vunpack.c.h.b16 %v1690
        %v1709 = vunpack.c.l.b16 %v1691
        %v1710 = vunpack.c.h.b16 %v1691
        %v1711 = vunpack.c.l.b16 %v1692
        %v1712 = vunpack.c.h.b16 %v1692
        %v1713 = vunpack.c.l.b16 %v1693
        %v1714 = vunpack.c.h.b16 %v1693
        %v1715 = vunpack.c.l.b16 %v1694
        %v1716 = vunpack.c.h.b16 %v1694
        %v1717 = vunpack.c.l.b16 %v1695
        %v1718 = vunpack.c.h.b16 %v1695
        %v1719 = vunpack.c.l.b16 %v1696
        %v1720 = vunpack.c.h.b16 %v1696
        %v1721 = vpack.c.b16 %v1707, %v1705
        %v1722 = vpack.c.b16 %v1708, %v1706
        %v1723 = vpack.c.b16 %v1711, %v1709
        %v1724 = vpack.c.b16 %v1712, %v1710
        %v1725 = vpack.c.b16 %v1715, %v1713
        %v1726 = vpack.c.b16 %v1716, %v1714
        %v1727 = vpack.c.b16 %v1719, %v1717
        %v1728 = vpack.c.b16 %v1720, %v1718
        %1737 = vmatprep.subr.bf16.mxu0 0
        %1738 = vmatpush1.bf16.msra.mxu0 %v929
        %1739 = vmatprep.subr.bf16.mxu0 0
        %1740 = vmatpush1.bf16.msra.mxu0 %v928
        %1741 = vmatprep.subr.bf16.mxu0 0
        %1742 = vmatpush1.bf16.msra.mxu0 %v927
        %1743 = vmatprep.subr.bf16.mxu0 0
        %1744 = vmatpush1.bf16.msra.mxu0 %v926
        %1745 = vmatprep.subr.bf16.mxu0 0
        %1746 = vmatpush1.bf16.msra.mxu0 %v925
        %1747 = vmatprep.subr.bf16.mxu0 0
        %1748 = vmatpush1.bf16.msra.mxu0 %v924
        %1749 = vmatprep.subr.bf16.mxu0 0
        %1750 = vmatpush1.bf16.msra.mxu0 %v923
        %1751 = vmatprep.subr.bf16.mxu0 0
        %1752 = vmatpush1.bf16.msra.mxu0 %v922
        %1753 = vmatprep.subr.bf16.mxu0 0
        %1754 = vmatpush2.bf16.msra.mxu0 %v937
        %1755 = vmatprep.subr.bf16.mxu0 0
        %1756 = vmatpush2.bf16.msra.mxu0 %v936
        %1757 = vmatprep.subr.bf16.mxu0 0
        %1758 = vmatpush2.bf16.msra.mxu0 %v935
        %1759 = vmatprep.subr.bf16.mxu0 0
        %1760 = vmatpush2.bf16.msra.mxu0 %v934
        %1761 = vmatprep.subr.bf16.mxu0 0
        %1762 = vmatpush2.bf16.msra.mxu0 %v933
        %1763 = vmatprep.subr.bf16.mxu0 0
        %1764 = vmatpush2.bf16.msra.mxu0 %v932
        %1765 = vmatprep.subr.bf16.mxu0 0
        %1766 = vmatpush2.bf16.msra.mxu0 %v931
        %1767 = vmatprep.subr.bf16.mxu0 0
        %1768 = vmatpush2.bf16.msra.mxu0 %v930
        %1769 = vmatprep.mubr.bf16.mxu0 %v1722
        %1770 = vmatmul.mubr.bf16.gmra.mxu0 %v1721
        %v1771 = vpop.f32.mrf.mxu0
        %v1772 = vadd.f32 0.0, %v1771
        %v1773 = vpop.f32.mrf.mxu0
        %v1774 = vpop.f32.mrf.mxu0
        %v1775 = vadd.f32 0.0, %v1774
        %v1776 = vpop.f32.mrf.mxu0
        %1777 = vmatprep.mubr.bf16.mxu0 %v1724
        %1778 = vmatmul.mubr.bf16.gmra.mxu0 %v1723
        %v1779 = vpop.f32.mrf.mxu0
        %v1780 = vadd.f32 0.0, %v1779
        %v1781 = vpop.f32.mrf.mxu0
        %v1782 = vpop.f32.mrf.mxu0
        %v1783 = vadd.f32 0.0, %v1782
        %v1784 = vpop.f32.mrf.mxu0
        %1785 = vmatprep.mubr.bf16.mxu0 %v1726
        %1786 = vmatmul.mubr.bf16.gmra.mxu0 %v1725
        %v1787 = vpop.f32.mrf.mxu0
        %v1788 = vadd.f32 0.0, %v1787
        %v1789 = vpop.f32.mrf.mxu0
        %v1790 = vpop.f32.mrf.mxu0
        %v1791 = vadd.f32 0.0, %v1790
        %v1792 = vpop.f32.mrf.mxu0
        %1793 = vmatprep.mubr.bf16.mxu0 %v1728
        %1794 = vmatmul.mubr.bf16.gmra.mxu0 %v1727
        %v1795 = vpop.f32.mrf.mxu0
        %v1796 = vadd.f32 0.0, %v1795
        %v1797 = vpop.f32.mrf.mxu0
        %v1798 = vpop.f32.mrf.mxu0
        %v1799 = vadd.f32 0.0, %v1798
        %v1800 = vpop.f32.mrf.mxu0
        %1801 = vdwg.mxu0
        %v1802 = vpack.c.bf16 %v1775, %v1772
        %v1803 = vpack.c.bf16 %v1783, %v1780
        %v1804 = vpack.c.bf16 %v1791, %v1788
        %v1805 = vpack.c.bf16 %v1799, %v1796
        %s1806 = scalar_lea.vmem %s4, 192
        %v1807 = vld [vmem:[%s1806] sm:$0xf]
        %v1808 = vld [vmem:[%s1806 + $0x4] sm:$0xf]
        %v1809 = vld [vmem:[%s1806 + $0x8] sm:$0xf]
        %v1810 = vld [vmem:[%s1806 + $0xc] sm:$0xf]
        %v1811 = vld [vmem:[%s1806 + $0x10] sm:$0xf]
        %v1812 = vld [vmem:[%s1806 + $0x14] sm:$0xf]
        %v1813 = vld [vmem:[%s1806 + $0x18] sm:$0xf]
        %v1814 = vld [vmem:[%s1806 + $0x1c] sm:$0xf]
        %v1815 = vld [vmem:[%s1806 + $0x20] sm:$0xf]
        %v1816 = vld [vmem:[%s1806 + $0x24] sm:$0xf]
        %v1817 = vld [vmem:[%s1806 + $0x28] sm:$0xf]
        %v1818 = vld [vmem:[%s1806 + $0x2c] sm:$0xf]
        %v1819 = vld [vmem:[%s1806 + $0x30] sm:$0xf]
        %v1820 = vld [vmem:[%s1806 + $0x34] sm:$0xf]
        %v1821 = vld [vmem:[%s1806 + $0x38] sm:$0xf]
        %v1822 = vld [vmem:[%s1806 + $0x3c] sm:$0xf]
        %v1839 = vunpack.c.l.b16 %v1807
        %v1840 = vunpack.c.l.b16 %v1808
        %v1841 = vunpack.c.l.b16 %v1809
        %v1842 = vunpack.c.l.b16 %v1810
        %v1843 = vunpack.c.l.b16 %v1811
        %v1844 = vunpack.c.l.b16 %v1812
        %v1845 = vunpack.c.l.b16 %v1813
        %v1846 = vunpack.c.l.b16 %v1814
        %v1847 = vunpack.c.l.b16 %v1815
        %v1848 = vunpack.c.l.b16 %v1816
        %v1849 = vunpack.c.l.b16 %v1817
        %v1850 = vunpack.c.l.b16 %v1818
        %v1851 = vunpack.c.l.b16 %v1819
        %v1852 = vunpack.c.l.b16 %v1820
        %v1853 = vunpack.c.l.b16 %v1821
        %v1854 = vunpack.c.l.b16 %v1822
        %v1855 = vpack.c.b16 %v1840, %v1839
        %v1856 = vpack.c.b16 %v1842, %v1841
        %v1857 = vpack.c.b16 %v1844, %v1843
        %v1858 = vpack.c.b16 %v1846, %v1845
        %v1859 = vpack.c.b16 %v1848, %v1847
        %v1860 = vpack.c.b16 %v1850, %v1849
        %v1861 = vpack.c.b16 %v1852, %v1851
        %v1862 = vpack.c.b16 %v1854, %v1853
        %1871 = vmatprep.subr.bf16.mxu0 0
        %1872 = vmatpush1.bf16.msra.mxu0 %v1862
        %1873 = vmatprep.subr.bf16.mxu0 0
        %1874 = vmatpush1.bf16.msra.mxu0 %v1861
        %1875 = vmatprep.subr.bf16.mxu0 0
        %1876 = vmatpush1.bf16.msra.mxu0 %v1860
        %1877 = vmatprep.subr.bf16.mxu0 0
        %1878 = vmatpush1.bf16.msra.mxu0 %v1859
        %1879 = vmatprep.subr.bf16.mxu0 0
        %1880 = vmatpush1.bf16.msra.mxu0 %v1858
        %1881 = vmatprep.subr.bf16.mxu0 0
        %1882 = vmatpush1.bf16.msra.mxu0 %v1857
        %1883 = vmatprep.subr.bf16.mxu0 0
        %1884 = vmatpush1.bf16.msra.mxu0 %v1856
        %1885 = vmatprep.subr.bf16.mxu0 0
        %1886 = vmatpush1.bf16.msra.mxu0 %v1855
        %1887 = vmatprep.subr.bf16.mxu0 0
        %1888 = vmatpush2.bf16.msra.mxu0 0
        %1889 = vmatprep.subr.bf16.mxu0 0
        %1890 = vmatpush2.bf16.msra.mxu0 0
        %1891 = vmatprep.subr.bf16.mxu0 0
        %1892 = vmatpush2.bf16.msra.mxu0 0
        %1893 = vmatprep.subr.bf16.mxu0 0
        %1894 = vmatpush2.bf16.msra.mxu0 0
        %1895 = vmatprep.subr.bf16.mxu0 0
        %1896 = vmatpush2.bf16.msra.mxu0 0
        %1897 = vmatprep.subr.bf16.mxu0 0
        %1898 = vmatpush2.bf16.msra.mxu0 0
        %1899 = vmatprep.subr.bf16.mxu0 0
        %1900 = vmatpush2.bf16.msra.mxu0 0
        %1901 = vmatprep.subr.bf16.mxu0 0
        %1902 = vmatpush2.bf16.msra.mxu0 0
        %1903 = vmatprep.mubr.bf16.mxu0 0
        %1904 = vmatmul.mubr.bf16.gmra.mxu0 %v1802
        %v1905 = vpop.f32.mrf.mxu0
        %v1906 = vadd.f32 0.0, %v1905
        %v1907 = vpop.f32.mrf.mxu0
        %v1908 = vpop.f32.mrf.mxu0
        %v1909 = vadd.f32 0.0, %v1908
        %v1910 = vpop.f32.mrf.mxu0
        %1911 = vmatprep.mubr.bf16.mxu0 0
        %1912 = vmatmul.mubr.bf16.gmra.mxu0 %v1803
        %v1913 = vpop.f32.mrf.mxu0
        %v1914 = vadd.f32 0.0, %v1913
        %v1915 = vpop.f32.mrf.mxu0
        %v1916 = vpop.f32.mrf.mxu0
        %v1917 = vadd.f32 0.0, %v1916
        %v1918 = vpop.f32.mrf.mxu0
        %1919 = vmatprep.mubr.bf16.mxu0 0
        %1920 = vmatmul.mubr.bf16.gmra.mxu0 %v1804
        %v1921 = vpop.f32.mrf.mxu0
        %v1922 = vadd.f32 0.0, %v1921
        %v1923 = vpop.f32.mrf.mxu0
        %v1924 = vpop.f32.mrf.mxu0
        %v1925 = vadd.f32 0.0, %v1924
        %v1926 = vpop.f32.mrf.mxu0
        %1927 = vmatprep.mubr.bf16.mxu0 0
        %1928 = vmatmul.mubr.bf16.gmra.mxu0 %v1805
        %v1929 = vpop.f32.mrf.mxu0
        %v1930 = vadd.f32 0.0, %v1929
        %v1931 = vpop.f32.mrf.mxu0
        %v1932 = vpop.f32.mrf.mxu0
        %v1933 = vadd.f32 0.0, %v1932
        %v1934 = vpop.f32.mrf.mxu0
        %1935 = vdwg.mxu0
        %v1936 = vadd.f32 %v1680, %v1906
        %v1937 = vadd.f32 %v1681, %v1909
        %v1938 = vadd.f32 %v1682, %v1914
        %v1939 = vadd.f32 %v1683, %v1917
        %v1940 = vadd.f32 %v1684, %v1922
        %v1941 = vadd.f32 %v1685, %v1925
        %v1942 = vadd.f32 %v1686, %v1930
        %v1943 = vadd.f32 %v1687, %v1933
        %s1944 = scalar_lea.vmem %s3, 256
        %v1945 = vld [vmem:[%s1944] sm:$0xff]
        %v1946 = vld [vmem:[%s1944 + $0x8] sm:$0xff]
        %v1947 = vld [vmem:[%s1944 + $0x10] sm:$0xff]
        %v1948 = vld [vmem:[%s1944 + $0x18] sm:$0xff]
        %v1949 = vld [vmem:[%s1944 + $0x20] sm:$0xff]
        %v1950 = vld [vmem:[%s1944 + $0x28] sm:$0xff]
        %v1951 = vld [vmem:[%s1944 + $0x30] sm:$0xff]
        %v1952 = vld [vmem:[%s1944 + $0x38] sm:$0xff]
        %v1961 = vunpack.c.l.b16 %v1945
        %v1962 = vunpack.c.h.b16 %v1945
        %v1963 = vunpack.c.l.b16 %v1946
        %v1964 = vunpack.c.h.b16 %v1946
        %v1965 = vunpack.c.l.b16 %v1947
        %v1966 = vunpack.c.h.b16 %v1947
        %v1967 = vunpack.c.l.b16 %v1948
        %v1968 = vunpack.c.h.b16 %v1948
        %v1969 = vunpack.c.l.b16 %v1949
        %v1970 = vunpack.c.h.b16 %v1949
        %v1971 = vunpack.c.l.b16 %v1950
        %v1972 = vunpack.c.h.b16 %v1950
        %v1973 = vunpack.c.l.b16 %v1951
        %v1974 = vunpack.c.h.b16 %v1951
        %v1975 = vunpack.c.l.b16 %v1952
        %v1976 = vunpack.c.h.b16 %v1952
        %v1977 = vpack.c.b16 %v1963, %v1961
        %v1978 = vpack.c.b16 %v1964, %v1962
        %v1979 = vpack.c.b16 %v1967, %v1965
        %v1980 = vpack.c.b16 %v1968, %v1966
        %v1981 = vpack.c.b16 %v1971, %v1969
        %v1982 = vpack.c.b16 %v1972, %v1970
        %v1983 = vpack.c.b16 %v1975, %v1973
        %v1984 = vpack.c.b16 %v1976, %v1974
        %1993 = vmatprep.subr.bf16.mxu0 0
        %1994 = vmatpush1.bf16.msra.mxu0 %v929
        %1995 = vmatprep.subr.bf16.mxu0 0
        %1996 = vmatpush1.bf16.msra.mxu0 %v928
        %1997 = vmatprep.subr.bf16.mxu0 0
        %1998 = vmatpush1.bf16.msra.mxu0 %v927
        %1999 = vmatprep.subr.bf16.mxu0 0
        %2000 = vmatpush1.bf16.msra.mxu0 %v926
        %2001 = vmatprep.subr.bf16.mxu0 0
        %2002 = vmatpush1.bf16.msra.mxu0 %v925
        %2003 = vmatprep.subr.bf16.mxu0 0
        %2004 = vmatpush1.bf16.msra.mxu0 %v924
        %2005 = vmatprep.subr.bf16.mxu0 0
        %2006 = vmatpush1.bf16.msra.mxu0 %v923
        %2007 = vmatprep.subr.bf16.mxu0 0
        %2008 = vmatpush1.bf16.msra.mxu0 %v922
        %2009 = vmatprep.subr.bf16.mxu0 0
        %2010 = vmatpush2.bf16.msra.mxu0 %v937
        %2011 = vmatprep.subr.bf16.mxu0 0
        %2012 = vmatpush2.bf16.msra.mxu0 %v936
        %2013 = vmatprep.subr.bf16.mxu0 0
        %2014 = vmatpush2.bf16.msra.mxu0 %v935
        %2015 = vmatprep.subr.bf16.mxu0 0
        %2016 = vmatpush2.bf16.msra.mxu0 %v934
        %2017 = vmatprep.subr.bf16.mxu0 0
        %2018 = vmatpush2.bf16.msra.mxu0 %v933
        %2019 = vmatprep.subr.bf16.mxu0 0
        %2020 = vmatpush2.bf16.msra.mxu0 %v932
        %2021 = vmatprep.subr.bf16.mxu0 0
        %2022 = vmatpush2.bf16.msra.mxu0 %v931
        %2023 = vmatprep.subr.bf16.mxu0 0
        %2024 = vmatpush2.bf16.msra.mxu0 %v930
        %2025 = vmatprep.mubr.bf16.mxu0 %v1978
        %2026 = vmatmul.mubr.bf16.gmra.mxu0 %v1977
        %v2027 = vpop.f32.mrf.mxu0
        %v2028 = vadd.f32 0.0, %v2027
        %v2029 = vpop.f32.mrf.mxu0
        %v2030 = vpop.f32.mrf.mxu0
        %v2031 = vadd.f32 0.0, %v2030
        %v2032 = vpop.f32.mrf.mxu0
        %2033 = vmatprep.mubr.bf16.mxu0 %v1980
        %2034 = vmatmul.mubr.bf16.gmra.mxu0 %v1979
        %v2035 = vpop.f32.mrf.mxu0
        %v2036 = vadd.f32 0.0, %v2035
        %v2037 = vpop.f32.mrf.mxu0
        %v2038 = vpop.f32.mrf.mxu0
        %v2039 = vadd.f32 0.0, %v2038
        %v2040 = vpop.f32.mrf.mxu0
        %2041 = vmatprep.mubr.bf16.mxu0 %v1982
        %2042 = vmatmul.mubr.bf16.gmra.mxu0 %v1981
        %v2043 = vpop.f32.mrf.mxu0
        %v2044 = vadd.f32 0.0, %v2043
        %v2045 = vpop.f32.mrf.mxu0
        %v2046 = vpop.f32.mrf.mxu0
        %v2047 = vadd.f32 0.0, %v2046
        %v2048 = vpop.f32.mrf.mxu0
        %2049 = vmatprep.mubr.bf16.mxu0 %v1984
        %2050 = vmatmul.mubr.bf16.gmra.mxu0 %v1983
        %v2051 = vpop.f32.mrf.mxu0
        %v2052 = vadd.f32 0.0, %v2051
        %v2053 = vpop.f32.mrf.mxu0
        %v2054 = vpop.f32.mrf.mxu0
        %v2055 = vadd.f32 0.0, %v2054
        %v2056 = vpop.f32.mrf.mxu0
        %2057 = vdwg.mxu0
        %v2058 = vpack.c.bf16 %v2031, %v2028
        %v2059 = vpack.c.bf16 %v2039, %v2036
        %v2060 = vpack.c.bf16 %v2047, %v2044
        %v2061 = vpack.c.bf16 %v2055, %v2052
        %s2062 = scalar_lea.vmem %s4, 256
        %v2063 = vld [vmem:[%s2062] sm:$0xf]
        %v2064 = vld [vmem:[%s2062 + $0x4] sm:$0xf]
        %v2065 = vld [vmem:[%s2062 + $0x8] sm:$0xf]
        %v2066 = vld [vmem:[%s2062 + $0xc] sm:$0xf]
        %v2067 = vld [vmem:[%s2062 + $0x10] sm:$0xf]
        %v2068 = vld [vmem:[%s2062 + $0x14] sm:$0xf]
        %v2069 = vld [vmem:[%s2062 + $0x18] sm:$0xf]
        %v2070 = vld [vmem:[%s2062 + $0x1c] sm:$0xf]
        %v2071 = vld [vmem:[%s2062 + $0x20] sm:$0xf]
        %v2072 = vld [vmem:[%s2062 + $0x24] sm:$0xf]
        %v2073 = vld [vmem:[%s2062 + $0x28] sm:$0xf]
        %v2074 = vld [vmem:[%s2062 + $0x2c] sm:$0xf]
        %v2075 = vld [vmem:[%s2062 + $0x30] sm:$0xf]
        %v2076 = vld [vmem:[%s2062 + $0x34] sm:$0xf]
        %v2077 = vld [vmem:[%s2062 + $0x38] sm:$0xf]
        %v2078 = vld [vmem:[%s2062 + $0x3c] sm:$0xf]
        %v2095 = vunpack.c.l.b16 %v2063
        %v2096 = vunpack.c.l.b16 %v2064
        %v2097 = vunpack.c.l.b16 %v2065
        %v2098 = vunpack.c.l.b16 %v2066
        %v2099 = vunpack.c.l.b16 %v2067
        %v2100 = vunpack.c.l.b16 %v2068
        %v2101 = vunpack.c.l.b16 %v2069
        %v2102 = vunpack.c.l.b16 %v2070
        %v2103 = vunpack.c.l.b16 %v2071
        %v2104 = vunpack.c.l.b16 %v2072
        %v2105 = vunpack.c.l.b16 %v2073
        %v2106 = vunpack.c.l.b16 %v2074
        %v2107 = vunpack.c.l.b16 %v2075
        %v2108 = vunpack.c.l.b16 %v2076
        %v2109 = vunpack.c.l.b16 %v2077
        %v2110 = vunpack.c.l.b16 %v2078
        %v2111 = vpack.c.b16 %v2096, %v2095
        %v2112 = vpack.c.b16 %v2098, %v2097
        %v2113 = vpack.c.b16 %v2100, %v2099
        %v2114 = vpack.c.b16 %v2102, %v2101
        %v2115 = vpack.c.b16 %v2104, %v2103
        %v2116 = vpack.c.b16 %v2106, %v2105
        %v2117 = vpack.c.b16 %v2108, %v2107
        %v2118 = vpack.c.b16 %v2110, %v2109
        %2127 = vmatprep.subr.bf16.mxu0 0
        %2128 = vmatpush1.bf16.msra.mxu0 %v2118
        %2129 = vmatprep.subr.bf16.mxu0 0
        %2130 = vmatpush1.bf16.msra.mxu0 %v2117
        %2131 = vmatprep.subr.bf16.mxu0 0
        %2132 = vmatpush1.bf16.msra.mxu0 %v2116
        %2133 = vmatprep.subr.bf16.mxu0 0
        %2134 = vmatpush1.bf16.msra.mxu0 %v2115
        %2135 = vmatprep.subr.bf16.mxu0 0
        %2136 = vmatpush1.bf16.msra.mxu0 %v2114
        %2137 = vmatprep.subr.bf16.mxu0 0
        %2138 = vmatpush1.bf16.msra.mxu0 %v2113
        %2139 = vmatprep.subr.bf16.mxu0 0
        %2140 = vmatpush1.bf16.msra.mxu0 %v2112
        %2141 = vmatprep.subr.bf16.mxu0 0
        %2142 = vmatpush1.bf16.msra.mxu0 %v2111
        %2143 = vmatprep.subr.bf16.mxu0 0
        %2144 = vmatpush2.bf16.msra.mxu0 0
        %2145 = vmatprep.subr.bf16.mxu0 0
        %2146 = vmatpush2.bf16.msra.mxu0 0
        %2147 = vmatprep.subr.bf16.mxu0 0
        %2148 = vmatpush2.bf16.msra.mxu0 0
        %2149 = vmatprep.subr.bf16.mxu0 0
        %2150 = vmatpush2.bf16.msra.mxu0 0
        %2151 = vmatprep.subr.bf16.mxu0 0
        %2152 = vmatpush2.bf16.msra.mxu0 0
        %2153 = vmatprep.subr.bf16.mxu0 0
        %2154 = vmatpush2.bf16.msra.mxu0 0
        %2155 = vmatprep.subr.bf16.mxu0 0
        %2156 = vmatpush2.bf16.msra.mxu0 0
        %2157 = vmatprep.subr.bf16.mxu0 0
        %2158 = vmatpush2.bf16.msra.mxu0 0
        %2159 = vmatprep.mubr.bf16.mxu0 0
        %2160 = vmatmul.mubr.bf16.gmra.mxu0 %v2058
        %v2161 = vpop.f32.mrf.mxu0
        %v2162 = vadd.f32 0.0, %v2161
        %v2163 = vpop.f32.mrf.mxu0
        %v2164 = vpop.f32.mrf.mxu0
        %v2165 = vadd.f32 0.0, %v2164
        %v2166 = vpop.f32.mrf.mxu0
        %2167 = vmatprep.mubr.bf16.mxu0 0
        %2168 = vmatmul.mubr.bf16.gmra.mxu0 %v2059
        %v2169 = vpop.f32.mrf.mxu0
        %v2170 = vadd.f32 0.0, %v2169
        %v2171 = vpop.f32.mrf.mxu0
        %v2172 = vpop.f32.mrf.mxu0
        %v2173 = vadd.f32 0.0, %v2172
        %v2174 = vpop.f32.mrf.mxu0
        %2175 = vmatprep.mubr.bf16.mxu0 0
        %2176 = vmatmul.mubr.bf16.gmra.mxu0 %v2060
        %v2177 = vpop.f32.mrf.mxu0
        %v2178 = vadd.f32 0.0, %v2177
        %v2179 = vpop.f32.mrf.mxu0
        %v2180 = vpop.f32.mrf.mxu0
        %v2181 = vadd.f32 0.0, %v2180
        %v2182 = vpop.f32.mrf.mxu0
        %2183 = vmatprep.mubr.bf16.mxu0 0
        %2184 = vmatmul.mubr.bf16.gmra.mxu0 %v2061
        %v2185 = vpop.f32.mrf.mxu0
        %v2186 = vadd.f32 0.0, %v2185
        %v2187 = vpop.f32.mrf.mxu0
        %v2188 = vpop.f32.mrf.mxu0
        %v2189 = vadd.f32 0.0, %v2188
        %v2190 = vpop.f32.mrf.mxu0
        %2191 = vdwg.mxu0
        %v2192 = vadd.f32 %v1936, %v2162
        %v2193 = vadd.f32 %v1937, %v2165
        %v2194 = vadd.f32 %v1938, %v2170
        %v2195 = vadd.f32 %v1939, %v2173
        %v2196 = vadd.f32 %v1940, %v2178
        %v2197 = vadd.f32 %v1941, %v2181
        %v2198 = vadd.f32 %v1942, %v2186
        %v2199 = vadd.f32 %v1943, %v2189
        %s2200 = scalar_lea.vmem %s3, 320
        %v2201 = vld [vmem:[%s2200] sm:$0xff]
        %v2202 = vld [vmem:[%s2200 + $0x8] sm:$0xff]
        %v2203 = vld [vmem:[%s2200 + $0x10] sm:$0xff]
        %v2204 = vld [vmem:[%s2200 + $0x18] sm:$0xff]
        %v2205 = vld [vmem:[%s2200 + $0x20] sm:$0xff]
        %v2206 = vld [vmem:[%s2200 + $0x28] sm:$0xff]
        %v2207 = vld [vmem:[%s2200 + $0x30] sm:$0xff]
        %v2208 = vld [vmem:[%s2200 + $0x38] sm:$0xff]
        %v2217 = vunpack.c.l.b16 %v2201
        %v2218 = vunpack.c.h.b16 %v2201
        %v2219 = vunpack.c.l.b16 %v2202
        %v2220 = vunpack.c.h.b16 %v2202
        %v2221 = vunpack.c.l.b16 %v2203
        %v2222 = vunpack.c.h.b16 %v2203
        %v2223 = vunpack.c.l.b16 %v2204
        %v2224 = vunpack.c.h.b16 %v2204
        %v2225 = vunpack.c.l.b16 %v2205
        %v2226 = vunpack.c.h.b16 %v2205
        %v2227 = vunpack.c.l.b16 %v2206
        %v2228 = vunpack.c.h.b16 %v2206
        %v2229 = vunpack.c.l.b16 %v2207
        %v2230 = vunpack.c.h.b16 %v2207
        %v2231 = vunpack.c.l.b16 %v2208
        %v2232 = vunpack.c.h.b16 %v2208
        %v2233 = vpack.c.b16 %v2219, %v2217
        %v2234 = vpack.c.b16 %v2220, %v2218
        %v2235 = vpack.c.b16 %v2223, %v2221
        %v2236 = vpack.c.b16 %v2224, %v2222
        %v2237 = vpack.c.b16 %v2227, %v2225
        %v2238 = vpack.c.b16 %v2228, %v2226
        %v2239 = vpack.c.b16 %v2231, %v2229
        %v2240 = vpack.c.b16 %v2232, %v2230
        %2249 = vmatprep.subr.bf16.mxu0 0
        %2250 = vmatpush1.bf16.msra.mxu0 %v929
        %2251 = vmatprep.subr.bf16.mxu0 0
        %2252 = vmatpush1.bf16.msra.mxu0 %v928
        %2253 = vmatprep.subr.bf16.mxu0 0
        %2254 = vmatpush1.bf16.msra.mxu0 %v927
        %2255 = vmatprep.subr.bf16.mxu0 0
        %2256 = vmatpush1.bf16.msra.mxu0 %v926
        %2257 = vmatprep.subr.bf16.mxu0 0
        %2258 = vmatpush1.bf16.msra.mxu0 %v925
        %2259 = vmatprep.subr.bf16.mxu0 0
        %2260 = vmatpush1.bf16.msra.mxu0 %v924
        %2261 = vmatprep.subr.bf16.mxu0 0
        %2262 = vmatpush1.bf16.msra.mxu0 %v923
        %2263 = vmatprep.subr.bf16.mxu0 0
        %2264 = vmatpush1.bf16.msra.mxu0 %v922
        %2265 = vmatprep.subr.bf16.mxu0 0
        %2266 = vmatpush2.bf16.msra.mxu0 %v937
        %2267 = vmatprep.subr.bf16.mxu0 0
        %2268 = vmatpush2.bf16.msra.mxu0 %v936
        %2269 = vmatprep.subr.bf16.mxu0 0
        %2270 = vmatpush2.bf16.msra.mxu0 %v935
        %2271 = vmatprep.subr.bf16.mxu0 0
        %2272 = vmatpush2.bf16.msra.mxu0 %v934
        %2273 = vmatprep.subr.bf16.mxu0 0
        %2274 = vmatpush2.bf16.msra.mxu0 %v933
        %2275 = vmatprep.subr.bf16.mxu0 0
        %2276 = vmatpush2.bf16.msra.mxu0 %v932
        %2277 = vmatprep.subr.bf16.mxu0 0
        %2278 = vmatpush2.bf16.msra.mxu0 %v931
        %2279 = vmatprep.subr.bf16.mxu0 0
        %2280 = vmatpush2.bf16.msra.mxu0 %v930
        %2281 = vmatprep.mubr.bf16.mxu0 %v2234
        %2282 = vmatmul.mubr.bf16.gmra.mxu0 %v2233
        %v2283 = vpop.f32.mrf.mxu0
        %v2284 = vadd.f32 0.0, %v2283
        %v2285 = vpop.f32.mrf.mxu0
        %v2286 = vpop.f32.mrf.mxu0
        %v2287 = vadd.f32 0.0, %v2286
        %v2288 = vpop.f32.mrf.mxu0
        %2289 = vmatprep.mubr.bf16.mxu0 %v2236
        %2290 = vmatmul.mubr.bf16.gmra.mxu0 %v2235
        %v2291 = vpop.f32.mrf.mxu0
        %v2292 = vadd.f32 0.0, %v2291
        %v2293 = vpop.f32.mrf.mxu0
        %v2294 = vpop.f32.mrf.mxu0
        %v2295 = vadd.f32 0.0, %v2294
        %v2296 = vpop.f32.mrf.mxu0
        %2297 = vmatprep.mubr.bf16.mxu0 %v2238
        %2298 = vmatmul.mubr.bf16.gmra.mxu0 %v2237
        %v2299 = vpop.f32.mrf.mxu0
        %v2300 = vadd.f32 0.0, %v2299
        %v2301 = vpop.f32.mrf.mxu0
        %v2302 = vpop.f32.mrf.mxu0
        %v2303 = vadd.f32 0.0, %v2302
        %v2304 = vpop.f32.mrf.mxu0
        %2305 = vmatprep.mubr.bf16.mxu0 %v2240
        %2306 = vmatmul.mubr.bf16.gmra.mxu0 %v2239
        %v2307 = vpop.f32.mrf.mxu0
        %v2308 = vadd.f32 0.0, %v2307
        %v2309 = vpop.f32.mrf.mxu0
        %v2310 = vpop.f32.mrf.mxu0
        %v2311 = vadd.f32 0.0, %v2310
        %v2312 = vpop.f32.mrf.mxu0
        %2313 = vdwg.mxu0
        %v2314 = vpack.c.bf16 %v2287, %v2284
        %v2315 = vpack.c.bf16 %v2295, %v2292
        %v2316 = vpack.c.bf16 %v2303, %v2300
        %v2317 = vpack.c.bf16 %v2311, %v2308
        %s2318 = scalar_lea.vmem %s4, 320
        %v2319 = vld [vmem:[%s2318] sm:$0xf]
        %v2320 = vld [vmem:[%s2318 + $0x4] sm:$0xf]
        %v2321 = vld [vmem:[%s2318 + $0x8] sm:$0xf]
        %v2322 = vld [vmem:[%s2318 + $0xc] sm:$0xf]
        %v2323 = vld [vmem:[%s2318 + $0x10] sm:$0xf]
        %v2324 = vld [vmem:[%s2318 + $0x14] sm:$0xf]
        %v2325 = vld [vmem:[%s2318 + $0x18] sm:$0xf]
        %v2326 = vld [vmem:[%s2318 + $0x1c] sm:$0xf]
        %v2327 = vld [vmem:[%s2318 + $0x20] sm:$0xf]
        %v2328 = vld [vmem:[%s2318 + $0x24] sm:$0xf]
        %v2329 = vld [vmem:[%s2318 + $0x28] sm:$0xf]
        %v2330 = vld [vmem:[%s2318 + $0x2c] sm:$0xf]
        %v2331 = vld [vmem:[%s2318 + $0x30] sm:$0xf]
        %v2332 = vld [vmem:[%s2318 + $0x34] sm:$0xf]
        %v2333 = vld [vmem:[%s2318 + $0x38] sm:$0xf]
        %v2334 = vld [vmem:[%s2318 + $0x3c] sm:$0xf]
        %v2351 = vunpack.c.l.b16 %v2319
        %v2352 = vunpack.c.l.b16 %v2320
        %v2353 = vunpack.c.l.b16 %v2321
        %v2354 = vunpack.c.l.b16 %v2322
        %v2355 = vunpack.c.l.b16 %v2323
        %v2356 = vunpack.c.l.b16 %v2324
        %v2357 = vunpack.c.l.b16 %v2325
        %v2358 = vunpack.c.l.b16 %v2326
        %v2359 = vunpack.c.l.b16 %v2327
        %v2360 = vunpack.c.l.b16 %v2328
        %v2361 = vunpack.c.l.b16 %v2329
        %v2362 = vunpack.c.l.b16 %v2330
        %v2363 = vunpack.c.l.b16 %v2331
        %v2364 = vunpack.c.l.b16 %v2332
        %v2365 = vunpack.c.l.b16 %v2333
        %v2366 = vunpack.c.l.b16 %v2334
        %v2367 = vpack.c.b16 %v2352, %v2351
        %v2368 = vpack.c.b16 %v2354, %v2353
        %v2369 = vpack.c.b16 %v2356, %v2355
        %v2370 = vpack.c.b16 %v2358, %v2357
        %v2371 = vpack.c.b16 %v2360, %v2359
        %v2372 = vpack.c.b16 %v2362, %v2361
        %v2373 = vpack.c.b16 %v2364, %v2363
        %v2374 = vpack.c.b16 %v2366, %v2365
        %2383 = vmatprep.subr.bf16.mxu0 0
        %2384 = vmatpush1.bf16.msra.mxu0 %v2374
        %2385 = vmatprep.subr.bf16.mxu0 0
        %2386 = vmatpush1.bf16.msra.mxu0 %v2373
        %2387 = vmatprep.subr.bf16.mxu0 0
        %2388 = vmatpush1.bf16.msra.mxu0 %v2372
        %2389 = vmatprep.subr.bf16.mxu0 0
        %2390 = vmatpush1.bf16.msra.mxu0 %v2371
        %2391 = vmatprep.subr.bf16.mxu0 0
        %2392 = vmatpush1.bf16.msra.mxu0 %v2370
        %2393 = vmatprep.subr.bf16.mxu0 0
        %2394 = vmatpush1.bf16.msra.mxu0 %v2369
        %2395 = vmatprep.subr.bf16.mxu0 0
        %2396 = vmatpush1.bf16.msra.mxu0 %v2368
        %2397 = vmatprep.subr.bf16.mxu0 0
        %2398 = vmatpush1.bf16.msra.mxu0 %v2367
        %2399 = vmatprep.subr.bf16.mxu0 0
        %2400 = vmatpush2.bf16.msra.mxu0 0
        %2401 = vmatprep.subr.bf16.mxu0 0
        %2402 = vmatpush2.bf16.msra.mxu0 0
        %2403 = vmatprep.subr.bf16.mxu0 0
        %2404 = vmatpush2.bf16.msra.mxu0 0
        %2405 = vmatprep.subr.bf16.mxu0 0
        %2406 = vmatpush2.bf16.msra.mxu0 0
        %2407 = vmatprep.subr.bf16.mxu0 0
        %2408 = vmatpush2.bf16.msra.mxu0 0
        %2409 = vmatprep.subr.bf16.mxu0 0
        %2410 = vmatpush2.bf16.msra.mxu0 0
        %2411 = vmatprep.subr.bf16.mxu0 0
        %2412 = vmatpush2.bf16.msra.mxu0 0
        %2413 = vmatprep.subr.bf16.mxu0 0
        %2414 = vmatpush2.bf16.msra.mxu0 0
        %2415 = vmatprep.mubr.bf16.mxu0 0
        %2416 = vmatmul.mubr.bf16.gmra.mxu0 %v2314
        %v2417 = vpop.f32.mrf.mxu0
        %v2418 = vadd.f32 0.0, %v2417
        %v2419 = vpop.f32.mrf.mxu0
        %v2420 = vpop.f32.mrf.mxu0
        %v2421 = vadd.f32 0.0, %v2420
        %v2422 = vpop.f32.mrf.mxu0
        %2423 = vmatprep.mubr.bf16.mxu0 0
        %2424 = vmatmul.mubr.bf16.gmra.mxu0 %v2315
        %v2425 = vpop.f32.mrf.mxu0
        %v2426 = vadd.f32 0.0, %v2425
        %v2427 = vpop.f32.mrf.mxu0
        %v2428 = vpop.f32.mrf.mxu0
        %v2429 = vadd.f32 0.0, %v2428
        %v2430 = vpop.f32.mrf.mxu0
        %2431 = vmatprep.mubr.bf16.mxu0 0
        %2432 = vmatmul.mubr.bf16.gmra.mxu0 %v2316
        %v2433 = vpop.f32.mrf.mxu0
        %v2434 = vadd.f32 0.0, %v2433
        %v2435 = vpop.f32.mrf.mxu0
        %v2436 = vpop.f32.mrf.mxu0
        %v2437 = vadd.f32 0.0, %v2436
        %v2438 = vpop.f32.mrf.mxu0
        %2439 = vmatprep.mubr.bf16.mxu0 0
        %2440 = vmatmul.mubr.bf16.gmra.mxu0 %v2317
        %v2441 = vpop.f32.mrf.mxu0
        %v2442 = vadd.f32 0.0, %v2441
        %v2443 = vpop.f32.mrf.mxu0
        %v2444 = vpop.f32.mrf.mxu0
        %v2445 = vadd.f32 0.0, %v2444
        %v2446 = vpop.f32.mrf.mxu0
        %2447 = vdwg.mxu0
        %v2448 = vadd.f32 %v2192, %v2418
        %v2449 = vadd.f32 %v2193, %v2421
        %v2450 = vadd.f32 %v2194, %v2426
        %v2451 = vadd.f32 %v2195, %v2429
        %v2452 = vadd.f32 %v2196, %v2434
        %v2453 = vadd.f32 %v2197, %v2437
        %v2454 = vadd.f32 %v2198, %v2442
        %v2455 = vadd.f32 %v2199, %v2445
        %s2456 = scalar_lea.vmem %s3, 384
        %v2457 = vld [vmem:[%s2456] sm:$0xff]
        %v2458 = vld [vmem:[%s2456 + $0x8] sm:$0xff]
        %v2459 = vld [vmem:[%s2456 + $0x10] sm:$0xff]
        %v2460 = vld [vmem:[%s2456 + $0x18] sm:$0xff]
        %v2461 = vld [vmem:[%s2456 + $0x20] sm:$0xff]
        %v2462 = vld [vmem:[%s2456 + $0x28] sm:$0xff]
        %v2463 = vld [vmem:[%s2456 + $0x30] sm:$0xff]
        %v2464 = vld [vmem:[%s2456 + $0x38] sm:$0xff]
        %v2473 = vunpack.c.l.b16 %v2457
        %v2474 = vunpack.c.h.b16 %v2457
        %v2475 = vunpack.c.l.b16 %v2458
        %v2476 = vunpack.c.h.b16 %v2458
        %v2477 = vunpack.c.l.b16 %v2459
        %v2478 = vunpack.c.h.b16 %v2459
        %v2479 = vunpack.c.l.b16 %v2460
        %v2480 = vunpack.c.h.b16 %v2460
        %v2481 = vunpack.c.l.b16 %v2461
        %v2482 = vunpack.c.h.b16 %v2461
        %v2483 = vunpack.c.l.b16 %v2462
        %v2484 = vunpack.c.h.b16 %v2462
        %v2485 = vunpack.c.l.b16 %v2463
        %v2486 = vunpack.c.h.b16 %v2463
        %v2487 = vunpack.c.l.b16 %v2464
        %v2488 = vunpack.c.h.b16 %v2464
        %v2489 = vpack.c.b16 %v2475, %v2473
        %v2490 = vpack.c.b16 %v2476, %v2474
        %v2491 = vpack.c.b16 %v2479, %v2477
        %v2492 = vpack.c.b16 %v2480, %v2478
        %v2493 = vpack.c.b16 %v2483, %v2481
        %v2494 = vpack.c.b16 %v2484, %v2482
        %v2495 = vpack.c.b16 %v2487, %v2485
        %v2496 = vpack.c.b16 %v2488, %v2486
        %2505 = vmatprep.subr.bf16.mxu0 0
        %2506 = vmatpush1.bf16.msra.mxu0 %v929
        %2507 = vmatprep.subr.bf16.mxu0 0
        %2508 = vmatpush1.bf16.msra.mxu0 %v928
        %2509 = vmatprep.subr.bf16.mxu0 0
        %2510 = vmatpush1.bf16.msra.mxu0 %v927
        %2511 = vmatprep.subr.bf16.mxu0 0
        %2512 = vmatpush1.bf16.msra.mxu0 %v926
        %2513 = vmatprep.subr.bf16.mxu0 0
        %2514 = vmatpush1.bf16.msra.mxu0 %v925
        %2515 = vmatprep.subr.bf16.mxu0 0
        %2516 = vmatpush1.bf16.msra.mxu0 %v924
        %2517 = vmatprep.subr.bf16.mxu0 0
        %2518 = vmatpush1.bf16.msra.mxu0 %v923
        %2519 = vmatprep.subr.bf16.mxu0 0
        %2520 = vmatpush1.bf16.msra.mxu0 %v922
        %2521 = vmatprep.subr.bf16.mxu0 0
        %2522 = vmatpush2.bf16.msra.mxu0 %v937
        %2523 = vmatprep.subr.bf16.mxu0 0
        %2524 = vmatpush2.bf16.msra.mxu0 %v936
        %2525 = vmatprep.subr.bf16.mxu0 0
        %2526 = vmatpush2.bf16.msra.mxu0 %v935
        %2527 = vmatprep.subr.bf16.mxu0 0
        %2528 = vmatpush2.bf16.msra.mxu0 %v934
        %2529 = vmatprep.subr.bf16.mxu0 0
        %2530 = vmatpush2.bf16.msra.mxu0 %v933
        %2531 = vmatprep.subr.bf16.mxu0 0
        %2532 = vmatpush2.bf16.msra.mxu0 %v932
        %2533 = vmatprep.subr.bf16.mxu0 0
        %2534 = vmatpush2.bf16.msra.mxu0 %v931
        %2535 = vmatprep.subr.bf16.mxu0 0
        %2536 = vmatpush2.bf16.msra.mxu0 %v930
        %2537 = vmatprep.mubr.bf16.mxu0 %v2490
        %2538 = vmatmul.mubr.bf16.gmra.mxu0 %v2489
        %v2539 = vpop.f32.mrf.mxu0
        %v2540 = vadd.f32 0.0, %v2539
        %v2541 = vpop.f32.mrf.mxu0
        %v2542 = vpop.f32.mrf.mxu0
        %v2543 = vadd.f32 0.0, %v2542
        %v2544 = vpop.f32.mrf.mxu0
        %2545 = vmatprep.mubr.bf16.mxu0 %v2492
        %2546 = vmatmul.mubr.bf16.gmra.mxu0 %v2491
        %v2547 = vpop.f32.mrf.mxu0
        %v2548 = vadd.f32 0.0, %v2547
        %v2549 = vpop.f32.mrf.mxu0
        %v2550 = vpop.f32.mrf.mxu0
        %v2551 = vadd.f32 0.0, %v2550
        %v2552 = vpop.f32.mrf.mxu0
        %2553 = vmatprep.mubr.bf16.mxu0 %v2494
        %2554 = vmatmul.mubr.bf16.gmra.mxu0 %v2493
        %v2555 = vpop.f32.mrf.mxu0
        %v2556 = vadd.f32 0.0, %v2555
        %v2557 = vpop.f32.mrf.mxu0
        %v2558 = vpop.f32.mrf.mxu0
        %v2559 = vadd.f32 0.0, %v2558
        %v2560 = vpop.f32.mrf.mxu0
        %2561 = vmatprep.mubr.bf16.mxu0 %v2496
        %2562 = vmatmul.mubr.bf16.gmra.mxu0 %v2495
        %v2563 = vpop.f32.mrf.mxu0
        %v2564 = vadd.f32 0.0, %v2563
        %v2565 = vpop.f32.mrf.mxu0
        %v2566 = vpop.f32.mrf.mxu0
        %v2567 = vadd.f32 0.0, %v2566
        %v2568 = vpop.f32.mrf.mxu0
        %2569 = vdwg.mxu0
        %v2570 = vpack.c.bf16 %v2543, %v2540
        %v2571 = vpack.c.bf16 %v2551, %v2548
        %v2572 = vpack.c.bf16 %v2559, %v2556
        %v2573 = vpack.c.bf16 %v2567, %v2564
        %s2574 = scalar_lea.vmem %s4, 384
        %v2575 = vld [vmem:[%s2574] sm:$0xf]
        %v2576 = vld [vmem:[%s2574 + $0x4] sm:$0xf]
        %v2577 = vld [vmem:[%s2574 + $0x8] sm:$0xf]
        %v2578 = vld [vmem:[%s2574 + $0xc] sm:$0xf]
        %v2579 = vld [vmem:[%s2574 + $0x10] sm:$0xf]
        %v2580 = vld [vmem:[%s2574 + $0x14] sm:$0xf]
        %v2581 = vld [vmem:[%s2574 + $0x18] sm:$0xf]
        %v2582 = vld [vmem:[%s2574 + $0x1c] sm:$0xf]
        %v2583 = vld [vmem:[%s2574 + $0x20] sm:$0xf]
        %v2584 = vld [vmem:[%s2574 + $0x24] sm:$0xf]
        %v2585 = vld [vmem:[%s2574 + $0x28] sm:$0xf]
        %v2586 = vld [vmem:[%s2574 + $0x2c] sm:$0xf]
        %v2587 = vld [vmem:[%s2574 + $0x30] sm:$0xf]
        %v2588 = vld [vmem:[%s2574 + $0x34] sm:$0xf]
        %v2589 = vld [vmem:[%s2574 + $0x38] sm:$0xf]
        %v2590 = vld [vmem:[%s2574 + $0x3c] sm:$0xf]
        %v2607 = vunpack.c.l.b16 %v2575
        %v2608 = vunpack.c.l.b16 %v2576
        %v2609 = vunpack.c.l.b16 %v2577
        %v2610 = vunpack.c.l.b16 %v2578
        %v2611 = vunpack.c.l.b16 %v2579
        %v2612 = vunpack.c.l.b16 %v2580
        %v2613 = vunpack.c.l.b16 %v2581
        %v2614 = vunpack.c.l.b16 %v2582
        %v2615 = vunpack.c.l.b16 %v2583
        %v2616 = vunpack.c.l.b16 %v2584
        %v2617 = vunpack.c.l.b16 %v2585
        %v2618 = vunpack.c.l.b16 %v2586
        %v2619 = vunpack.c.l.b16 %v2587
        %v2620 = vunpack.c.l.b16 %v2588
        %v2621 = vunpack.c.l.b16 %v2589
        %v2622 = vunpack.c.l.b16 %v2590
        %v2623 = vpack.c.b16 %v2608, %v2607
        %v2624 = vpack.c.b16 %v2610, %v2609
        %v2625 = vpack.c.b16 %v2612, %v2611
        %v2626 = vpack.c.b16 %v2614, %v2613
        %v2627 = vpack.c.b16 %v2616, %v2615
        %v2628 = vpack.c.b16 %v2618, %v2617
        %v2629 = vpack.c.b16 %v2620, %v2619
        %v2630 = vpack.c.b16 %v2622, %v2621
        %2639 = vmatprep.subr.bf16.mxu0 0
        %2640 = vmatpush1.bf16.msra.mxu0 %v2630
        %2641 = vmatprep.subr.bf16.mxu0 0
        %2642 = vmatpush1.bf16.msra.mxu0 %v2629
        %2643 = vmatprep.subr.bf16.mxu0 0
        %2644 = vmatpush1.bf16.msra.mxu0 %v2628
        %2645 = vmatprep.subr.bf16.mxu0 0
        %2646 = vmatpush1.bf16.msra.mxu0 %v2627
        %2647 = vmatprep.subr.bf16.mxu0 0
        %2648 = vmatpush1.bf16.msra.mxu0 %v2626
        %2649 = vmatprep.subr.bf16.mxu0 0
        %2650 = vmatpush1.bf16.msra.mxu0 %v2625
        %2651 = vmatprep.subr.bf16.mxu0 0
        %2652 = vmatpush1.bf16.msra.mxu0 %v2624
        %2653 = vmatprep.subr.bf16.mxu0 0
        %2654 = vmatpush1.bf16.msra.mxu0 %v2623
        %2655 = vmatprep.subr.bf16.mxu0 0
        %2656 = vmatpush2.bf16.msra.mxu0 0
        %2657 = vmatprep.subr.bf16.mxu0 0
        %2658 = vmatpush2.bf16.msra.mxu0 0
        %2659 = vmatprep.subr.bf16.mxu0 0
        %2660 = vmatpush2.bf16.msra.mxu0 0
        %2661 = vmatprep.subr.bf16.mxu0 0
        %2662 = vmatpush2.bf16.msra.mxu0 0
        %2663 = vmatprep.subr.bf16.mxu0 0
        %2664 = vmatpush2.bf16.msra.mxu0 0
        %2665 = vmatprep.subr.bf16.mxu0 0
        %2666 = vmatpush2.bf16.msra.mxu0 0
        %2667 = vmatprep.subr.bf16.mxu0 0
        %2668 = vmatpush2.bf16.msra.mxu0 0
        %2669 = vmatprep.subr.bf16.mxu0 0
        %2670 = vmatpush2.bf16.msra.mxu0 0
        %2671 = vmatprep.mubr.bf16.mxu0 0
        %2672 = vmatmul.mubr.bf16.gmra.mxu0 %v2570
        %v2673 = vpop.f32.mrf.mxu0
        %v2674 = vadd.f32 0.0, %v2673
        %v2675 = vpop.f32.mrf.mxu0
        %v2676 = vpop.f32.mrf.mxu0
        %v2677 = vadd.f32 0.0, %v2676
        %v2678 = vpop.f32.mrf.mxu0
        %2679 = vmatprep.mubr.bf16.mxu0 0
        %2680 = vmatmul.mubr.bf16.gmra.mxu0 %v2571
        %v2681 = vpop.f32.mrf.mxu0
        %v2682 = vadd.f32 0.0, %v2681
        %v2683 = vpop.f32.mrf.mxu0
        %v2684 = vpop.f32.mrf.mxu0
        %v2685 = vadd.f32 0.0, %v2684
        %v2686 = vpop.f32.mrf.mxu0
        %2687 = vmatprep.mubr.bf16.mxu0 0
        %2688 = vmatmul.mubr.bf16.gmra.mxu0 %v2572
        %v2689 = vpop.f32.mrf.mxu0
        %v2690 = vadd.f32 0.0, %v2689
        %v2691 = vpop.f32.mrf.mxu0
        %v2692 = vpop.f32.mrf.mxu0
        %v2693 = vadd.f32 0.0, %v2692
        %v2694 = vpop.f32.mrf.mxu0
        %2695 = vmatprep.mubr.bf16.mxu0 0
        %2696 = vmatmul.mubr.bf16.gmra.mxu0 %v2573
        %v2697 = vpop.f32.mrf.mxu0
        %v2698 = vadd.f32 0.0, %v2697
        %v2699 = vpop.f32.mrf.mxu0
        %v2700 = vpop.f32.mrf.mxu0
        %v2701 = vadd.f32 0.0, %v2700
        %v2702 = vpop.f32.mrf.mxu0
        %2703 = vdwg.mxu0
        %v2704 = vadd.f32 %v2448, %v2674
        %v2705 = vadd.f32 %v2449, %v2677
        %v2706 = vadd.f32 %v2450, %v2682
        %v2707 = vadd.f32 %v2451, %v2685
        %v2708 = vadd.f32 %v2452, %v2690
        %v2709 = vadd.f32 %v2453, %v2693
        %v2710 = vadd.f32 %v2454, %v2698
        %v2711 = vadd.f32 %v2455, %v2701
        %s2712 = scalar_lea.vmem %s3, 448
        %v2713 = vld [vmem:[%s2712] sm:$0xff]
        %v2714 = vld [vmem:[%s2712 + $0x8] sm:$0xff]
        %v2715 = vld [vmem:[%s2712 + $0x10] sm:$0xff]
        %v2716 = vld [vmem:[%s2712 + $0x18] sm:$0xff]
        %v2717 = vld [vmem:[%s2712 + $0x20] sm:$0xff]
        %v2718 = vld [vmem:[%s2712 + $0x28] sm:$0xff]
        %v2719 = vld [vmem:[%s2712 + $0x30] sm:$0xff]
        %v2720 = vld [vmem:[%s2712 + $0x38] sm:$0xff]
        %v2729 = vunpack.c.l.b16 %v2713
        %v2730 = vunpack.c.h.b16 %v2713
        %v2731 = vunpack.c.l.b16 %v2714
        %v2732 = vunpack.c.h.b16 %v2714
        %v2733 = vunpack.c.l.b16 %v2715
        %v2734 = vunpack.c.h.b16 %v2715
        %v2735 = vunpack.c.l.b16 %v2716
        %v2736 = vunpack.c.h.b16 %v2716
        %v2737 = vunpack.c.l.b16 %v2717
        %v2738 = vunpack.c.h.b16 %v2717
        %v2739 = vunpack.c.l.b16 %v2718
        %v2740 = vunpack.c.h.b16 %v2718
        %v2741 = vunpack.c.l.b16 %v2719
        %v2742 = vunpack.c.h.b16 %v2719
        %v2743 = vunpack.c.l.b16 %v2720
        %v2744 = vunpack.c.h.b16 %v2720
        %v2745 = vpack.c.b16 %v2731, %v2729
        %v2746 = vpack.c.b16 %v2732, %v2730
        %v2747 = vpack.c.b16 %v2735, %v2733
        %v2748 = vpack.c.b16 %v2736, %v2734
        %v2749 = vpack.c.b16 %v2739, %v2737
        %v2750 = vpack.c.b16 %v2740, %v2738
        %v2751 = vpack.c.b16 %v2743, %v2741
        %v2752 = vpack.c.b16 %v2744, %v2742
        %2761 = vmatprep.subr.bf16.mxu0 0
        %2762 = vmatpush1.bf16.msra.mxu0 %v929
        %2763 = vmatprep.subr.bf16.mxu0 0
        %2764 = vmatpush1.bf16.msra.mxu0 %v928
        %2765 = vmatprep.subr.bf16.mxu0 0
        %2766 = vmatpush1.bf16.msra.mxu0 %v927
        %2767 = vmatprep.subr.bf16.mxu0 0
        %2768 = vmatpush1.bf16.msra.mxu0 %v926
        %2769 = vmatprep.subr.bf16.mxu0 0
        %2770 = vmatpush1.bf16.msra.mxu0 %v925
        %2771 = vmatprep.subr.bf16.mxu0 0
        %2772 = vmatpush1.bf16.msra.mxu0 %v924
        %2773 = vmatprep.subr.bf16.mxu0 0
        %2774 = vmatpush1.bf16.msra.mxu0 %v923
        %2775 = vmatprep.subr.bf16.mxu0 0
        %2776 = vmatpush1.bf16.msra.mxu0 %v922
        %2777 = vmatprep.subr.bf16.mxu0 0
        %2778 = vmatpush2.bf16.msra.mxu0 %v937
        %2779 = vmatprep.subr.bf16.mxu0 0
        %2780 = vmatpush2.bf16.msra.mxu0 %v936
        %2781 = vmatprep.subr.bf16.mxu0 0
        %2782 = vmatpush2.bf16.msra.mxu0 %v935
        %2783 = vmatprep.subr.bf16.mxu0 0
        %2784 = vmatpush2.bf16.msra.mxu0 %v934
        %2785 = vmatprep.subr.bf16.mxu0 0
        %2786 = vmatpush2.bf16.msra.mxu0 %v933
        %2787 = vmatprep.subr.bf16.mxu0 0
        %2788 = vmatpush2.bf16.msra.mxu0 %v932
        %2789 = vmatprep.subr.bf16.mxu0 0
        %2790 = vmatpush2.bf16.msra.mxu0 %v931
        %2791 = vmatprep.subr.bf16.mxu0 0
        %2792 = vmatpush2.bf16.msra.mxu0 %v930
        %2793 = vmatprep.mubr.bf16.mxu0 %v2746
        %2794 = vmatmul.mubr.bf16.gmra.mxu0 %v2745
        %v2795 = vpop.f32.mrf.mxu0
        %v2796 = vadd.f32 0.0, %v2795
        %v2797 = vpop.f32.mrf.mxu0
        %v2798 = vpop.f32.mrf.mxu0
        %v2799 = vadd.f32 0.0, %v2798
        %v2800 = vpop.f32.mrf.mxu0
        %2801 = vmatprep.mubr.bf16.mxu0 %v2748
        %2802 = vmatmul.mubr.bf16.gmra.mxu0 %v2747
        %v2803 = vpop.f32.mrf.mxu0
        %v2804 = vadd.f32 0.0, %v2803
        %v2805 = vpop.f32.mrf.mxu0
        %v2806 = vpop.f32.mrf.mxu0
        %v2807 = vadd.f32 0.0, %v2806
        %v2808 = vpop.f32.mrf.mxu0
        %2809 = vmatprep.mubr.bf16.mxu0 %v2750
        %2810 = vmatmul.mubr.bf16.gmra.mxu0 %v2749
        %v2811 = vpop.f32.mrf.mxu0
        %v2812 = vadd.f32 0.0, %v2811
        %v2813 = vpop.f32.mrf.mxu0
        %v2814 = vpop.f32.mrf.mxu0
        %v2815 = vadd.f32 0.0, %v2814
        %v2816 = vpop.f32.mrf.mxu0
        %2817 = vmatprep.mubr.bf16.mxu0 %v2752
        %2818 = vmatmul.mubr.bf16.gmra.mxu0 %v2751
        %v2819 = vpop.f32.mrf.mxu0
        %v2820 = vadd.f32 0.0, %v2819
        %v2821 = vpop.f32.mrf.mxu0
        %v2822 = vpop.f32.mrf.mxu0
        %v2823 = vadd.f32 0.0, %v2822
        %v2824 = vpop.f32.mrf.mxu0
        %2825 = vdwg.mxu0
        %v2826 = vpack.c.bf16 %v2799, %v2796
        %v2827 = vpack.c.bf16 %v2807, %v2804
        %v2828 = vpack.c.bf16 %v2815, %v2812
        %v2829 = vpack.c.bf16 %v2823, %v2820
        %s2830 = scalar_lea.vmem %s4, 448
        %v2831 = vld [vmem:[%s2830] sm:$0xf]
        %v2832 = vld [vmem:[%s2830 + $0x4] sm:$0xf]
        %v2833 = vld [vmem:[%s2830 + $0x8] sm:$0xf]
        %v2834 = vld [vmem:[%s2830 + $0xc] sm:$0xf]
        %v2835 = vld [vmem:[%s2830 + $0x10] sm:$0xf]
        %v2836 = vld [vmem:[%s2830 + $0x14] sm:$0xf]
        %v2837 = vld [vmem:[%s2830 + $0x18] sm:$0xf]
        %v2838 = vld [vmem:[%s2830 + $0x1c] sm:$0xf]
        %v2839 = vld [vmem:[%s2830 + $0x20] sm:$0xf]
        %v2840 = vld [vmem:[%s2830 + $0x24] sm:$0xf]
        %v2841 = vld [vmem:[%s2830 + $0x28] sm:$0xf]
        %v2842 = vld [vmem:[%s2830 + $0x2c] sm:$0xf]
        %v2843 = vld [vmem:[%s2830 + $0x30] sm:$0xf]
        %v2844 = vld [vmem:[%s2830 + $0x34] sm:$0xf]
        %v2845 = vld [vmem:[%s2830 + $0x38] sm:$0xf]
        %v2846 = vld [vmem:[%s2830 + $0x3c] sm:$0xf]
        %v2863 = vunpack.c.l.b16 %v2831
        %v2864 = vunpack.c.l.b16 %v2832
        %v2865 = vunpack.c.l.b16 %v2833
        %v2866 = vunpack.c.l.b16 %v2834
        %v2867 = vunpack.c.l.b16 %v2835
        %v2868 = vunpack.c.l.b16 %v2836
        %v2869 = vunpack.c.l.b16 %v2837
        %v2870 = vunpack.c.l.b16 %v2838
        %v2871 = vunpack.c.l.b16 %v2839
        %v2872 = vunpack.c.l.b16 %v2840
        %v2873 = vunpack.c.l.b16 %v2841
        %v2874 = vunpack.c.l.b16 %v2842
        %v2875 = vunpack.c.l.b16 %v2843
        %v2876 = vunpack.c.l.b16 %v2844
        %v2877 = vunpack.c.l.b16 %v2845
        %v2878 = vunpack.c.l.b16 %v2846
        %v2879 = vpack.c.b16 %v2864, %v2863
        %v2880 = vpack.c.b16 %v2866, %v2865
        %v2881 = vpack.c.b16 %v2868, %v2867
        %v2882 = vpack.c.b16 %v2870, %v2869
        %v2883 = vpack.c.b16 %v2872, %v2871
        %v2884 = vpack.c.b16 %v2874, %v2873
        %v2885 = vpack.c.b16 %v2876, %v2875
        %v2886 = vpack.c.b16 %v2878, %v2877
        %2895 = vmatprep.subr.bf16.mxu0 0
        %2896 = vmatpush1.bf16.msra.mxu0 %v2886
        %2897 = vmatprep.subr.bf16.mxu0 0
        %2898 = vmatpush1.bf16.msra.mxu0 %v2885
        %2899 = vmatprep.subr.bf16.mxu0 0
        %2900 = vmatpush1.bf16.msra.mxu0 %v2884
        %2901 = vmatprep.subr.bf16.mxu0 0
        %2902 = vmatpush1.bf16.msra.mxu0 %v2883
        %2903 = vmatprep.subr.bf16.mxu0 0
        %2904 = vmatpush1.bf16.msra.mxu0 %v2882
        %2905 = vmatprep.subr.bf16.mxu0 0
        %2906 = vmatpush1.bf16.msra.mxu0 %v2881
        %2907 = vmatprep.subr.bf16.mxu0 0
        %2908 = vmatpush1.bf16.msra.mxu0 %v2880
        %2909 = vmatprep.subr.bf16.mxu0 0
        %2910 = vmatpush1.bf16.msra.mxu0 %v2879
        %2911 = vmatprep.subr.bf16.mxu0 0
        %2912 = vmatpush2.bf16.msra.mxu0 0
        %2913 = vmatprep.subr.bf16.mxu0 0
        %2914 = vmatpush2.bf16.msra.mxu0 0
        %2915 = vmatprep.subr.bf16.mxu0 0
        %2916 = vmatpush2.bf16.msra.mxu0 0
        %2917 = vmatprep.subr.bf16.mxu0 0
        %2918 = vmatpush2.bf16.msra.mxu0 0
        %2919 = vmatprep.subr.bf16.mxu0 0
        %2920 = vmatpush2.bf16.msra.mxu0 0
        %2921 = vmatprep.subr.bf16.mxu0 0
        %2922 = vmatpush2.bf16.msra.mxu0 0
        %2923 = vmatprep.subr.bf16.mxu0 0
        %2924 = vmatpush2.bf16.msra.mxu0 0
        %2925 = vmatprep.subr.bf16.mxu0 0
        %2926 = vmatpush2.bf16.msra.mxu0 0
        %2927 = vmatprep.mubr.bf16.mxu0 0
        %2928 = vmatmul.mubr.bf16.gmra.mxu0 %v2826
        %v2929 = vpop.f32.mrf.mxu0
        %v2930 = vadd.f32 0.0, %v2929
        %v2931 = vpop.f32.mrf.mxu0
        %v2932 = vpop.f32.mrf.mxu0
        %v2933 = vadd.f32 0.0, %v2932
        %v2934 = vpop.f32.mrf.mxu0
        %2935 = vmatprep.mubr.bf16.mxu0 0
        %2936 = vmatmul.mubr.bf16.gmra.mxu0 %v2827
        %v2937 = vpop.f32.mrf.mxu0
        %v2938 = vadd.f32 0.0, %v2937
        %v2939 = vpop.f32.mrf.mxu0
        %v2940 = vpop.f32.mrf.mxu0
        %v2941 = vadd.f32 0.0, %v2940
        %v2942 = vpop.f32.mrf.mxu0
        %2943 = vmatprep.mubr.bf16.mxu0 0
        %2944 = vmatmul.mubr.bf16.gmra.mxu0 %v2828
        %v2945 = vpop.f32.mrf.mxu0
        %v2946 = vadd.f32 0.0, %v2945
        %v2947 = vpop.f32.mrf.mxu0
        %v2948 = vpop.f32.mrf.mxu0
        %v2949 = vadd.f32 0.0, %v2948
        %v2950 = vpop.f32.mrf.mxu0
        %2951 = vmatprep.mubr.bf16.mxu0 0
        %2952 = vmatmul.mubr.bf16.gmra.mxu0 %v2829
        %v2953 = vpop.f32.mrf.mxu0
        %v2954 = vadd.f32 0.0, %v2953
        %v2955 = vpop.f32.mrf.mxu0
        %v2956 = vpop.f32.mrf.mxu0
        %v2957 = vadd.f32 0.0, %v2956
        %v2958 = vpop.f32.mrf.mxu0
        %2959 = vdwg.mxu0
        %v2960 = vadd.f32 %v2704, %v2930
        %v2961 = vadd.f32 %v2705, %v2933
        %v2962 = vadd.f32 %v2706, %v2938
        %v2963 = vadd.f32 %v2707, %v2941
        %v2964 = vadd.f32 %v2708, %v2946
        %v2965 = vadd.f32 %v2709, %v2949
        %v2966 = vadd.f32 %v2710, %v2954
        %v2967 = vadd.f32 %v2711, %v2957
        %s2968 = scalar_lea.vmem %s3, 512
        %v2969 = vld [vmem:[%s2968] sm:$0xff]
        %v2970 = vld [vmem:[%s2968 + $0x8] sm:$0xff]
        %v2971 = vld [vmem:[%s2968 + $0x10] sm:$0xff]
        %v2972 = vld [vmem:[%s2968 + $0x18] sm:$0xff]
        %v2973 = vld [vmem:[%s2968 + $0x20] sm:$0xff]
        %v2974 = vld [vmem:[%s2968 + $0x28] sm:$0xff]
        %v2975 = vld [vmem:[%s2968 + $0x30] sm:$0xff]
        %v2976 = vld [vmem:[%s2968 + $0x38] sm:$0xff]
        %v2985 = vunpack.c.l.b16 %v2969
        %v2986 = vunpack.c.h.b16 %v2969
        %v2987 = vunpack.c.l.b16 %v2970
        %v2988 = vunpack.c.h.b16 %v2970
        %v2989 = vunpack.c.l.b16 %v2971
        %v2990 = vunpack.c.h.b16 %v2971
        %v2991 = vunpack.c.l.b16 %v2972
        %v2992 = vunpack.c.h.b16 %v2972
        %v2993 = vunpack.c.l.b16 %v2973
        %v2994 = vunpack.c.h.b16 %v2973
        %v2995 = vunpack.c.l.b16 %v2974
        %v2996 = vunpack.c.h.b16 %v2974
        %v2997 = vunpack.c.l.b16 %v2975
        %v2998 = vunpack.c.h.b16 %v2975
        %v2999 = vunpack.c.l.b16 %v2976
        %v3000 = vunpack.c.h.b16 %v2976
        %v3001 = vpack.c.b16 %v2987, %v2985
        %v3002 = vpack.c.b16 %v2988, %v2986
        %v3003 = vpack.c.b16 %v2991, %v2989
        %v3004 = vpack.c.b16 %v2992, %v2990
        %v3005 = vpack.c.b16 %v2995, %v2993
        %v3006 = vpack.c.b16 %v2996, %v2994
        %v3007 = vpack.c.b16 %v2999, %v2997
        %v3008 = vpack.c.b16 %v3000, %v2998
        %3017 = vmatprep.subr.bf16.mxu0 0
        %3018 = vmatpush1.bf16.msra.mxu0 %v929
        %3019 = vmatprep.subr.bf16.mxu0 0
        %3020 = vmatpush1.bf16.msra.mxu0 %v928
        %3021 = vmatprep.subr.bf16.mxu0 0
        %3022 = vmatpush1.bf16.msra.mxu0 %v927
        %3023 = vmatprep.subr.bf16.mxu0 0
        %3024 = vmatpush1.bf16.msra.mxu0 %v926
        %3025 = vmatprep.subr.bf16.mxu0 0
        %3026 = vmatpush1.bf16.msra.mxu0 %v925
        %3027 = vmatprep.subr.bf16.mxu0 0
        %3028 = vmatpush1.bf16.msra.mxu0 %v924
        %3029 = vmatprep.subr.bf16.mxu0 0
        %3030 = vmatpush1.bf16.msra.mxu0 %v923
        %3031 = vmatprep.subr.bf16.mxu0 0
        %3032 = vmatpush1.bf16.msra.mxu0 %v922
        %3033 = vmatprep.subr.bf16.mxu0 0
        %3034 = vmatpush2.bf16.msra.mxu0 %v937
        %3035 = vmatprep.subr.bf16.mxu0 0
        %3036 = vmatpush2.bf16.msra.mxu0 %v936
        %3037 = vmatprep.subr.bf16.mxu0 0
        %3038 = vmatpush2.bf16.msra.mxu0 %v935
        %3039 = vmatprep.subr.bf16.mxu0 0
        %3040 = vmatpush2.bf16.msra.mxu0 %v934
        %3041 = vmatprep.subr.bf16.mxu0 0
        %3042 = vmatpush2.bf16.msra.mxu0 %v933
        %3043 = vmatprep.subr.bf16.mxu0 0
        %3044 = vmatpush2.bf16.msra.mxu0 %v932
        %3045 = vmatprep.subr.bf16.mxu0 0
        %3046 = vmatpush2.bf16.msra.mxu0 %v931
        %3047 = vmatprep.subr.bf16.mxu0 0
        %3048 = vmatpush2.bf16.msra.mxu0 %v930
        %3049 = vmatprep.mubr.bf16.mxu0 %v3002
        %3050 = vmatmul.mubr.bf16.gmra.mxu0 %v3001
        %v3051 = vpop.f32.mrf.mxu0
        %v3052 = vadd.f32 0.0, %v3051
        %v3053 = vpop.f32.mrf.mxu0
        %v3054 = vpop.f32.mrf.mxu0
        %v3055 = vadd.f32 0.0, %v3054
        %v3056 = vpop.f32.mrf.mxu0
        %3057 = vmatprep.mubr.bf16.mxu0 %v3004
        %3058 = vmatmul.mubr.bf16.gmra.mxu0 %v3003
        %v3059 = vpop.f32.mrf.mxu0
        %v3060 = vadd.f32 0.0, %v3059
        %v3061 = vpop.f32.mrf.mxu0
        %v3062 = vpop.f32.mrf.mxu0
        %v3063 = vadd.f32 0.0, %v3062
        %v3064 = vpop.f32.mrf.mxu0
        %3065 = vmatprep.mubr.bf16.mxu0 %v3006
        %3066 = vmatmul.mubr.bf16.gmra.mxu0 %v3005
        %v3067 = vpop.f32.mrf.mxu0
        %v3068 = vadd.f32 0.0, %v3067
        %v3069 = vpop.f32.mrf.mxu0
        %v3070 = vpop.f32.mrf.mxu0
        %v3071 = vadd.f32 0.0, %v3070
        %v3072 = vpop.f32.mrf.mxu0
        %3073 = vmatprep.mubr.bf16.mxu0 %v3008
        %3074 = vmatmul.mubr.bf16.gmra.mxu0 %v3007
        %v3075 = vpop.f32.mrf.mxu0
        %v3076 = vadd.f32 0.0, %v3075
        %v3077 = vpop.f32.mrf.mxu0
        %v3078 = vpop.f32.mrf.mxu0
        %v3079 = vadd.f32 0.0, %v3078
        %v3080 = vpop.f32.mrf.mxu0
        %3081 = vdwg.mxu0
        %v3082 = vpack.c.bf16 %v3055, %v3052
        %v3083 = vpack.c.bf16 %v3063, %v3060
        %v3084 = vpack.c.bf16 %v3071, %v3068
        %v3085 = vpack.c.bf16 %v3079, %v3076
        %s3086 = scalar_lea.vmem %s4, 512
        %v3087 = vld [vmem:[%s3086] sm:$0xf]
        %v3088 = vld [vmem:[%s3086 + $0x4] sm:$0xf]
        %v3089 = vld [vmem:[%s3086 + $0x8] sm:$0xf]
        %v3090 = vld [vmem:[%s3086 + $0xc] sm:$0xf]
        %v3091 = vld [vmem:[%s3086 + $0x10] sm:$0xf]
        %v3092 = vld [vmem:[%s3086 + $0x14] sm:$0xf]
        %v3093 = vld [vmem:[%s3086 + $0x18] sm:$0xf]
        %v3094 = vld [vmem:[%s3086 + $0x1c] sm:$0xf]
        %v3095 = vld [vmem:[%s3086 + $0x20] sm:$0xf]
        %v3096 = vld [vmem:[%s3086 + $0x24] sm:$0xf]
        %v3097 = vld [vmem:[%s3086 + $0x28] sm:$0xf]
        %v3098 = vld [vmem:[%s3086 + $0x2c] sm:$0xf]
        %v3099 = vld [vmem:[%s3086 + $0x30] sm:$0xf]
        %v3100 = vld [vmem:[%s3086 + $0x34] sm:$0xf]
        %v3101 = vld [vmem:[%s3086 + $0x38] sm:$0xf]
        %v3102 = vld [vmem:[%s3086 + $0x3c] sm:$0xf]
        %v3119 = vunpack.c.l.b16 %v3087
        %v3120 = vunpack.c.l.b16 %v3088
        %v3121 = vunpack.c.l.b16 %v3089
        %v3122 = vunpack.c.l.b16 %v3090
        %v3123 = vunpack.c.l.b16 %v3091
        %v3124 = vunpack.c.l.b16 %v3092
        %v3125 = vunpack.c.l.b16 %v3093
        %v3126 = vunpack.c.l.b16 %v3094
        %v3127 = vunpack.c.l.b16 %v3095
        %v3128 = vunpack.c.l.b16 %v3096
        %v3129 = vunpack.c.l.b16 %v3097
        %v3130 = vunpack.c.l.b16 %v3098
        %v3131 = vunpack.c.l.b16 %v3099
        %v3132 = vunpack.c.l.b16 %v3100
        %v3133 = vunpack.c.l.b16 %v3101
        %v3134 = vunpack.c.l.b16 %v3102
        %v3135 = vpack.c.b16 %v3120, %v3119
        %v3136 = vpack.c.b16 %v3122, %v3121
        %v3137 = vpack.c.b16 %v3124, %v3123
        %v3138 = vpack.c.b16 %v3126, %v3125
        %v3139 = vpack.c.b16 %v3128, %v3127
        %v3140 = vpack.c.b16 %v3130, %v3129
        %v3141 = vpack.c.b16 %v3132, %v3131
        %v3142 = vpack.c.b16 %v3134, %v3133
        %3151 = vmatprep.subr.bf16.mxu0 0
        %3152 = vmatpush1.bf16.msra.mxu0 %v3142
        %3153 = vmatprep.subr.bf16.mxu0 0
        %3154 = vmatpush1.bf16.msra.mxu0 %v3141
        %3155 = vmatprep.subr.bf16.mxu0 0
        %3156 = vmatpush1.bf16.msra.mxu0 %v3140
        %3157 = vmatprep.subr.bf16.mxu0 0
        %3158 = vmatpush1.bf16.msra.mxu0 %v3139
        %3159 = vmatprep.subr.bf16.mxu0 0
        %3160 = vmatpush1.bf16.msra.mxu0 %v3138
        %3161 = vmatprep.subr.bf16.mxu0 0
        %3162 = vmatpush1.bf16.msra.mxu0 %v3137
        %3163 = vmatprep.subr.bf16.mxu0 0
        %3164 = vmatpush1.bf16.msra.mxu0 %v3136
        %3165 = vmatprep.subr.bf16.mxu0 0
        %3166 = vmatpush1.bf16.msra.mxu0 %v3135
        %3167 = vmatprep.subr.bf16.mxu0 0
        %3168 = vmatpush2.bf16.msra.mxu0 0
        %3169 = vmatprep.subr.bf16.mxu0 0
        %3170 = vmatpush2.bf16.msra.mxu0 0
        %3171 = vmatprep.subr.bf16.mxu0 0
        %3172 = vmatpush2.bf16.msra.mxu0 0
        %3173 = vmatprep.subr.bf16.mxu0 0
        %3174 = vmatpush2.bf16.msra.mxu0 0
        %3175 = vmatprep.subr.bf16.mxu0 0
        %3176 = vmatpush2.bf16.msra.mxu0 0
        %3177 = vmatprep.subr.bf16.mxu0 0
        %3178 = vmatpush2.bf16.msra.mxu0 0
        %3179 = vmatprep.subr.bf16.mxu0 0
        %3180 = vmatpush2.bf16.msra.mxu0 0
        %3181 = vmatprep.subr.bf16.mxu0 0
        %3182 = vmatpush2.bf16.msra.mxu0 0
        %3183 = vmatprep.mubr.bf16.mxu0 0
        %3184 = vmatmul.mubr.bf16.gmra.mxu0 %v3082
        %v3185 = vpop.f32.mrf.mxu0
        %v3186 = vadd.f32 0.0, %v3185
        %v3187 = vpop.f32.mrf.mxu0
        %v3188 = vpop.f32.mrf.mxu0
        %v3189 = vadd.f32 0.0, %v3188
        %v3190 = vpop.f32.mrf.mxu0
        %3191 = vmatprep.mubr.bf16.mxu0 0
        %3192 = vmatmul.mubr.bf16.gmra.mxu0 %v3083
        %v3193 = vpop.f32.mrf.mxu0
        %v3194 = vadd.f32 0.0, %v3193
        %v3195 = vpop.f32.mrf.mxu0
        %v3196 = vpop.f32.mrf.mxu0
        %v3197 = vadd.f32 0.0, %v3196
        %v3198 = vpop.f32.mrf.mxu0
        %3199 = vmatprep.mubr.bf16.mxu0 0
        %3200 = vmatmul.mubr.bf16.gmra.mxu0 %v3084
        %v3201 = vpop.f32.mrf.mxu0
        %v3202 = vadd.f32 0.0, %v3201
        %v3203 = vpop.f32.mrf.mxu0
        %v3204 = vpop.f32.mrf.mxu0
        %v3205 = vadd.f32 0.0, %v3204
        %v3206 = vpop.f32.mrf.mxu0
        %3207 = vmatprep.mubr.bf16.mxu0 0
        %3208 = vmatmul.mubr.bf16.gmra.mxu0 %v3085
        %v3209 = vpop.f32.mrf.mxu0
        %v3210 = vadd.f32 0.0, %v3209
        %v3211 = vpop.f32.mrf.mxu0
        %v3212 = vpop.f32.mrf.mxu0
        %v3213 = vadd.f32 0.0, %v3212
        %v3214 = vpop.f32.mrf.mxu0
        %3215 = vdwg.mxu0
        %v3216 = vadd.f32 %v2960, %v3186
        %v3217 = vadd.f32 %v2961, %v3189
        %v3218 = vadd.f32 %v2962, %v3194
        %v3219 = vadd.f32 %v2963, %v3197
        %v3220 = vadd.f32 %v2964, %v3202
        %v3221 = vadd.f32 %v2965, %v3205
        %v3222 = vadd.f32 %v2966, %v3210
        %v3223 = vadd.f32 %v2967, %v3213
        %v3224 = vld [vmem:[%s5] sm:$0x1]
        %v3226 = vlaneseq
        %v3227 = vshrl.u32 %v3226, 7
        %v3228 = vsub.s32 0, %v3227
        %v3229 = vrot.slane %v3224, %v3228
        %v3231 = vadd.f32 %v3216, %v3229
        %v3232 = vadd.f32 %v3217, %v3229
        %v3233 = vadd.f32 %v3218, %v3229
        %v3234 = vadd.f32 %v3219, %v3229
        %v3235 = vadd.f32 %v3220, %v3229
        %v3236 = vadd.f32 %v3221, %v3229
        %v3237 = vadd.f32 %v3222, %v3229
        %v3238 = vadd.f32 %v3223, %v3229
        %v3239 = vsub.f32 0.0, %v3231
        %v3240 = vsub.f32 0.0, %v3232
        %v3241 = vsub.f32 0.0, %v3233
        %v3242 = vsub.f32 0.0, %v3234
        %v3243 = vsub.f32 0.0, %v3235
        %v3244 = vsub.f32 0.0, %v3236
        %v3245 = vsub.f32 0.0, %v3237
        %v3246 = vsub.f32 0.0, %v3238
        %v3247 = vmul.f32 %v3239, 1.442695
        %v3248 = vpow.pop %v3247
        %v3249 = vmul.f32 %v3240, 1.442695
        %v3250 = vpow.pop %v3249
        %v3251 = vmul.f32 %v3241, 1.442695
        %v3252 = vpow.pop %v3251
        %v3253 = vmul.f32 %v3242, 1.442695
        %v3254 = vpow.pop %v3253
        %v3255 = vmul.f32 %v3243, 1.442695
        %v3256 = vpow.pop %v3255
        %v3257 = vmul.f32 %v3244, 1.442695
        %v3258 = vpow.pop %v3257
        %v3259 = vmul.f32 %v3245, 1.442695
        %v3260 = vpow.pop %v3259
        %v3261 = vmul.f32 %v3246, 1.442695
        %v3262 = vpow.pop %v3261
        %v3263 = vadd.f32 %v3248, 1.0
        %v3264 = vadd.f32 %v3250, 1.0
        %v3265 = vadd.f32 %v3252, 1.0
        %v3266 = vadd.f32 %v3254, 1.0
        %v3267 = vadd.f32 %v3256, 1.0
        %v3268 = vadd.f32 %v3258, 1.0
        %v3269 = vadd.f32 %v3260, 1.0
        %v3270 = vadd.f32 %v3262, 1.0
        %v3271 = vrcp.pop %v3263
        %v3272 = vmul.f32 %v3231, %v3271
        %v3273 = vrcp.pop %v3264
        %v3274 = vmul.f32 %v3232, %v3273
        %v3275 = vrcp.pop %v3265
        %v3276 = vmul.f32 %v3233, %v3275
        %v3277 = vrcp.pop %v3266
        %v3278 = vmul.f32 %v3234, %v3277
        %v3279 = vrcp.pop %v3267
        %v3280 = vmul.f32 %v3235, %v3279
        %v3281 = vrcp.pop %v3268
        %v3282 = vmul.f32 %v3236, %v3281
        %v3283 = vrcp.pop %v3269
        %v3284 = vmul.f32 %v3237, %v3283
        %v3285 = vrcp.pop %v3270
        %v3286 = vmul.f32 %v3238, %v3285
        %v3287 = vpack.c.bf16 %v3274, %v3272
        %v3288 = vpack.c.bf16 %v3278, %v3276
        %v3289 = vpack.c.bf16 %v3282, %v3280
        %v3290 = vpack.c.bf16 %v3286, %v3284
        %v3291 = vld [vmem:[%s6] sm:$0xf]
        %v3292 = vld [vmem:[%s6 + $0x4] sm:$0xf]
        %v3295 = vunpack.c.l.b16 %v3291
        %v3296 = vunpack.c.l.b16 %v3292
        %v3297 = vpack.c.b16 %v3296, %v3295
        %vm3298 = vcmask 523264
        %v3300 = vsel %vm3298, %v3297, 0
        %3302 = vmatprep.subr.bf16.mxu0 0
        %3303 = vmatpush1.bf16.msra.mxu0 0
        %3304 = vmatprep.subr.bf16.mxu0 0
        %3305 = vmatpush1.bf16.msra.mxu0 0
        %3306 = vmatprep.subr.bf16.mxu0 0
        %3307 = vmatpush1.bf16.msra.mxu0 0
        %3308 = vmatprep.subr.bf16.mxu0 0
        %3309 = vmatpush1.bf16.msra.mxu0 0
        %3310 = vmatprep.subr.bf16.mxu0 0
        %3311 = vmatpush1.bf16.msra.mxu0 %v3290
        %3312 = vmatprep.subr.bf16.mxu0 0
        %3313 = vmatpush1.bf16.msra.mxu0 %v3289
        %3314 = vmatprep.subr.bf16.mxu0 0
        %3315 = vmatpush1.bf16.msra.mxu0 %v3288
        %3316 = vmatprep.subr.bf16.mxu0 0
        %3317 = vmatpush1.bf16.msra.mxu0 %v3287
        %3318 = vmatprep.subr.bf16.mxu0 0
        %3319 = vmatpush2.bf16.msra.mxu0 0
        %3320 = vmatprep.subr.bf16.mxu0 0
        %3321 = vmatpush2.bf16.msra.mxu0 0
        %3322 = vmatprep.subr.bf16.mxu0 0
        %3323 = vmatpush2.bf16.msra.mxu0 0
        %3324 = vmatprep.subr.bf16.mxu0 0
        %3325 = vmatpush2.bf16.msra.mxu0 0
        %3326 = vmatprep.subr.bf16.mxu0 0
        %3327 = vmatpush2.bf16.msra.mxu0 0
        %3328 = vmatprep.subr.bf16.mxu0 0
        %3329 = vmatpush2.bf16.msra.mxu0 0
        %3330 = vmatprep.subr.bf16.mxu0 0
        %3331 = vmatpush2.bf16.msra.mxu0 0
        %3332 = vmatprep.subr.bf16.mxu0 0
        %3333 = vmatpush2.bf16.msra.mxu0 0
        %3334 = vmatprep.mubr.bf16.mxu0 0
        %3335 = vmatmul.mubr.bf16.gmra.mxu0 %v3300
        %v3336 = vpop.f32.mrf.mxu0
        %v3337 = vadd.f32 0.0, %v3336
        %v3338 = vpop.f32.mrf.mxu0
        %v3339 = vpop.f32.mrf.mxu0
        %v3340 = vadd.f32 0.0, %v3339
        %v3341 = vpop.f32.mrf.mxu0
        %3342 = vdwg.mxu0
        %v3343 = vpack.c.bf16 %v3340, %v3337
        %v3344 = vld [vmem:[%s7] sm:$0xf]
        %v3345 = vld [vmem:[%s7 + $0x4] sm:$0xf]
        %v3346 = vld [vmem:[%s7 + $0x8] sm:$0xf]
        %v3347 = vld [vmem:[%s7 + $0xc] sm:$0xf]
        %v3348 = vld [vmem:[%s7 + $0x10] sm:$0xf]
        %v3349 = vld [vmem:[%s7 + $0x14] sm:$0xf]
        %v3350 = vld [vmem:[%s7 + $0x18] sm:$0xf]
        %v3351 = vld [vmem:[%s7 + $0x1c] sm:$0xf]
        %v3352 = vld [vmem:[%s7 + $0x20] sm:$0xf]
        %v3353 = vld [vmem:[%s7 + $0x24] sm:$0xf]
        %v3354 = vld [vmem:[%s7 + $0x28] sm:$0xf]
        %v3355 = vld [vmem:[%s7 + $0x2c] sm:$0xf]
        %v3356 = vld [vmem:[%s7 + $0x30] sm:$0xf]
        %v3357 = vld [vmem:[%s7 + $0x34] sm:$0xf]
        %v3358 = vld [vmem:[%s7 + $0x38] sm:$0xf]
        %v3359 = vld [vmem:[%s7 + $0x3c] sm:$0xf]
        %s3360 = scalar_lea.vmem %s6, 8
        %v3361 = vld [vmem:[%s3360] sm:$0xf]
        %v3362 = vld [vmem:[%s3360 + $0x4] sm:$0xf]
        %v3365 = vunpack.c.l.b16 %v3361
        %v3366 = vunpack.c.l.b16 %v3362
        %v3367 = vpack.c.b16 %v3366, %v3365
        %v3369 = vsel %vm3298, %v3367, 0
        %3371 = vmatprep.subr.bf16.mxu0 0
        %3372 = vmatpush1.bf16.msra.mxu0 0
        %3373 = vmatprep.subr.bf16.mxu0 0
        %3374 = vmatpush1.bf16.msra.mxu0 0
        %3375 = vmatprep.subr.bf16.mxu0 0
        %3376 = vmatpush1.bf16.msra.mxu0 0
        %3377 = vmatprep.subr.bf16.mxu0 0
        %3378 = vmatpush1.bf16.msra.mxu0 0
        %3379 = vmatprep.subr.bf16.mxu0 0
        %3380 = vmatpush1.bf16.msra.mxu0 %v3290
        %3381 = vmatprep.subr.bf16.mxu0 0
        %3382 = vmatpush1.bf16.msra.mxu0 %v3289
        %3383 = vmatprep.subr.bf16.mxu0 0
        %3384 = vmatpush1.bf16.msra.mxu0 %v3288
        %3385 = vmatprep.subr.bf16.mxu0 0
        %3386 = vmatpush1.bf16.msra.mxu0 %v3287
        %3387 = vmatprep.subr.bf16.mxu0 0
        %3388 = vmatpush2.bf16.msra.mxu0 0
        %3389 = vmatprep.subr.bf16.mxu0 0
        %3390 = vmatpush2.bf16.msra.mxu0 0
        %3391 = vmatprep.subr.bf16.mxu0 0
        %3392 = vmatpush2.bf16.msra.mxu0 0
        %3393 = vmatprep.subr.bf16.mxu0 0
        %3394 = vmatpush2.bf16.msra.mxu0 0
        %3395 = vmatprep.subr.bf16.mxu0 0
        %3396 = vmatpush2.bf16.msra.mxu0 0
        %3397 = vmatprep.subr.bf16.mxu0 0
        %3398 = vmatpush2.bf16.msra.mxu0 0
        %3399 = vmatprep.subr.bf16.mxu0 0
        %3400 = vmatpush2.bf16.msra.mxu0 0
        %3401 = vmatprep.subr.bf16.mxu0 0
        %3402 = vmatpush2.bf16.msra.mxu0 0
        %3403 = vmatprep.mubr.bf16.mxu0 0
        %3404 = vmatmul.mubr.bf16.gmra.mxu0 %v3369
        %v3405 = vpop.f32.mrf.mxu0
        %v3406 = vadd.f32 0.0, %v3405
        %v3407 = vpop.f32.mrf.mxu0
        %v3408 = vpop.f32.mrf.mxu0
        %v3409 = vadd.f32 0.0, %v3408
        %v3410 = vpop.f32.mrf.mxu0
        %3411 = vdwg.mxu0
        %v3412 = vpack.c.bf16 %v3409, %v3406
        %s3413 = scalar_lea.vmem %s7, 64
        %v3414 = vld [vmem:[%s3413] sm:$0xf]
        %v3415 = vld [vmem:[%s3413 + $0x4] sm:$0xf]
        %v3416 = vld [vmem:[%s3413 + $0x8] sm:$0xf]
        %v3417 = vld [vmem:[%s3413 + $0xc] sm:$0xf]
        %v3418 = vld [vmem:[%s3413 + $0x10] sm:$0xf]
        %v3419 = vld [vmem:[%s3413 + $0x14] sm:$0xf]
        %v3420 = vld [vmem:[%s3413 + $0x18] sm:$0xf]
        %v3421 = vld [vmem:[%s3413 + $0x1c] sm:$0xf]
        %v3422 = vld [vmem:[%s3413 + $0x20] sm:$0xf]
        %v3423 = vld [vmem:[%s3413 + $0x24] sm:$0xf]
        %v3424 = vld [vmem:[%s3413 + $0x28] sm:$0xf]
        %v3425 = vld [vmem:[%s3413 + $0x2c] sm:$0xf]
        %v3426 = vld [vmem:[%s3413 + $0x30] sm:$0xf]
        %v3427 = vld [vmem:[%s3413 + $0x34] sm:$0xf]
        %v3428 = vld [vmem:[%s3413 + $0x38] sm:$0xf]
        %v3429 = vld [vmem:[%s3413 + $0x3c] sm:$0xf]
        %v3446 = vunpack.c.l.b16 %v3414
        %v3447 = vunpack.c.l.b16 %v3415
        %v3448 = vunpack.c.l.b16 %v3416
        %v3449 = vunpack.c.l.b16 %v3417
        %v3450 = vunpack.c.l.b16 %v3418
        %v3451 = vunpack.c.l.b16 %v3419
        %v3452 = vunpack.c.l.b16 %v3420
        %v3453 = vunpack.c.l.b16 %v3421
        %v3454 = vunpack.c.l.b16 %v3422
        %v3455 = vunpack.c.l.b16 %v3423
        %v3456 = vunpack.c.l.b16 %v3424
        %v3457 = vunpack.c.l.b16 %v3425
        %v3458 = vunpack.c.l.b16 %v3426
        %v3459 = vunpack.c.l.b16 %v3427
        %v3460 = vunpack.c.l.b16 %v3428
        %v3461 = vunpack.c.l.b16 %v3429
        %v3462 = vpack.c.b16 %v3447, %v3446
        %v3463 = vpack.c.b16 %v3449, %v3448
        %v3464 = vpack.c.b16 %v3451, %v3450
        %v3465 = vpack.c.b16 %v3453, %v3452
        %v3466 = vpack.c.b16 %v3455, %v3454
        %v3467 = vpack.c.b16 %v3457, %v3456
        %v3468 = vpack.c.b16 %v3459, %v3458
        %v3469 = vpack.c.b16 %v3461, %v3460
        %3478 = vmatprep.subr.bf16.mxu0 0
        %3479 = vmatpush1.bf16.msra.mxu0 %v3469
        %3480 = vmatprep.subr.bf16.mxu0 0
        %3481 = vmatpush1.bf16.msra.mxu0 %v3468
        %3482 = vmatprep.subr.bf16.mxu0 0
        %3483 = vmatpush1.bf16.msra.mxu0 %v3467
        %3484 = vmatprep.subr.bf16.mxu0 0
        %3485 = vmatpush1.bf16.msra.mxu0 %v3466
        %3486 = vmatprep.subr.bf16.mxu0 0
        %3487 = vmatpush1.bf16.msra.mxu0 %v3465
        %3488 = vmatprep.subr.bf16.mxu0 0
        %3489 = vmatpush1.bf16.msra.mxu0 %v3464
        %3490 = vmatprep.subr.bf16.mxu0 0
        %3491 = vmatpush1.bf16.msra.mxu0 %v3463
        %3492 = vmatprep.subr.bf16.mxu0 0
        %3493 = vmatpush1.bf16.msra.mxu0 %v3462
        %3494 = vmatprep.subr.bf16.mxu0 0
        %3495 = vmatpush2.bf16.msra.mxu0 0
        %3496 = vmatprep.subr.bf16.mxu0 0
        %3497 = vmatpush2.bf16.msra.mxu0 0
        %3498 = vmatprep.subr.bf16.mxu0 0
        %3499 = vmatpush2.bf16.msra.mxu0 0
        %3500 = vmatprep.subr.bf16.mxu0 0
        %3501 = vmatpush2.bf16.msra.mxu0 0
        %3502 = vmatprep.subr.bf16.mxu0 0
        %3503 = vmatpush2.bf16.msra.mxu0 0
        %3504 = vmatprep.subr.bf16.mxu0 0
        %3505 = vmatpush2.bf16.msra.mxu0 0
        %3506 = vmatprep.subr.bf16.mxu0 0
        %3507 = vmatpush2.bf16.msra.mxu0 0
        %3508 = vmatprep.subr.bf16.mxu0 0
        %3509 = vmatpush2.bf16.msra.mxu0 0
        %3510 = vmatprep.mubr.bf16.mxu0 0
        %3511 = vmatmul.mubr.bf16.gmra.mxu0 %v3412
        %v3512 = vpop.f32.mrf.mxu0
        %v3513 = vadd.f32 0.0, %v3512
        %v3514 = vpop.f32.mrf.mxu0
        %v3515 = vpop.f32.mrf.mxu0
        %v3516 = vadd.f32 0.0, %v3515
        %v3517 = vpop.f32.mrf.mxu0
        %3518 = vdwg.mxu0
        %v3535 = vunpack.c.l.b16 %v3344
        %v3536 = vunpack.c.l.b16 %v3345
        %v3537 = vunpack.c.l.b16 %v3346
        %v3538 = vunpack.c.l.b16 %v3347
        %v3539 = vunpack.c.l.b16 %v3348
        %v3540 = vunpack.c.l.b16 %v3349
        %v3541 = vunpack.c.l.b16 %v3350
        %v3542 = vunpack.c.l.b16 %v3351
        %v3543 = vunpack.c.l.b16 %v3352
        %v3544 = vunpack.c.l.b16 %v3353
        %v3545 = vunpack.c.l.b16 %v3354
        %v3546 = vunpack.c.l.b16 %v3355
        %v3547 = vunpack.c.l.b16 %v3356
        %v3548 = vunpack.c.l.b16 %v3357
        %v3549 = vunpack.c.l.b16 %v3358
        %v3550 = vunpack.c.l.b16 %v3359
        %v3551 = vpack.c.b16 %v3536, %v3535
        %v3552 = vpack.c.b16 %v3538, %v3537
        %v3553 = vpack.c.b16 %v3540, %v3539
        %v3554 = vpack.c.b16 %v3542, %v3541
        %v3555 = vpack.c.b16 %v3544, %v3543
        %v3556 = vpack.c.b16 %v3546, %v3545
        %v3557 = vpack.c.b16 %v3548, %v3547
        %v3558 = vpack.c.b16 %v3550, %v3549
        %3567 = vmatprep.subr.bf16.mxu0 0
        %3568 = vmatpush1.bf16.msra.mxu0 %v3558
        %3569 = vmatprep.subr.bf16.mxu0 0
        %3570 = vmatpush1.bf16.msra.mxu0 %v3557
        %3571 = vmatprep.subr.bf16.mxu0 0
        %3572 = vmatpush1.bf16.msra.mxu0 %v3556
        %3573 = vmatprep.subr.bf16.mxu0 0
        %3574 = vmatpush1.bf16.msra.mxu0 %v3555
        %3575 = vmatprep.subr.bf16.mxu0 0
        %3576 = vmatpush1.bf16.msra.mxu0 %v3554
        %3577 = vmatprep.subr.bf16.mxu0 0
        %3578 = vmatpush1.bf16.msra.mxu0 %v3553
        %3579 = vmatprep.subr.bf16.mxu0 0
        %3580 = vmatpush1.bf16.msra.mxu0 %v3552
        %3581 = vmatprep.subr.bf16.mxu0 0
        %3582 = vmatpush1.bf16.msra.mxu0 %v3551
        %3583 = vmatprep.subr.bf16.mxu0 0
        %3584 = vmatpush2.bf16.msra.mxu0 0
        %3585 = vmatprep.subr.bf16.mxu0 0
        %3586 = vmatpush2.bf16.msra.mxu0 0
        %3587 = vmatprep.subr.bf16.mxu0 0
        %3588 = vmatpush2.bf16.msra.mxu0 0
        %3589 = vmatprep.subr.bf16.mxu0 0
        %3590 = vmatpush2.bf16.msra.mxu0 0
        %3591 = vmatprep.subr.bf16.mxu0 0
        %3592 = vmatpush2.bf16.msra.mxu0 0
        %3593 = vmatprep.subr.bf16.mxu0 0
        %3594 = vmatpush2.bf16.msra.mxu0 0
        %3595 = vmatprep.subr.bf16.mxu0 0
        %3596 = vmatpush2.bf16.msra.mxu0 0
        %3597 = vmatprep.subr.bf16.mxu0 0
        %3598 = vmatpush2.bf16.msra.mxu0 0
        %3599 = vmatprep.mubr.bf16.mxu0 0
        %3600 = vmatmul.mubr.bf16.gmra.mxu0 %v3343
        %v3601 = vpop.f32.mrf.mxu0
        %v3602 = vadd.f32 %v3513, %v3601
        %v3603 = vpop.f32.mrf.mxu0
        %v3604 = vpop.f32.mrf.mxu0
        %v3605 = vadd.f32 %v3516, %v3604
        %v3606 = vpop.f32.mrf.mxu0
        %3607 = vdwg.mxu0
        %s3608 = scalar_lea.vmem %s6, 16
        %v3609 = vld [vmem:[%s3608] sm:$0xf]
        %v3610 = vld [vmem:[%s3608 + $0x4] sm:$0xf]
        %v3613 = vunpack.c.l.b16 %v3609
        %v3614 = vunpack.c.l.b16 %v3610
        %v3615 = vpack.c.b16 %v3614, %v3613
        %v3617 = vsel %vm3298, %v3615, 0
        %3619 = vmatprep.subr.bf16.mxu0 0
        %3620 = vmatpush1.bf16.msra.mxu0 0
        %3621 = vmatprep.subr.bf16.mxu0 0
        %3622 = vmatpush1.bf16.msra.mxu0 0
        %3623 = vmatprep.subr.bf16.mxu0 0
        %3624 = vmatpush1.bf16.msra.mxu0 0
        %3625 = vmatprep.subr.bf16.mxu0 0
        %3626 = vmatpush1.bf16.msra.mxu0 0
        %3627 = vmatprep.subr.bf16.mxu0 0
        %3628 = vmatpush1.bf16.msra.mxu0 %v3290
        %3629 = vmatprep.subr.bf16.mxu0 0
        %3630 = vmatpush1.bf16.msra.mxu0 %v3289
        %3631 = vmatprep.subr.bf16.mxu0 0
        %3632 = vmatpush1.bf16.msra.mxu0 %v3288
        %3633 = vmatprep.subr.bf16.mxu0 0
        %3634 = vmatpush1.bf16.msra.mxu0 %v3287
        %3635 = vmatprep.subr.bf16.mxu0 0
        %3636 = vmatpush2.bf16.msra.mxu0 0
        %3637 = vmatprep.subr.bf16.mxu0 0
        %3638 = vmatpush2.bf16.msra.mxu0 0
        %3639 = vmatprep.subr.bf16.mxu0 0
        %3640 = vmatpush2.bf16.msra.mxu0 0
        %3641 = vmatprep.subr.bf16.mxu0 0
        %3642 = vmatpush2.bf16.msra.mxu0 0
        %3643 = vmatprep.subr.bf16.mxu0 0
        %3644 = vmatpush2.bf16.msra.mxu0 0
        %3645 = vmatprep.subr.bf16.mxu0 0
        %3646 = vmatpush2.bf16.msra.mxu0 0
        %3647 = vmatprep.subr.bf16.mxu0 0
        %3648 = vmatpush2.bf16.msra.mxu0 0
        %3649 = vmatprep.subr.bf16.mxu0 0
        %3650 = vmatpush2.bf16.msra.mxu0 0
        %3651 = vmatprep.mubr.bf16.mxu0 0
        %3652 = vmatmul.mubr.bf16.gmra.mxu0 %v3617
        %v3653 = vpop.f32.mrf.mxu0
        %v3654 = vadd.f32 0.0, %v3653
        %v3655 = vpop.f32.mrf.mxu0
        %v3656 = vpop.f32.mrf.mxu0
        %v3657 = vadd.f32 0.0, %v3656
        %v3658 = vpop.f32.mrf.mxu0
        %3659 = vdwg.mxu0
        %v3660 = vpack.c.bf16 %v3657, %v3654
        %s3661 = scalar_lea.vmem %s7, 128
        %v3662 = vld [vmem:[%s3661] sm:$0xf]
        %v3663 = vld [vmem:[%s3661 + $0x4] sm:$0xf]
        %v3664 = vld [vmem:[%s3661 + $0x8] sm:$0xf]
        %v3665 = vld [vmem:[%s3661 + $0xc] sm:$0xf]
        %v3666 = vld [vmem:[%s3661 + $0x10] sm:$0xf]
        %v3667 = vld [vmem:[%s3661 + $0x14] sm:$0xf]
        %v3668 = vld [vmem:[%s3661 + $0x18] sm:$0xf]
        %v3669 = vld [vmem:[%s3661 + $0x1c] sm:$0xf]
        %v3670 = vld [vmem:[%s3661 + $0x20] sm:$0xf]
        %v3671 = vld [vmem:[%s3661 + $0x24] sm:$0xf]
        %v3672 = vld [vmem:[%s3661 + $0x28] sm:$0xf]
        %v3673 = vld [vmem:[%s3661 + $0x2c] sm:$0xf]
        %v3674 = vld [vmem:[%s3661 + $0x30] sm:$0xf]
        %v3675 = vld [vmem:[%s3661 + $0x34] sm:$0xf]
        %v3676 = vld [vmem:[%s3661 + $0x38] sm:$0xf]
        %v3677 = vld [vmem:[%s3661 + $0x3c] sm:$0xf]
        %v3694 = vunpack.c.l.b16 %v3662
        %v3695 = vunpack.c.l.b16 %v3663
        %v3696 = vunpack.c.l.b16 %v3664
        %v3697 = vunpack.c.l.b16 %v3665
        %v3698 = vunpack.c.l.b16 %v3666
        %v3699 = vunpack.c.l.b16 %v3667
        %v3700 = vunpack.c.l.b16 %v3668
        %v3701 = vunpack.c.l.b16 %v3669
        %v3702 = vunpack.c.l.b16 %v3670
        %v3703 = vunpack.c.l.b16 %v3671
        %v3704 = vunpack.c.l.b16 %v3672
        %v3705 = vunpack.c.l.b16 %v3673
        %v3706 = vunpack.c.l.b16 %v3674
        %v3707 = vunpack.c.l.b16 %v3675
        %v3708 = vunpack.c.l.b16 %v3676
        %v3709 = vunpack.c.l.b16 %v3677
        %v3710 = vpack.c.b16 %v3695, %v3694
        %v3711 = vpack.c.b16 %v3697, %v3696
        %v3712 = vpack.c.b16 %v3699, %v3698
        %v3713 = vpack.c.b16 %v3701, %v3700
        %v3714 = vpack.c.b16 %v3703, %v3702
        %v3715 = vpack.c.b16 %v3705, %v3704
        %v3716 = vpack.c.b16 %v3707, %v3706
        %v3717 = vpack.c.b16 %v3709, %v3708
        %3726 = vmatprep.subr.bf16.mxu0 0
        %3727 = vmatpush1.bf16.msra.mxu0 %v3717
        %3728 = vmatprep.subr.bf16.mxu0 0
        %3729 = vmatpush1.bf16.msra.mxu0 %v3716
        %3730 = vmatprep.subr.bf16.mxu0 0
        %3731 = vmatpush1.bf16.msra.mxu0 %v3715
        %3732 = vmatprep.subr.bf16.mxu0 0
        %3733 = vmatpush1.bf16.msra.mxu0 %v3714
        %3734 = vmatprep.subr.bf16.mxu0 0
        %3735 = vmatpush1.bf16.msra.mxu0 %v3713
        %3736 = vmatprep.subr.bf16.mxu0 0
        %3737 = vmatpush1.bf16.msra.mxu0 %v3712
        %3738 = vmatprep.subr.bf16.mxu0 0
        %3739 = vmatpush1.bf16.msra.mxu0 %v3711
        %3740 = vmatprep.subr.bf16.mxu0 0
        %3741 = vmatpush1.bf16.msra.mxu0 %v3710
        %3742 = vmatprep.subr.bf16.mxu0 0
        %3743 = vmatpush2.bf16.msra.mxu0 0
        %3744 = vmatprep.subr.bf16.mxu0 0
        %3745 = vmatpush2.bf16.msra.mxu0 0
        %3746 = vmatprep.subr.bf16.mxu0 0
        %3747 = vmatpush2.bf16.msra.mxu0 0
        %3748 = vmatprep.subr.bf16.mxu0 0
        %3749 = vmatpush2.bf16.msra.mxu0 0
        %3750 = vmatprep.subr.bf16.mxu0 0
        %3751 = vmatpush2.bf16.msra.mxu0 0
        %3752 = vmatprep.subr.bf16.mxu0 0
        %3753 = vmatpush2.bf16.msra.mxu0 0
        %3754 = vmatprep.subr.bf16.mxu0 0
        %3755 = vmatpush2.bf16.msra.mxu0 0
        %3756 = vmatprep.subr.bf16.mxu0 0
        %3757 = vmatpush2.bf16.msra.mxu0 0
        %3758 = vmatprep.mubr.bf16.mxu0 0
        %3759 = vmatmul.mubr.bf16.gmra.mxu0 %v3660
        %v3760 = vpop.f32.mrf.mxu0
        %v3761 = vadd.f32 0.0, %v3760
        %v3762 = vpop.f32.mrf.mxu0
        %v3763 = vpop.f32.mrf.mxu0
        %v3764 = vadd.f32 0.0, %v3763
        %v3765 = vpop.f32.mrf.mxu0
        %3766 = vdwg.mxu0
        %v3767 = vadd.f32 %v3602, %v3761
        %v3768 = vadd.f32 %v3605, %v3764
        %s3769 = scalar_lea.vmem %s6, 24
        %v3770 = vld [vmem:[%s3769] sm:$0xf]
        %v3771 = vld [vmem:[%s3769 + $0x4] sm:$0xf]
        %v3774 = vunpack.c.l.b16 %v3770
        %v3775 = vunpack.c.l.b16 %v3771
        %v3776 = vpack.c.b16 %v3775, %v3774
        %v3778 = vsel %vm3298, %v3776, 0
        %3780 = vmatprep.subr.bf16.mxu0 0
        %3781 = vmatpush1.bf16.msra.mxu0 0
        %3782 = vmatprep.subr.bf16.mxu0 0
        %3783 = vmatpush1.bf16.msra.mxu0 0
        %3784 = vmatprep.subr.bf16.mxu0 0
        %3785 = vmatpush1.bf16.msra.mxu0 0
        %3786 = vmatprep.subr.bf16.mxu0 0
        %3787 = vmatpush1.bf16.msra.mxu0 0
        %3788 = vmatprep.subr.bf16.mxu0 0
        %3789 = vmatpush1.bf16.msra.mxu0 %v3290
        %3790 = vmatprep.subr.bf16.mxu0 0
        %3791 = vmatpush1.bf16.msra.mxu0 %v3289
        %3792 = vmatprep.subr.bf16.mxu0 0
        %3793 = vmatpush1.bf16.msra.mxu0 %v3288
        %3794 = vmatprep.subr.bf16.mxu0 0
        %3795 = vmatpush1.bf16.msra.mxu0 %v3287
        %3796 = vmatprep.subr.bf16.mxu0 0
        %3797 = vmatpush2.bf16.msra.mxu0 0
        %3798 = vmatprep.subr.bf16.mxu0 0
        %3799 = vmatpush2.bf16.msra.mxu0 0
        %3800 = vmatprep.subr.bf16.mxu0 0
        %3801 = vmatpush2.bf16.msra.mxu0 0
        %3802 = vmatprep.subr.bf16.mxu0 0
        %3803 = vmatpush2.bf16.msra.mxu0 0
        %3804 = vmatprep.subr.bf16.mxu0 0
        %3805 = vmatpush2.bf16.msra.mxu0 0
        %3806 = vmatprep.subr.bf16.mxu0 0
        %3807 = vmatpush2.bf16.msra.mxu0 0
        %3808 = vmatprep.subr.bf16.mxu0 0
        %3809 = vmatpush2.bf16.msra.mxu0 0
        %3810 = vmatprep.subr.bf16.mxu0 0
        %3811 = vmatpush2.bf16.msra.mxu0 0
        %3812 = vmatprep.mubr.bf16.mxu0 0
        %3813 = vmatmul.mubr.bf16.gmra.mxu0 %v3778
        %v3814 = vpop.f32.mrf.mxu0
        %v3815 = vadd.f32 0.0, %v3814
        %v3816 = vpop.f32.mrf.mxu0
        %v3817 = vpop.f32.mrf.mxu0
        %v3818 = vadd.f32 0.0, %v3817
        %v3819 = vpop.f32.mrf.mxu0
        %3820 = vdwg.mxu0
        %v3821 = vpack.c.bf16 %v3818, %v3815
        %s3822 = scalar_lea.vmem %s7, 192
        %v3823 = vld [vmem:[%s3822] sm:$0xf]
        %v3824 = vld [vmem:[%s3822 + $0x4] sm:$0xf]
        %v3825 = vld [vmem:[%s3822 + $0x8] sm:$0xf]
        %v3826 = vld [vmem:[%s3822 + $0xc] sm:$0xf]
        %v3827 = vld [vmem:[%s3822 + $0x10] sm:$0xf]
        %v3828 = vld [vmem:[%s3822 + $0x14] sm:$0xf]
        %v3829 = vld [vmem:[%s3822 + $0x18] sm:$0xf]
        %v3830 = vld [vmem:[%s3822 + $0x1c] sm:$0xf]
        %v3831 = vld [vmem:[%s3822 + $0x20] sm:$0xf]
        %v3832 = vld [vmem:[%s3822 + $0x24] sm:$0xf]
        %v3833 = vld [vmem:[%s3822 + $0x28] sm:$0xf]
        %v3834 = vld [vmem:[%s3822 + $0x2c] sm:$0xf]
        %v3835 = vld [vmem:[%s3822 + $0x30] sm:$0xf]
        %v3836 = vld [vmem:[%s3822 + $0x34] sm:$0xf]
        %v3837 = vld [vmem:[%s3822 + $0x38] sm:$0xf]
        %v3838 = vld [vmem:[%s3822 + $0x3c] sm:$0xf]
        %v3855 = vunpack.c.l.b16 %v3823
        %v3856 = vunpack.c.l.b16 %v3824
        %v3857 = vunpack.c.l.b16 %v3825
        %v3858 = vunpack.c.l.b16 %v3826
        %v3859 = vunpack.c.l.b16 %v3827
        %v3860 = vunpack.c.l.b16 %v3828
        %v3861 = vunpack.c.l.b16 %v3829
        %v3862 = vunpack.c.l.b16 %v3830
        %v3863 = vunpack.c.l.b16 %v3831
        %v3864 = vunpack.c.l.b16 %v3832
        %v3865 = vunpack.c.l.b16 %v3833
        %v3866 = vunpack.c.l.b16 %v3834
        %v3867 = vunpack.c.l.b16 %v3835
        %v3868 = vunpack.c.l.b16 %v3836
        %v3869 = vunpack.c.l.b16 %v3837
        %v3870 = vunpack.c.l.b16 %v3838
        %v3871 = vpack.c.b16 %v3856, %v3855
        %v3872 = vpack.c.b16 %v3858, %v3857
        %v3873 = vpack.c.b16 %v3860, %v3859
        %v3874 = vpack.c.b16 %v3862, %v3861
        %v3875 = vpack.c.b16 %v3864, %v3863
        %v3876 = vpack.c.b16 %v3866, %v3865
        %v3877 = vpack.c.b16 %v3868, %v3867
        %v3878 = vpack.c.b16 %v3870, %v3869
        %3887 = vmatprep.subr.bf16.mxu0 0
        %3888 = vmatpush1.bf16.msra.mxu0 %v3878
        %3889 = vmatprep.subr.bf16.mxu0 0
        %3890 = vmatpush1.bf16.msra.mxu0 %v3877
        %3891 = vmatprep.subr.bf16.mxu0 0
        %3892 = vmatpush1.bf16.msra.mxu0 %v3876
        %3893 = vmatprep.subr.bf16.mxu0 0
        %3894 = vmatpush1.bf16.msra.mxu0 %v3875
        %3895 = vmatprep.subr.bf16.mxu0 0
        %3896 = vmatpush1.bf16.msra.mxu0 %v3874
        %3897 = vmatprep.subr.bf16.mxu0 0
        %3898 = vmatpush1.bf16.msra.mxu0 %v3873
        %3899 = vmatprep.subr.bf16.mxu0 0
        %3900 = vmatpush1.bf16.msra.mxu0 %v3872
        %3901 = vmatprep.subr.bf16.mxu0 0
        %3902 = vmatpush1.bf16.msra.mxu0 %v3871
        %3903 = vmatprep.subr.bf16.mxu0 0
        %3904 = vmatpush2.bf16.msra.mxu0 0
        %3905 = vmatprep.subr.bf16.mxu0 0
        %3906 = vmatpush2.bf16.msra.mxu0 0
        %3907 = vmatprep.subr.bf16.mxu0 0
        %3908 = vmatpush2.bf16.msra.mxu0 0
        %3909 = vmatprep.subr.bf16.mxu0 0
        %3910 = vmatpush2.bf16.msra.mxu0 0
        %3911 = vmatprep.subr.bf16.mxu0 0
        %3912 = vmatpush2.bf16.msra.mxu0 0
        %3913 = vmatprep.subr.bf16.mxu0 0
        %3914 = vmatpush2.bf16.msra.mxu0 0
        %3915 = vmatprep.subr.bf16.mxu0 0
        %3916 = vmatpush2.bf16.msra.mxu0 0
        %3917 = vmatprep.subr.bf16.mxu0 0
        %3918 = vmatpush2.bf16.msra.mxu0 0
        %3919 = vmatprep.mubr.bf16.mxu0 0
        %3920 = vmatmul.mubr.bf16.gmra.mxu0 %v3821
        %v3921 = vpop.f32.mrf.mxu0
        %v3922 = vadd.f32 0.0, %v3921
        %v3923 = vpop.f32.mrf.mxu0
        %v3924 = vpop.f32.mrf.mxu0
        %v3925 = vadd.f32 0.0, %v3924
        %v3926 = vpop.f32.mrf.mxu0
        %3927 = vdwg.mxu0
        %v3928 = vadd.f32 %v3767, %v3922
        %v3929 = vadd.f32 %v3768, %v3925
        %s3930 = scalar_lea.vmem %s6, 32
        %v3931 = vld [vmem:[%s3930] sm:$0xf]
        %v3932 = vld [vmem:[%s3930 + $0x4] sm:$0xf]
        %v3935 = vunpack.c.l.b16 %v3931
        %v3936 = vunpack.c.l.b16 %v3932
        %v3937 = vpack.c.b16 %v3936, %v3935
        %v3939 = vsel %vm3298, %v3937, 0
        %3941 = vmatprep.subr.bf16.mxu0 0
        %3942 = vmatpush1.bf16.msra.mxu0 0
        %3943 = vmatprep.subr.bf16.mxu0 0
        %3944 = vmatpush1.bf16.msra.mxu0 0
        %3945 = vmatprep.subr.bf16.mxu0 0
        %3946 = vmatpush1.bf16.msra.mxu0 0
        %3947 = vmatprep.subr.bf16.mxu0 0
        %3948 = vmatpush1.bf16.msra.mxu0 0
        %3949 = vmatprep.subr.bf16.mxu0 0
        %3950 = vmatpush1.bf16.msra.mxu0 %v3290
        %3951 = vmatprep.subr.bf16.mxu0 0
        %3952 = vmatpush1.bf16.msra.mxu0 %v3289
        %3953 = vmatprep.subr.bf16.mxu0 0
        %3954 = vmatpush1.bf16.msra.mxu0 %v3288
        %3955 = vmatprep.subr.bf16.mxu0 0
        %3956 = vmatpush1.bf16.msra.mxu0 %v3287
        %3957 = vmatprep.subr.bf16.mxu0 0
        %3958 = vmatpush2.bf16.msra.mxu0 0
        %3959 = vmatprep.subr.bf16.mxu0 0
        %3960 = vmatpush2.bf16.msra.mxu0 0
        %3961 = vmatprep.subr.bf16.mxu0 0
        %3962 = vmatpush2.bf16.msra.mxu0 0
        %3963 = vmatprep.subr.bf16.mxu0 0
        %3964 = vmatpush2.bf16.msra.mxu0 0
        %3965 = vmatprep.subr.bf16.mxu0 0
        %3966 = vmatpush2.bf16.msra.mxu0 0
        %3967 = vmatprep.subr.bf16.mxu0 0
        %3968 = vmatpush2.bf16.msra.mxu0 0
        %3969 = vmatprep.subr.bf16.mxu0 0
        %3970 = vmatpush2.bf16.msra.mxu0 0
        %3971 = vmatprep.subr.bf16.mxu0 0
        %3972 = vmatpush2.bf16.msra.mxu0 0
        %3973 = vmatprep.mubr.bf16.mxu0 0
        %3974 = vmatmul.mubr.bf16.gmra.mxu0 %v3939
        %v3975 = vpop.f32.mrf.mxu0
        %v3976 = vadd.f32 0.0, %v3975
        %v3977 = vpop.f32.mrf.mxu0
        %v3978 = vpop.f32.mrf.mxu0
        %v3979 = vadd.f32 0.0, %v3978
        %v3980 = vpop.f32.mrf.mxu0
        %3981 = vdwg.mxu0
        %v3982 = vpack.c.bf16 %v3979, %v3976
        %s3983 = scalar_lea.vmem %s7, 256
        %v3984 = vld [vmem:[%s3983] sm:$0xf]
        %v3985 = vld [vmem:[%s3983 + $0x4] sm:$0xf]
        %v3986 = vld [vmem:[%s3983 + $0x8] sm:$0xf]
        %v3987 = vld [vmem:[%s3983 + $0xc] sm:$0xf]
        %v3988 = vld [vmem:[%s3983 + $0x10] sm:$0xf]
        %v3989 = vld [vmem:[%s3983 + $0x14] sm:$0xf]
        %v3990 = vld [vmem:[%s3983 + $0x18] sm:$0xf]
        %v3991 = vld [vmem:[%s3983 + $0x1c] sm:$0xf]
        %v3992 = vld [vmem:[%s3983 + $0x20] sm:$0xf]
        %v3993 = vld [vmem:[%s3983 + $0x24] sm:$0xf]
        %v3994 = vld [vmem:[%s3983 + $0x28] sm:$0xf]
        %v3995 = vld [vmem:[%s3983 + $0x2c] sm:$0xf]
        %v3996 = vld [vmem:[%s3983 + $0x30] sm:$0xf]
        %v3997 = vld [vmem:[%s3983 + $0x34] sm:$0xf]
        %v3998 = vld [vmem:[%s3983 + $0x38] sm:$0xf]
        %v3999 = vld [vmem:[%s3983 + $0x3c] sm:$0xf]
        %v4016 = vunpack.c.l.b16 %v3984
        %v4017 = vunpack.c.l.b16 %v3985
        %v4018 = vunpack.c.l.b16 %v3986
        %v4019 = vunpack.c.l.b16 %v3987
        %v4020 = vunpack.c.l.b16 %v3988
        %v4021 = vunpack.c.l.b16 %v3989
        %v4022 = vunpack.c.l.b16 %v3990
        %v4023 = vunpack.c.l.b16 %v3991
        %v4024 = vunpack.c.l.b16 %v3992
        %v4025 = vunpack.c.l.b16 %v3993
        %v4026 = vunpack.c.l.b16 %v3994
        %v4027 = vunpack.c.l.b16 %v3995
        %v4028 = vunpack.c.l.b16 %v3996
        %v4029 = vunpack.c.l.b16 %v3997
        %v4030 = vunpack.c.l.b16 %v3998
        %v4031 = vunpack.c.l.b16 %v3999
        %v4032 = vpack.c.b16 %v4017, %v4016
        %v4033 = vpack.c.b16 %v4019, %v4018
        %v4034 = vpack.c.b16 %v4021, %v4020
        %v4035 = vpack.c.b16 %v4023, %v4022
        %v4036 = vpack.c.b16 %v4025, %v4024
        %v4037 = vpack.c.b16 %v4027, %v4026
        %v4038 = vpack.c.b16 %v4029, %v4028
        %v4039 = vpack.c.b16 %v4031, %v4030
        %4048 = vmatprep.subr.bf16.mxu0 0
        %4049 = vmatpush1.bf16.msra.mxu0 %v4039
        %4050 = vmatprep.subr.bf16.mxu0 0
        %4051 = vmatpush1.bf16.msra.mxu0 %v4038
        %4052 = vmatprep.subr.bf16.mxu0 0
        %4053 = vmatpush1.bf16.msra.mxu0 %v4037
        %4054 = vmatprep.subr.bf16.mxu0 0
        %4055 = vmatpush1.bf16.msra.mxu0 %v4036
        %4056 = vmatprep.subr.bf16.mxu0 0
        %4057 = vmatpush1.bf16.msra.mxu0 %v4035
        %4058 = vmatprep.subr.bf16.mxu0 0
        %4059 = vmatpush1.bf16.msra.mxu0 %v4034
        %4060 = vmatprep.subr.bf16.mxu0 0
        %4061 = vmatpush1.bf16.msra.mxu0 %v4033
        %4062 = vmatprep.subr.bf16.mxu0 0
        %4063 = vmatpush1.bf16.msra.mxu0 %v4032
        %4064 = vmatprep.subr.bf16.mxu0 0
        %4065 = vmatpush2.bf16.msra.mxu0 0
        %4066 = vmatprep.subr.bf16.mxu0 0
        %4067 = vmatpush2.bf16.msra.mxu0 0
        %4068 = vmatprep.subr.bf16.mxu0 0
        %4069 = vmatpush2.bf16.msra.mxu0 0
        %4070 = vmatprep.subr.bf16.mxu0 0
        %4071 = vmatpush2.bf16.msra.mxu0 0
        %4072 = vmatprep.subr.bf16.mxu0 0
        %4073 = vmatpush2.bf16.msra.mxu0 0
        %4074 = vmatprep.subr.bf16.mxu0 0
        %4075 = vmatpush2.bf16.msra.mxu0 0
        %4076 = vmatprep.subr.bf16.mxu0 0
        %4077 = vmatpush2.bf16.msra.mxu0 0
        %4078 = vmatprep.subr.bf16.mxu0 0
        %4079 = vmatpush2.bf16.msra.mxu0 0
        %4080 = vmatprep.mubr.bf16.mxu0 0
        %4081 = vmatmul.mubr.bf16.gmra.mxu0 %v3982
        %v4082 = vpop.f32.mrf.mxu0
        %v4083 = vadd.f32 0.0, %v4082
        %v4084 = vpop.f32.mrf.mxu0
        %v4085 = vpop.f32.mrf.mxu0
        %v4086 = vadd.f32 0.0, %v4085
        %v4087 = vpop.f32.mrf.mxu0
        %4088 = vdwg.mxu0
        %v4089 = vadd.f32 %v3928, %v4083
        %v4090 = vadd.f32 %v3929, %v4086
        %s4091 = scalar_lea.vmem %s6, 40
        %v4092 = vld [vmem:[%s4091] sm:$0xf]
        %v4093 = vld [vmem:[%s4091 + $0x4] sm:$0xf]
        %v4096 = vunpack.c.l.b16 %v4092
        %v4097 = vunpack.c.l.b16 %v4093
        %v4098 = vpack.c.b16 %v4097, %v4096
        %v4100 = vsel %vm3298, %v4098, 0
        %4102 = vmatprep.subr.bf16.mxu0 0
        %4103 = vmatpush1.bf16.msra.mxu0 0
        %4104 = vmatprep.subr.bf16.mxu0 0
        %4105 = vmatpush1.bf16.msra.mxu0 0
        %4106 = vmatprep.subr.bf16.mxu0 0
        %4107 = vmatpush1.bf16.msra.mxu0 0
        %4108 = vmatprep.subr.bf16.mxu0 0
        %4109 = vmatpush1.bf16.msra.mxu0 0
        %4110 = vmatprep.subr.bf16.mxu0 0
        %4111 = vmatpush1.bf16.msra.mxu0 %v3290
        %4112 = vmatprep.subr.bf16.mxu0 0
        %4113 = vmatpush1.bf16.msra.mxu0 %v3289
        %4114 = vmatprep.subr.bf16.mxu0 0
        %4115 = vmatpush1.bf16.msra.mxu0 %v3288
        %4116 = vmatprep.subr.bf16.mxu0 0
        %4117 = vmatpush1.bf16.msra.mxu0 %v3287
        %4118 = vmatprep.subr.bf16.mxu0 0
        %4119 = vmatpush2.bf16.msra.mxu0 0
        %4120 = vmatprep.subr.bf16.mxu0 0
        %4121 = vmatpush2.bf16.msra.mxu0 0
        %4122 = vmatprep.subr.bf16.mxu0 0
        %4123 = vmatpush2.bf16.msra.mxu0 0
        %4124 = vmatprep.subr.bf16.mxu0 0
        %4125 = vmatpush2.bf16.msra.mxu0 0
        %4126 = vmatprep.subr.bf16.mxu0 0
        %4127 = vmatpush2.bf16.msra.mxu0 0
        %4128 = vmatprep.subr.bf16.mxu0 0
        %4129 = vmatpush2.bf16.msra.mxu0 0
        %4130 = vmatprep.subr.bf16.mxu0 0
        %4131 = vmatpush2.bf16.msra.mxu0 0
        %4132 = vmatprep.subr.bf16.mxu0 0
        %4133 = vmatpush2.bf16.msra.mxu0 0
        %4134 = vmatprep.mubr.bf16.mxu0 0
        %4135 = vmatmul.mubr.bf16.gmra.mxu0 %v4100
        %v4136 = vpop.f32.mrf.mxu0
        %v4137 = vadd.f32 0.0, %v4136
        %v4138 = vpop.f32.mrf.mxu0
        %v4139 = vpop.f32.mrf.mxu0
        %v4140 = vadd.f32 0.0, %v4139
        %v4141 = vpop.f32.mrf.mxu0
        %4142 = vdwg.mxu0
        %v4143 = vpack.c.bf16 %v4140, %v4137
        %s4144 = scalar_lea.vmem %s7, 320
        %v4145 = vld [vmem:[%s4144] sm:$0xf]
        %v4146 = vld [vmem:[%s4144 + $0x4] sm:$0xf]
        %v4147 = vld [vmem:[%s4144 + $0x8] sm:$0xf]
        %v4148 = vld [vmem:[%s4144 + $0xc] sm:$0xf]
        %v4149 = vld [vmem:[%s4144 + $0x10] sm:$0xf]
        %v4150 = vld [vmem:[%s4144 + $0x14] sm:$0xf]
        %v4151 = vld [vmem:[%s4144 + $0x18] sm:$0xf]
        %v4152 = vld [vmem:[%s4144 + $0x1c] sm:$0xf]
        %v4153 = vld [vmem:[%s4144 + $0x20] sm:$0xf]
        %v4154 = vld [vmem:[%s4144 + $0x24] sm:$0xf]
        %v4155 = vld [vmem:[%s4144 + $0x28] sm:$0xf]
        %v4156 = vld [vmem:[%s4144 + $0x2c] sm:$0xf]
        %v4157 = vld [vmem:[%s4144 + $0x30] sm:$0xf]
        %v4158 = vld [vmem:[%s4144 + $0x34] sm:$0xf]
        %v4159 = vld [vmem:[%s4144 + $0x38] sm:$0xf]
        %v4160 = vld [vmem:[%s4144 + $0x3c] sm:$0xf]
        %v4177 = vunpack.c.l.b16 %v4145
        %v4178 = vunpack.c.l.b16 %v4146
        %v4179 = vunpack.c.l.b16 %v4147
        %v4180 = vunpack.c.l.b16 %v4148
        %v4181 = vunpack.c.l.b16 %v4149
        %v4182 = vunpack.c.l.b16 %v4150
        %v4183 = vunpack.c.l.b16 %v4151
        %v4184 = vunpack.c.l.b16 %v4152
        %v4185 = vunpack.c.l.b16 %v4153
        %v4186 = vunpack.c.l.b16 %v4154
        %v4187 = vunpack.c.l.b16 %v4155
        %v4188 = vunpack.c.l.b16 %v4156
        %v4189 = vunpack.c.l.b16 %v4157
        %v4190 = vunpack.c.l.b16 %v4158
        %v4191 = vunpack.c.l.b16 %v4159
        %v4192 = vunpack.c.l.b16 %v4160
        %v4193 = vpack.c.b16 %v4178, %v4177
        %v4194 = vpack.c.b16 %v4180, %v4179
        %v4195 = vpack.c.b16 %v4182, %v4181
        %v4196 = vpack.c.b16 %v4184, %v4183
        %v4197 = vpack.c.b16 %v4186, %v4185
        %v4198 = vpack.c.b16 %v4188, %v4187
        %v4199 = vpack.c.b16 %v4190, %v4189
        %v4200 = vpack.c.b16 %v4192, %v4191
        %4209 = vmatprep.subr.bf16.mxu0 0
        %4210 = vmatpush1.bf16.msra.mxu0 %v4200
        %4211 = vmatprep.subr.bf16.mxu0 0
        %4212 = vmatpush1.bf16.msra.mxu0 %v4199
        %4213 = vmatprep.subr.bf16.mxu0 0
        %4214 = vmatpush1.bf16.msra.mxu0 %v4198
        %4215 = vmatprep.subr.bf16.mxu0 0
        %4216 = vmatpush1.bf16.msra.mxu0 %v4197
        %4217 = vmatprep.subr.bf16.mxu0 0
        %4218 = vmatpush1.bf16.msra.mxu0 %v4196
        %4219 = vmatprep.subr.bf16.mxu0 0
        %4220 = vmatpush1.bf16.msra.mxu0 %v4195
        %4221 = vmatprep.subr.bf16.mxu0 0
        %4222 = vmatpush1.bf16.msra.mxu0 %v4194
        %4223 = vmatprep.subr.bf16.mxu0 0
        %4224 = vmatpush1.bf16.msra.mxu0 %v4193
        %4225 = vmatprep.subr.bf16.mxu0 0
        %4226 = vmatpush2.bf16.msra.mxu0 0
        %4227 = vmatprep.subr.bf16.mxu0 0
        %4228 = vmatpush2.bf16.msra.mxu0 0
        %4229 = vmatprep.subr.bf16.mxu0 0
        %4230 = vmatpush2.bf16.msra.mxu0 0
        %4231 = vmatprep.subr.bf16.mxu0 0
        %4232 = vmatpush2.bf16.msra.mxu0 0
        %4233 = vmatprep.subr.bf16.mxu0 0
        %4234 = vmatpush2.bf16.msra.mxu0 0
        %4235 = vmatprep.subr.bf16.mxu0 0
        %4236 = vmatpush2.bf16.msra.mxu0 0
        %4237 = vmatprep.subr.bf16.mxu0 0
        %4238 = vmatpush2.bf16.msra.mxu0 0
        %4239 = vmatprep.subr.bf16.mxu0 0
        %4240 = vmatpush2.bf16.msra.mxu0 0
        %4241 = vmatprep.mubr.bf16.mxu0 0
        %4242 = vmatmul.mubr.bf16.gmra.mxu0 %v4143
        %v4243 = vpop.f32.mrf.mxu0
        %v4244 = vadd.f32 0.0, %v4243
        %v4245 = vpop.f32.mrf.mxu0
        %v4246 = vpop.f32.mrf.mxu0
        %v4247 = vadd.f32 0.0, %v4246
        %v4248 = vpop.f32.mrf.mxu0
        %4249 = vdwg.mxu0
        %v4250 = vadd.f32 %v4089, %v4244
        %v4251 = vadd.f32 %v4090, %v4247
        %s4252 = scalar_lea.vmem %s6, 48
        %v4253 = vld [vmem:[%s4252] sm:$0xf]
        %v4254 = vld [vmem:[%s4252 + $0x4] sm:$0xf]
        %v4257 = vunpack.c.l.b16 %v4253
        %v4258 = vunpack.c.l.b16 %v4254
        %v4259 = vpack.c.b16 %v4258, %v4257
        %v4261 = vsel %vm3298, %v4259, 0
        %4263 = vmatprep.subr.bf16.mxu0 0
        %4264 = vmatpush1.bf16.msra.mxu0 0
        %4265 = vmatprep.subr.bf16.mxu0 0
        %4266 = vmatpush1.bf16.msra.mxu0 0
        %4267 = vmatprep.subr.bf16.mxu0 0
        %4268 = vmatpush1.bf16.msra.mxu0 0
        %4269 = vmatprep.subr.bf16.mxu0 0
        %4270 = vmatpush1.bf16.msra.mxu0 0
        %4271 = vmatprep.subr.bf16.mxu0 0
        %4272 = vmatpush1.bf16.msra.mxu0 %v3290
        %4273 = vmatprep.subr.bf16.mxu0 0
        %4274 = vmatpush1.bf16.msra.mxu0 %v3289
        %4275 = vmatprep.subr.bf16.mxu0 0
        %4276 = vmatpush1.bf16.msra.mxu0 %v3288
        %4277 = vmatprep.subr.bf16.mxu0 0
        %4278 = vmatpush1.bf16.msra.mxu0 %v3287
        %4279 = vmatprep.subr.bf16.mxu0 0
        %4280 = vmatpush2.bf16.msra.mxu0 0
        %4281 = vmatprep.subr.bf16.mxu0 0
        %4282 = vmatpush2.bf16.msra.mxu0 0
        %4283 = vmatprep.subr.bf16.mxu0 0
        %4284 = vmatpush2.bf16.msra.mxu0 0
        %4285 = vmatprep.subr.bf16.mxu0 0
        %4286 = vmatpush2.bf16.msra.mxu0 0
        %4287 = vmatprep.subr.bf16.mxu0 0
        %4288 = vmatpush2.bf16.msra.mxu0 0
        %4289 = vmatprep.subr.bf16.mxu0 0
        %4290 = vmatpush2.bf16.msra.mxu0 0
        %4291 = vmatprep.subr.bf16.mxu0 0
        %4292 = vmatpush2.bf16.msra.mxu0 0
        %4293 = vmatprep.subr.bf16.mxu0 0
        %4294 = vmatpush2.bf16.msra.mxu0 0
        %4295 = vmatprep.mubr.bf16.mxu0 0
        %4296 = vmatmul.mubr.bf16.gmra.mxu0 %v4261
        %v4297 = vpop.f32.mrf.mxu0
        %v4298 = vadd.f32 0.0, %v4297
        %v4299 = vpop.f32.mrf.mxu0
        %v4300 = vpop.f32.mrf.mxu0
        %v4301 = vadd.f32 0.0, %v4300
        %v4302 = vpop.f32.mrf.mxu0
        %4303 = vdwg.mxu0
        %v4304 = vpack.c.bf16 %v4301, %v4298
        %s4305 = scalar_lea.vmem %s7, 384
        %v4306 = vld [vmem:[%s4305] sm:$0xf]
        %v4307 = vld [vmem:[%s4305 + $0x4] sm:$0xf]
        %v4308 = vld [vmem:[%s4305 + $0x8] sm:$0xf]
        %v4309 = vld [vmem:[%s4305 + $0xc] sm:$0xf]
        %v4310 = vld [vmem:[%s4305 + $0x10] sm:$0xf]
        %v4311 = vld [vmem:[%s4305 + $0x14] sm:$0xf]
        %v4312 = vld [vmem:[%s4305 + $0x18] sm:$0xf]
        %v4313 = vld [vmem:[%s4305 + $0x1c] sm:$0xf]
        %v4314 = vld [vmem:[%s4305 + $0x20] sm:$0xf]
        %v4315 = vld [vmem:[%s4305 + $0x24] sm:$0xf]
        %v4316 = vld [vmem:[%s4305 + $0x28] sm:$0xf]
        %v4317 = vld [vmem:[%s4305 + $0x2c] sm:$0xf]
        %v4318 = vld [vmem:[%s4305 + $0x30] sm:$0xf]
        %v4319 = vld [vmem:[%s4305 + $0x34] sm:$0xf]
        %v4320 = vld [vmem:[%s4305 + $0x38] sm:$0xf]
        %v4321 = vld [vmem:[%s4305 + $0x3c] sm:$0xf]
        %v4338 = vunpack.c.l.b16 %v4306
        %v4339 = vunpack.c.l.b16 %v4307
        %v4340 = vunpack.c.l.b16 %v4308
        %v4341 = vunpack.c.l.b16 %v4309
        %v4342 = vunpack.c.l.b16 %v4310
        %v4343 = vunpack.c.l.b16 %v4311
        %v4344 = vunpack.c.l.b16 %v4312
        %v4345 = vunpack.c.l.b16 %v4313
        %v4346 = vunpack.c.l.b16 %v4314
        %v4347 = vunpack.c.l.b16 %v4315
        %v4348 = vunpack.c.l.b16 %v4316
        %v4349 = vunpack.c.l.b16 %v4317
        %v4350 = vunpack.c.l.b16 %v4318
        %v4351 = vunpack.c.l.b16 %v4319
        %v4352 = vunpack.c.l.b16 %v4320
        %v4353 = vunpack.c.l.b16 %v4321
        %v4354 = vpack.c.b16 %v4339, %v4338
        %v4355 = vpack.c.b16 %v4341, %v4340
        %v4356 = vpack.c.b16 %v4343, %v4342
        %v4357 = vpack.c.b16 %v4345, %v4344
        %v4358 = vpack.c.b16 %v4347, %v4346
        %v4359 = vpack.c.b16 %v4349, %v4348
        %v4360 = vpack.c.b16 %v4351, %v4350
        %v4361 = vpack.c.b16 %v4353, %v4352
        %4370 = vmatprep.subr.bf16.mxu0 0
        %4371 = vmatpush1.bf16.msra.mxu0 %v4361
        %4372 = vmatprep.subr.bf16.mxu0 0
        %4373 = vmatpush1.bf16.msra.mxu0 %v4360
        %4374 = vmatprep.subr.bf16.mxu0 0
        %4375 = vmatpush1.bf16.msra.mxu0 %v4359
        %4376 = vmatprep.subr.bf16.mxu0 0
        %4377 = vmatpush1.bf16.msra.mxu0 %v4358
        %4378 = vmatprep.subr.bf16.mxu0 0
        %4379 = vmatpush1.bf16.msra.mxu0 %v4357
        %4380 = vmatprep.subr.bf16.mxu0 0
        %4381 = vmatpush1.bf16.msra.mxu0 %v4356
        %4382 = vmatprep.subr.bf16.mxu0 0
        %4383 = vmatpush1.bf16.msra.mxu0 %v4355
        %4384 = vmatprep.subr.bf16.mxu0 0
        %4385 = vmatpush1.bf16.msra.mxu0 %v4354
        %4386 = vmatprep.subr.bf16.mxu0 0
        %4387 = vmatpush2.bf16.msra.mxu0 0
        %4388 = vmatprep.subr.bf16.mxu0 0
        %4389 = vmatpush2.bf16.msra.mxu0 0
        %4390 = vmatprep.subr.bf16.mxu0 0
        %4391 = vmatpush2.bf16.msra.mxu0 0
        %4392 = vmatprep.subr.bf16.mxu0 0
        %4393 = vmatpush2.bf16.msra.mxu0 0
        %4394 = vmatprep.subr.bf16.mxu0 0
        %4395 = vmatpush2.bf16.msra.mxu0 0
        %4396 = vmatprep.subr.bf16.mxu0 0
        %4397 = vmatpush2.bf16.msra.mxu0 0
        %4398 = vmatprep.subr.bf16.mxu0 0
        %4399 = vmatpush2.bf16.msra.mxu0 0
        %4400 = vmatprep.subr.bf16.mxu0 0
        %4401 = vmatpush2.bf16.msra.mxu0 0
        %4402 = vmatprep.mubr.bf16.mxu0 0
        %4403 = vmatmul.mubr.bf16.gmra.mxu0 %v4304
        %v4404 = vpop.f32.mrf.mxu0
        %v4405 = vadd.f32 0.0, %v4404
        %v4406 = vpop.f32.mrf.mxu0
        %v4407 = vpop.f32.mrf.mxu0
        %v4408 = vadd.f32 0.0, %v4407
        %v4409 = vpop.f32.mrf.mxu0
        %4410 = vdwg.mxu0
        %v4411 = vadd.f32 %v4250, %v4405
        %v4412 = vadd.f32 %v4251, %v4408
        %s4413 = scalar_lea.vmem %s6, 56
        %v4414 = vld [vmem:[%s4413] sm:$0xf]
        %v4415 = vld [vmem:[%s4413 + $0x4] sm:$0xf]
        %v4418 = vunpack.c.l.b16 %v4414
        %v4419 = vunpack.c.l.b16 %v4415
        %v4420 = vpack.c.b16 %v4419, %v4418
        %v4422 = vsel %vm3298, %v4420, 0
        %4424 = vmatprep.subr.bf16.mxu0 0
        %4425 = vmatpush1.bf16.msra.mxu0 0
        %4426 = vmatprep.subr.bf16.mxu0 0
        %4427 = vmatpush1.bf16.msra.mxu0 0
        %4428 = vmatprep.subr.bf16.mxu0 0
        %4429 = vmatpush1.bf16.msra.mxu0 0
        %4430 = vmatprep.subr.bf16.mxu0 0
        %4431 = vmatpush1.bf16.msra.mxu0 0
        %4432 = vmatprep.subr.bf16.mxu0 0
        %4433 = vmatpush1.bf16.msra.mxu0 %v3290
        %4434 = vmatprep.subr.bf16.mxu0 0
        %4435 = vmatpush1.bf16.msra.mxu0 %v3289
        %4436 = vmatprep.subr.bf16.mxu0 0
        %4437 = vmatpush1.bf16.msra.mxu0 %v3288
        %4438 = vmatprep.subr.bf16.mxu0 0
        %4439 = vmatpush1.bf16.msra.mxu0 %v3287
        %4440 = vmatprep.subr.bf16.mxu0 0
        %4441 = vmatpush2.bf16.msra.mxu0 0
        %4442 = vmatprep.subr.bf16.mxu0 0
        %4443 = vmatpush2.bf16.msra.mxu0 0
        %4444 = vmatprep.subr.bf16.mxu0 0
        %4445 = vmatpush2.bf16.msra.mxu0 0
        %4446 = vmatprep.subr.bf16.mxu0 0
        %4447 = vmatpush2.bf16.msra.mxu0 0
        %4448 = vmatprep.subr.bf16.mxu0 0
        %4449 = vmatpush2.bf16.msra.mxu0 0
        %4450 = vmatprep.subr.bf16.mxu0 0
        %4451 = vmatpush2.bf16.msra.mxu0 0
        %4452 = vmatprep.subr.bf16.mxu0 0
        %4453 = vmatpush2.bf16.msra.mxu0 0
        %4454 = vmatprep.subr.bf16.mxu0 0
        %4455 = vmatpush2.bf16.msra.mxu0 0
        %4456 = vmatprep.mubr.bf16.mxu0 0
        %4457 = vmatmul.mubr.bf16.gmra.mxu0 %v4422
        %v4458 = vpop.f32.mrf.mxu0
        %v4459 = vadd.f32 0.0, %v4458
        %v4460 = vpop.f32.mrf.mxu0
        %v4461 = vpop.f32.mrf.mxu0
        %v4462 = vadd.f32 0.0, %v4461
        %v4463 = vpop.f32.mrf.mxu0
        %4464 = vdwg.mxu0
        %v4465 = vpack.c.bf16 %v4462, %v4459
        %s4466 = scalar_lea.vmem %s7, 448
        %v4467 = vld [vmem:[%s4466] sm:$0xf]
        %v4468 = vld [vmem:[%s4466 + $0x4] sm:$0xf]
        %v4469 = vld [vmem:[%s4466 + $0x8] sm:$0xf]
        %v4470 = vld [vmem:[%s4466 + $0xc] sm:$0xf]
        %v4471 = vld [vmem:[%s4466 + $0x10] sm:$0xf]
        %v4472 = vld [vmem:[%s4466 + $0x14] sm:$0xf]
        %v4473 = vld [vmem:[%s4466 + $0x18] sm:$0xf]
        %v4474 = vld [vmem:[%s4466 + $0x1c] sm:$0xf]
        %v4475 = vld [vmem:[%s4466 + $0x20] sm:$0xf]
        %v4476 = vld [vmem:[%s4466 + $0x24] sm:$0xf]
        %v4477 = vld [vmem:[%s4466 + $0x28] sm:$0xf]
        %v4478 = vld [vmem:[%s4466 + $0x2c] sm:$0xf]
        %v4479 = vld [vmem:[%s4466 + $0x30] sm:$0xf]
        %v4480 = vld [vmem:[%s4466 + $0x34] sm:$0xf]
        %v4481 = vld [vmem:[%s4466 + $0x38] sm:$0xf]
        %v4482 = vld [vmem:[%s4466 + $0x3c] sm:$0xf]
        %v4499 = vunpack.c.l.b16 %v4467
        %v4500 = vunpack.c.l.b16 %v4468
        %v4501 = vunpack.c.l.b16 %v4469
        %v4502 = vunpack.c.l.b16 %v4470
        %v4503 = vunpack.c.l.b16 %v4471
        %v4504 = vunpack.c.l.b16 %v4472
        %v4505 = vunpack.c.l.b16 %v4473
        %v4506 = vunpack.c.l.b16 %v4474
        %v4507 = vunpack.c.l.b16 %v4475
        %v4508 = vunpack.c.l.b16 %v4476
        %v4509 = vunpack.c.l.b16 %v4477
        %v4510 = vunpack.c.l.b16 %v4478
        %v4511 = vunpack.c.l.b16 %v4479
        %v4512 = vunpack.c.l.b16 %v4480
        %v4513 = vunpack.c.l.b16 %v4481
        %v4514 = vunpack.c.l.b16 %v4482
        %v4515 = vpack.c.b16 %v4500, %v4499
        %v4516 = vpack.c.b16 %v4502, %v4501
        %v4517 = vpack.c.b16 %v4504, %v4503
        %v4518 = vpack.c.b16 %v4506, %v4505
        %v4519 = vpack.c.b16 %v4508, %v4507
        %v4520 = vpack.c.b16 %v4510, %v4509
        %v4521 = vpack.c.b16 %v4512, %v4511
        %v4522 = vpack.c.b16 %v4514, %v4513
        %4531 = vmatprep.subr.bf16.mxu0 0
        %4532 = vmatpush1.bf16.msra.mxu0 %v4522
        %4533 = vmatprep.subr.bf16.mxu0 0
        %4534 = vmatpush1.bf16.msra.mxu0 %v4521
        %4535 = vmatprep.subr.bf16.mxu0 0
        %4536 = vmatpush1.bf16.msra.mxu0 %v4520
        %4537 = vmatprep.subr.bf16.mxu0 0
        %4538 = vmatpush1.bf16.msra.mxu0 %v4519
        %4539 = vmatprep.subr.bf16.mxu0 0
        %4540 = vmatpush1.bf16.msra.mxu0 %v4518
        %4541 = vmatprep.subr.bf16.mxu0 0
        %4542 = vmatpush1.bf16.msra.mxu0 %v4517
        %4543 = vmatprep.subr.bf16.mxu0 0
        %4544 = vmatpush1.bf16.msra.mxu0 %v4516
        %4545 = vmatprep.subr.bf16.mxu0 0
        %4546 = vmatpush1.bf16.msra.mxu0 %v4515
        %4547 = vmatprep.subr.bf16.mxu0 0
        %4548 = vmatpush2.bf16.msra.mxu0 0
        %4549 = vmatprep.subr.bf16.mxu0 0
        %4550 = vmatpush2.bf16.msra.mxu0 0
        %4551 = vmatprep.subr.bf16.mxu0 0
        %4552 = vmatpush2.bf16.msra.mxu0 0
        %4553 = vmatprep.subr.bf16.mxu0 0
        %4554 = vmatpush2.bf16.msra.mxu0 0
        %4555 = vmatprep.subr.bf16.mxu0 0
        %4556 = vmatpush2.bf16.msra.mxu0 0
        %4557 = vmatprep.subr.bf16.mxu0 0
        %4558 = vmatpush2.bf16.msra.mxu0 0
        %4559 = vmatprep.subr.bf16.mxu0 0
        %4560 = vmatpush2.bf16.msra.mxu0 0
        %4561 = vmatprep.subr.bf16.mxu0 0
        %4562 = vmatpush2.bf16.msra.mxu0 0
        %4563 = vmatprep.mubr.bf16.mxu0 0
        %4564 = vmatmul.mubr.bf16.gmra.mxu0 %v4465
        %v4565 = vpop.f32.mrf.mxu0
        %v4566 = vadd.f32 0.0, %v4565
        %v4567 = vpop.f32.mrf.mxu0
        %v4568 = vpop.f32.mrf.mxu0
        %v4569 = vadd.f32 0.0, %v4568
        %v4570 = vpop.f32.mrf.mxu0
        %4571 = vdwg.mxu0
        %v4572 = vadd.f32 %v4411, %v4566
        %v4573 = vadd.f32 %v4412, %v4569
        %s4574 = scalar_lea.vmem %s6, 64
        %v4575 = vld [vmem:[%s4574] sm:$0xf]
        %v4576 = vld [vmem:[%s4574 + $0x4] sm:$0xf]
        %v4579 = vunpack.c.l.b16 %v4575
        %v4580 = vunpack.c.l.b16 %v4576
        %v4581 = vpack.c.b16 %v4580, %v4579
        %v4583 = vsel %vm3298, %v4581, 0
        %4585 = vmatprep.subr.bf16.mxu0 0
        %4586 = vmatpush1.bf16.msra.mxu0 0
        %4587 = vmatprep.subr.bf16.mxu0 0
        %4588 = vmatpush1.bf16.msra.mxu0 0
        %4589 = vmatprep.subr.bf16.mxu0 0
        %4590 = vmatpush1.bf16.msra.mxu0 0
        %4591 = vmatprep.subr.bf16.mxu0 0
        %4592 = vmatpush1.bf16.msra.mxu0 0
        %4593 = vmatprep.subr.bf16.mxu0 0
        %4594 = vmatpush1.bf16.msra.mxu0 %v3290
        %4595 = vmatprep.subr.bf16.mxu0 0
        %4596 = vmatpush1.bf16.msra.mxu0 %v3289
        %4597 = vmatprep.subr.bf16.mxu0 0
        %4598 = vmatpush1.bf16.msra.mxu0 %v3288
        %4599 = vmatprep.subr.bf16.mxu0 0
        %4600 = vmatpush1.bf16.msra.mxu0 %v3287
        %4601 = vmatprep.subr.bf16.mxu0 0
        %4602 = vmatpush2.bf16.msra.mxu0 0
        %4603 = vmatprep.subr.bf16.mxu0 0
        %4604 = vmatpush2.bf16.msra.mxu0 0
        %4605 = vmatprep.subr.bf16.mxu0 0
        %4606 = vmatpush2.bf16.msra.mxu0 0
        %4607 = vmatprep.subr.bf16.mxu0 0
        %4608 = vmatpush2.bf16.msra.mxu0 0
        %4609 = vmatprep.subr.bf16.mxu0 0
        %4610 = vmatpush2.bf16.msra.mxu0 0
        %4611 = vmatprep.subr.bf16.mxu0 0
        %4612 = vmatpush2.bf16.msra.mxu0 0
        %4613 = vmatprep.subr.bf16.mxu0 0
        %4614 = vmatpush2.bf16.msra.mxu0 0
        %4615 = vmatprep.subr.bf16.mxu0 0
        %4616 = vmatpush2.bf16.msra.mxu0 0
        %4617 = vmatprep.mubr.bf16.mxu0 0
        %4618 = vmatmul.mubr.bf16.gmra.mxu0 %v4583
        %v4619 = vpop.f32.mrf.mxu0
        %v4620 = vadd.f32 0.0, %v4619
        %v4621 = vpop.f32.mrf.mxu0
        %v4622 = vpop.f32.mrf.mxu0
        %v4623 = vadd.f32 0.0, %v4622
        %v4624 = vpop.f32.mrf.mxu0
        %4625 = vdwg.mxu0
        %v4626 = vpack.c.bf16 %v4623, %v4620
        %s4627 = scalar_lea.vmem %s7, 512
        %v4628 = vld [vmem:[%s4627] sm:$0xf]
        %v4629 = vld [vmem:[%s4627 + $0x4] sm:$0xf]
        %v4630 = vld [vmem:[%s4627 + $0x8] sm:$0xf]
        %v4631 = vld [vmem:[%s4627 + $0xc] sm:$0xf]
        %v4632 = vld [vmem:[%s4627 + $0x10] sm:$0xf]
        %v4633 = vld [vmem:[%s4627 + $0x14] sm:$0xf]
        %v4634 = vld [vmem:[%s4627 + $0x18] sm:$0xf]
        %v4635 = vld [vmem:[%s4627 + $0x1c] sm:$0xf]
        %v4636 = vld [vmem:[%s4627 + $0x20] sm:$0xf]
        %v4637 = vld [vmem:[%s4627 + $0x24] sm:$0xf]
        %v4638 = vld [vmem:[%s4627 + $0x28] sm:$0xf]
        %v4639 = vld [vmem:[%s4627 + $0x2c] sm:$0xf]
        %v4640 = vld [vmem:[%s4627 + $0x30] sm:$0xf]
        %v4641 = vld [vmem:[%s4627 + $0x34] sm:$0xf]
        %v4642 = vld [vmem:[%s4627 + $0x38] sm:$0xf]
        %v4643 = vld [vmem:[%s4627 + $0x3c] sm:$0xf]
        %v4660 = vunpack.c.l.b16 %v4628
        %v4661 = vunpack.c.l.b16 %v4629
        %v4662 = vunpack.c.l.b16 %v4630
        %v4663 = vunpack.c.l.b16 %v4631
        %v4664 = vunpack.c.l.b16 %v4632
        %v4665 = vunpack.c.l.b16 %v4633
        %v4666 = vunpack.c.l.b16 %v4634
        %v4667 = vunpack.c.l.b16 %v4635
        %v4668 = vunpack.c.l.b16 %v4636
        %v4669 = vunpack.c.l.b16 %v4637
        %v4670 = vunpack.c.l.b16 %v4638
        %v4671 = vunpack.c.l.b16 %v4639
        %v4672 = vunpack.c.l.b16 %v4640
        %v4673 = vunpack.c.l.b16 %v4641
        %v4674 = vunpack.c.l.b16 %v4642
        %v4675 = vunpack.c.l.b16 %v4643
        %v4676 = vpack.c.b16 %v4661, %v4660
        %v4677 = vpack.c.b16 %v4663, %v4662
        %v4678 = vpack.c.b16 %v4665, %v4664
        %v4679 = vpack.c.b16 %v4667, %v4666
        %v4680 = vpack.c.b16 %v4669, %v4668
        %v4681 = vpack.c.b16 %v4671, %v4670
        %v4682 = vpack.c.b16 %v4673, %v4672
        %v4683 = vpack.c.b16 %v4675, %v4674
        %4692 = vmatprep.subr.bf16.mxu0 0
        %4693 = vmatpush1.bf16.msra.mxu0 %v4683
        %4694 = vmatprep.subr.bf16.mxu0 0
        %4695 = vmatpush1.bf16.msra.mxu0 %v4682
        %4696 = vmatprep.subr.bf16.mxu0 0
        %4697 = vmatpush1.bf16.msra.mxu0 %v4681
        %4698 = vmatprep.subr.bf16.mxu0 0
        %4699 = vmatpush1.bf16.msra.mxu0 %v4680
        %4700 = vmatprep.subr.bf16.mxu0 0
        %4701 = vmatpush1.bf16.msra.mxu0 %v4679
        %4702 = vmatprep.subr.bf16.mxu0 0
        %4703 = vmatpush1.bf16.msra.mxu0 %v4678
        %4704 = vmatprep.subr.bf16.mxu0 0
        %4705 = vmatpush1.bf16.msra.mxu0 %v4677
        %4706 = vmatprep.subr.bf16.mxu0 0
        %4707 = vmatpush1.bf16.msra.mxu0 %v4676
        %4708 = vmatprep.subr.bf16.mxu0 0
        %4709 = vmatpush2.bf16.msra.mxu0 0
        %4710 = vmatprep.subr.bf16.mxu0 0
        %4711 = vmatpush2.bf16.msra.mxu0 0
        %4712 = vmatprep.subr.bf16.mxu0 0
        %4713 = vmatpush2.bf16.msra.mxu0 0
        %4714 = vmatprep.subr.bf16.mxu0 0
        %4715 = vmatpush2.bf16.msra.mxu0 0
        %4716 = vmatprep.subr.bf16.mxu0 0
        %4717 = vmatpush2.bf16.msra.mxu0 0
        %4718 = vmatprep.subr.bf16.mxu0 0
        %4719 = vmatpush2.bf16.msra.mxu0 0
        %4720 = vmatprep.subr.bf16.mxu0 0
        %4721 = vmatpush2.bf16.msra.mxu0 0
        %4722 = vmatprep.subr.bf16.mxu0 0
        %4723 = vmatpush2.bf16.msra.mxu0 0
        %4724 = vmatprep.mubr.bf16.mxu0 0
        %4725 = vmatmul.mubr.bf16.gmra.mxu0 %v4626
        %v4726 = vpop.f32.mrf.mxu0
        %v4727 = vadd.f32 0.0, %v4726
        %v4728 = vpop.f32.mrf.mxu0
        %v4729 = vpop.f32.mrf.mxu0
        %v4730 = vadd.f32 0.0, %v4729
        %v4731 = vpop.f32.mrf.mxu0
        %4732 = vdwg.mxu0
        %v4733 = vadd.f32 %v4572, %v4727
        %v4734 = vadd.f32 %v4573, %v4730
        %v4735 = vld [vmem:[%s8] sm:$0x1]
        %v4737 = vlaneseq
        %v4738 = vshrl.u32 %v4737, 7
        %v4739 = vsub.s32 0, %v4738
        %v4740 = vrot.slane %v4735, %v4739
        %v4742 = vadd.f32 %v4733, %v4740
        %v4743 = vadd.f32 %v4734, %v4740
        %v4744 = vsub.f32 0.0, %v4742
        %v4745 = vsub.f32 0.0, %v4743
        %v4746 = vmul.f32 %v4744, 1.442695
        %v4747 = vpow.pop %v4746
        %v4748 = vmul.f32 %v4745, 1.442695
        %v4749 = vpow.pop %v4748
        %v4750 = vadd.f32 %v4747, 1.0
        %v4751 = vadd.f32 %v4749, 1.0
        %v4752 = vrcp.pop %v4750
        %v4753 = vmul.f32 %v4742, %v4752
        %v4754 = vrcp.pop %v4751
        %v4755 = vmul.f32 %v4743, %v4754
        %v4756 = vpack.c.bf16 %v4755, %v4753
        %v4757 = vld [vmem:[%s9] sm:$0xf]
        %v4758 = vld [vmem:[%s9 + $0x4] sm:$0xf]
        %v4759 = vld [vmem:[%s9 + $0x8] sm:$0xf]
        %v4760 = vld [vmem:[%s9 + $0xc] sm:$0xf]
        %v4761 = vld [vmem:[%s9 + $0x10] sm:$0xf]
        %v4762 = vld [vmem:[%s9 + $0x14] sm:$0xf]
        %v4763 = vld [vmem:[%s9 + $0x18] sm:$0xf]
        %v4764 = vld [vmem:[%s9 + $0x1c] sm:$0xf]
        %v4765 = vld [vmem:[%s9 + $0x20] sm:$0xf]
        %v4766 = vld [vmem:[%s9 + $0x24] sm:$0xf]
        %v4767 = vld [vmem:[%s9 + $0x28] sm:$0xf]
        %v4768 = vld [vmem:[%s9 + $0x2c] sm:$0xf]
        %v4769 = vld [vmem:[%s9 + $0x30] sm:$0xf]
        %v4770 = vld [vmem:[%s9 + $0x34] sm:$0xf]
        %v4771 = vld [vmem:[%s9 + $0x38] sm:$0xf]
        %v4772 = vld [vmem:[%s9 + $0x3c] sm:$0xf]
        %v4789 = vunpack.c.l.b16 %v4757
        %v4790 = vunpack.c.l.b16 %v4758
        %v4791 = vunpack.c.l.b16 %v4759
        %v4792 = vunpack.c.l.b16 %v4760
        %v4793 = vunpack.c.l.b16 %v4761
        %v4794 = vunpack.c.l.b16 %v4762
        %v4795 = vunpack.c.l.b16 %v4763
        %v4796 = vunpack.c.l.b16 %v4764
        %v4797 = vunpack.c.l.b16 %v4765
        %v4798 = vunpack.c.l.b16 %v4766
        %v4799 = vunpack.c.l.b16 %v4767
        %v4800 = vunpack.c.l.b16 %v4768
        %v4801 = vunpack.c.l.b16 %v4769
        %v4802 = vunpack.c.l.b16 %v4770
        %v4803 = vunpack.c.l.b16 %v4771
        %v4804 = vunpack.c.l.b16 %v4772
        %v4805 = vpack.c.b16 %v4790, %v4789
        %v4806 = vpack.c.b16 %v4792, %v4791
        %v4807 = vpack.c.b16 %v4794, %v4793
        %v4808 = vpack.c.b16 %v4796, %v4795
        %v4809 = vpack.c.b16 %v4798, %v4797
        %v4810 = vpack.c.b16 %v4800, %v4799
        %v4811 = vpack.c.b16 %v4802, %v4801
        %v4812 = vpack.c.b16 %v4804, %v4803
        %4821 = vmatprep.subr.bf16.mxu0 0
        %4822 = vmatpush1.bf16.msra.mxu0 %v4812
        %4823 = vmatprep.subr.bf16.mxu0 0
        %4824 = vmatpush1.bf16.msra.mxu0 %v4811
        %4825 = vmatprep.subr.bf16.mxu0 0
        %4826 = vmatpush1.bf16.msra.mxu0 %v4810
        %4827 = vmatprep.subr.bf16.mxu0 0
        %4828 = vmatpush1.bf16.msra.mxu0 %v4809
        %4829 = vmatprep.subr.bf16.mxu0 0
        %4830 = vmatpush1.bf16.msra.mxu0 %v4808
        %4831 = vmatprep.subr.bf16.mxu0 0
        %4832 = vmatpush1.bf16.msra.mxu0 %v4807
        %4833 = vmatprep.subr.bf16.mxu0 0
        %4834 = vmatpush1.bf16.msra.mxu0 %v4806
        %4835 = vmatprep.subr.bf16.mxu0 0
        %4836 = vmatpush1.bf16.msra.mxu0 %v4805
        %4837 = vmatprep.subr.bf16.mxu0 0
        %4838 = vmatpush2.bf16.msra.mxu0 0
        %4839 = vmatprep.subr.bf16.mxu0 0
        %4840 = vmatpush2.bf16.msra.mxu0 0
        %4841 = vmatprep.subr.bf16.mxu0 0
        %4842 = vmatpush2.bf16.msra.mxu0 0
        %4843 = vmatprep.subr.bf16.mxu0 0
        %4844 = vmatpush2.bf16.msra.mxu0 0
        %4845 = vmatprep.subr.bf16.mxu0 0
        %4846 = vmatpush2.bf16.msra.mxu0 0
        %4847 = vmatprep.subr.bf16.mxu0 0
        %4848 = vmatpush2.bf16.msra.mxu0 0
        %4849 = vmatprep.subr.bf16.mxu0 0
        %4850 = vmatpush2.bf16.msra.mxu0 0
        %4851 = vmatprep.subr.bf16.mxu0 0
        %4852 = vmatpush2.bf16.msra.mxu0 0
        %4853 = vmatprep.mubr.bf16.mxu0 0
        %4854 = vmatmul.mubr.bf16.gmra.mxu0 %v4756
        %v4855 = vpop.f32.mrf.mxu0
        %v4856 = vadd.f32 0.0, %v4855
        %v4857 = vpop.f32.mrf.mxu0
        %v4858 = vpop.f32.mrf.mxu0
        %v4859 = vadd.f32 0.0, %v4858
        %v4860 = vpop.f32.mrf.mxu0
        %4861 = vdwg.mxu0
        %v4862 = vadd.f32 %v4856, %v4859
        %v4863 = vrot.slane %v4862, 4
        %v4864 = vadd.f32 %v4862, %v4863
        %v4865 = vrot.slane %v4864, 2
        %v4866 = vadd.f32 %v4864, %v4865
        %v4867 = vrot.slane %v4866, 1
        %v4868 = vadd.f32 %v4866, %v4867
        %v4869 = vrcp.pop 16.0
        %v4870 = vmul.f32 %v4868, %v4869
        %v4871 = vld [vmem:[%s10] sm:$0x1]
        %v4872 = vadd.f32 %v4870, %v4871
        %4873 = vst [vmem:[%s378] sm:$0x1] %v4872
        %s4874 = sand.u32 %s269, 1
        %s4875 = scalar_lea.sflag [#allocation3], %s4874
        %s4876 = sand.u32 %s269, 1
        %s4877 = scalar_lea.vmem [#allocation2], %s4876
        // Predicated region
        $region65: #{covidnext50_forward.1} parent=63 // pred_check
          %p4878 = pneg %p279
        $region66: #{covidnext50_forward.1} parent=63 // pred_check_branch
          %4880 = sbr.rel (%p4878) target = $region68
        $region67: #{covidnext50_forward.1} parent=63 // pred_region
          %s4882 = ssub.s32 16, 16
          %4883 = vsyncadd %s4875, %s4882
          %s4884 = smul.addr %s25, 16
          %s4885 = scalar_lea.hbm %s11, %s4884
          %s4887 = sshll.u32 %s4877, 4
          %s4888 = int_to_ptr.vmem [resolvable:$true] %s4887
          %4890 = dma.vmem_to_hbm [thread:$0]  %s4888, 16, %s4885, %s4875
        $region68: #{covidnext50_forward.1} parent=63 // pred_fallthru
          _
      $region64: #{covidnext50_forward.1} parent=5 // pred_fallthru
        _
      %p4891 = scmp.le.s32.totalorder 2, %s20
      // Predicated region
      $region69: #{covidnext50_forward.1} parent=5 // pred_check
        %p4892 = pneg %p4891
      $region70: #{covidnext50_forward.1} parent=5 // pred_check_branch
        %4894 = sbr.rel (%p4892) target = $region72
      $region71: #{covidnext50_forward.1} parent=5 // pred_region
        %s4895 = ssub.s32 %s20, 2
        // Predicated region
        $region73: #{covidnext50_forward.1} parent=71 // pred_check
          %p4896 = pneg %p285
        $region74: #{covidnext50_forward.1} parent=71 // pred_check_branch
          %4898 = sbr.rel (%p4896) target = $region76
        $region75: #{covidnext50_forward.1} parent=71 // pred_region
          %s4899 = sand.u32 %s270, 1
          %s4900 = scalar_lea.sflag [#allocation3], %s4899
          %s4901 = sand.u32 %s270, 1
          %s4902 = scalar_lea.vmem [#allocation2], %s4901
          %4903 = dma.done %s4900, 16
        $region76: #{covidnext50_forward.1} parent=71 // pred_fallthru
          _
      $region72: #{covidnext50_forward.1} parent=5 // pred_fallthru
        _
    $region6: #{covidnext50_forward.1} parent=1 // loop_footer
      %s24 = sadd.s32 1, %s20
    $region7: #{covidnext50_forward.1} parent=1 // loop_footer_branch
      %19 = sbr.rel target = $region3
    $region8: #{covidnext50_forward.1} parent=1 // loop_exit
      _
    %4904 = vsyncpa [#allocation3], 1
    %s4905 = scalar_lea.sflag [#allocation3], 1
    %4906 = vsyncpa %s4905, 1

</llo_original>
